<compile_context>
chip_gen: v5e
topology: v5e:2x2
jax: 0.10.0
libtpu: 0.0.40
codegen_flags: <defaults>
</compile_context>

<pallas_src>
import functools

import numpy as np
import jax
import jax.numpy as jnp
from jax.experimental import pallas as pl
from jax.experimental.pallas import tpu as pltpu


OUT_ROWS = 8    # rgb(3) + depth(1) + acc-mask(1), padded up to a sublane multiple
D_OUT_PAD = 8   # color channels padded to a sublane multiple for the last matmul


# ----------------------------------------------------------------------------
# Fused ColorRegressor (mode='naive') + rendering_func kernel
# ----------------------------------------------------------------------------
def _fused_kernel(x_ref, z_ref, d_ref,
                  w0c_ref, w1_ref, b1_ref, wsx_ref, ws1_ref, bs1_ref,
                  out_ref, *, d_out):
    f32 = jnp.float32
    S, TR = z_ref.shape
    H = w1_ref.shape[1]          # lin_diff0 output width (== lin_diff1 input width)
    cdt = w0c_ref.dtype

    # ---- feature-major ColorRegressor MLP ------------------------------------
    # b0 / bs0 are folded onto the ones column of x; lin_diff0 and the x-part of
    # lin_spec0 share x as RHS -> a single fused (2H, din_pad) @ (din_pad, S*TR).
    x = x_ref[...]                                                 # (din_pad, S*TR)
    h01 = jnp.dot(w0c_ref[...], x, preferred_element_type=f32)     # (2H, N) f32
    h0 = jnp.maximum(h01[:H], 0.0)                                 # relu(lin_diff0)
    xskip = h01[H:]                                                # x@ws0[H:] + bs0 (pre-relu)

    h1 = jnp.dot(w1_ref[...], h0.astype(cdt),
                 preferred_element_type=f32) + b1_ref[...]         # lin_diff1
    h1 = jnp.maximum(h1, 0.0)

    h2 = jnp.dot(wsx_ref[...], h1.astype(cdt),
                 preferred_element_type=f32) + xskip               # lin_spec0
    h2 = jnp.maximum(h2, 0.0)

    logit = jnp.dot(ws1_ref[...], h2.astype(cdt),
                    preferred_element_type=f32) + bs1_ref[...]     # lin_spec1
    colT = jax.nn.sigmoid(logit)                  # (D_OUT_PAD, S*TR), rows < d_out valid

    # ---- rendering_func / get_weights (all f32, (S, TR) sample-major layout) --
    z = z_ref[...]                                                 # (S, TR)
    dens = d_ref[...]                                              # (S, TR)
    d_body = jnp.maximum(z[1:] - z[:-1], 1e-8)                     # clamp(min=1e-8)
    fe_body = d_body * dens[:S - 1]                                # (S-1, TR)
    fe_last = 1e10 * dens[S - 1:]                                  # appended 1e10 "dist"
    alpha = 1.0 - jnp.exp(-jnp.concatenate([fe_body, fe_last], axis=0))

    # exclusive prefix sum of fe along samples (sublane axis), log-step doubling
    acc = jnp.concatenate([jnp.zeros((1, TR), f32), fe_body], axis=0)   # shifted fe
    shift = 1
    while shift < S:
        acc = acc + jnp.concatenate(
            [jnp.zeros((shift, TR), f32), acc[:S - shift]], axis=0)
        shift *= 2
    w = alpha * jnp.exp(-acc)                                      # (S, TR) weights

    depth = jnp.sum(w * z, axis=0, keepdims=True)                  # (1, TR)
    mask = jnp.sum(w, axis=0, keepdims=True)                       # (1, TR)

    rgb = jnp.zeros((D_OUT_PAD, TR), f32)
    for s in range(S):   # unrolled; lane-aligned slices of the channel-major colors
        rgb = rgb + w[s:s + 1, :] * colT[:, s * TR:(s + 1) * TR]

    # channel-major rows -> one lane-dense (OUT_ROWS, TR) store, no transpose
    out_ref[...] = jnp.concatenate(
        [rgb[:d_out], depth, mask,
         jnp.zeros((OUT_ROWS - d_out - 2, TR), f32)], axis=0)


def rendering_network_pallas(pts, dirs, normals, density, z_vals, params,
                             *, tr=512, compute_dtype=jnp.bfloat16):
    """Fused ColorRegressor + rendering_func forward.

    pts/dirs/normals: (B, P, S, 3); density/z_vals: (B, P, S).
    Returns rgb_map (B, P, 3), depth_map (B, P), acc mask (B, P).
    """
    B, P, S = z_vals.shape
    assert S >= 2
    R = B * P
    d_in = 9
    H = params["w1"].shape[0]
    d_out = params["ws1"].shape[1]
    din_pad = ((d_in + 1 + 7) // 8) * 8            # +1 ones column for the bias fold

    # ray-tile size: multiple of 128, pad the ray count, keep >= 2 grid steps when
    # possible (v7x has 2 TensorCores fed via dimension_semantics=('parallel',)).
    tr = int(max(128, min(tr, ((R + 127) // 128) * 128)))
    Rp = ((R + tr - 1) // tr) * tr
    if Rp // tr < 2 and Rp >= 256:
        tr = max(128, (Rp // 2 // 128) * 128)
        Rp = ((R + tr - 1) // tr) * tr
    T = Rp // tr

    # features in feature-major layout (single layout pick in the wrapper):
    # x2d[d, (t*S + s)*tr + j] = feat[t*tr + j, s, d]; column d_in is the ones column.
    feat = jnp.concatenate([pts, dirs, normals], axis=-1).reshape(R, S, d_in)
    x = jnp.concatenate(
        [feat.astype(jnp.float32),
         jnp.ones((R, S, 1), jnp.float32),
         jnp.zeros((R, S, din_pad - d_in - 1), jnp.float32)], axis=-1)
    x = jnp.pad(x, ((0, Rp - R), (0, 0), (0, 0)))
    x = jnp.transpose(x.reshape(T, tr, S, din_pad), (3, 0, 2, 1))
    x = x.reshape(din_pad, T * S * tr).astype(compute_dtype)

    # rendering inputs sample-major (S, Rp): an (S, tr) block is a few dense vregs
    z = jnp.pad(z_vals.reshape(R, S).T.astype(jnp.float32), ((0, 0), (0, Rp - R)))
    dens = jnp.pad(density.reshape(R, S).T.astype(jnp.float32), ((0, 0), (0, Rp - R)))

    # transposed weights with b0 / bs0 folded onto the ones column of x
    def foldT(wm, b):
        out = jnp.zeros((wm.shape[1], din_pad), jnp.float32)
        return out.at[:, :wm.shape[0]].set(wm.T).at[:, d_in].set(b)

    w0c = jnp.concatenate([foldT(params["w0"], params["b0"]),
                           foldT(params["ws0"][H:], params["bs0"])],
                          axis=0).astype(compute_dtype)
    w1T = params["w1"].T.astype(compute_dtype)
    wsxT = params["ws0"][:H].T.astype(compute_dtype)
    ws1T = (jnp.zeros((D_OUT_PAD, params["ws1"].shape[0]), jnp.float32)
            .at[:d_out].set(params["ws1"].T)).astype(compute_dtype)
    b1c = params["b1"].astype(jnp.float32)[:, None]
    bs1c = jnp.zeros((D_OUT_PAD, 1), jnp.float32).at[:d_out, 0].set(params["bs1"])

    def full(a):
        return pl.BlockSpec(a.shape, lambda i: (0,) * a.ndim)

    cp = dict(dimension_semantics=("parallel",))
    if tr > 512:
        # bigger tiles: lift the default scoped-VMEM ceiling (16 MiB v5e / 32 MiB v6e)
        cp["vmem_limit_bytes"] = 32 * 1024 * 1024

    out = pl.pallas_call(
        functools.partial(_fused_kernel, d_out=d_out),
        out_shape=jax.ShapeDtypeStruct((OUT_ROWS, Rp), jnp.float32),
        grid=(T,),
        in_specs=[pl.BlockSpec((din_pad, S * tr), lambda i: (0, i)),
                  pl.BlockSpec((S, tr), lambda i: (0, i)),
                  pl.BlockSpec((S, tr), lambda i: (0, i)),
                  full(w0c), full(w1T), full(b1c),
                  full(wsxT), full(ws1T), full(bs1c)],
        out_specs=pl.BlockSpec((OUT_ROWS, tr), lambda i: (0, i)),
        compiler_params=pltpu.CompilerParams(**cp),
    )(x, z, dens, w0c, w1T, b1c, wsxT, ws1T, bs1c)

    rgb = jnp.transpose(out[:d_out, :R]).reshape(B, P, d_out)
    depth = out[d_out, :R].reshape(B, P)
    mask = out[d_out + 1, :R].reshape(B, P)
    return rgb, depth, mask


# ----------------------------------------------------------------------------
# Deterministic parameter init (weight_norm at init == plain Linear weights)
# ----------------------------------------------------------------------------
def init_color_params(key, d_in=9, d_out=3, dims=(32, 32, 32, 32), num_diff_layers=3):
    dims_diff = [d_in] + list(dims[:num_diff_layers])
    dims_spec = [dims[num_diff_layers - 1] + 9] + list(dims[num_diff_layers:]) + [d_out]
    ks = jax.random.split(key, 8)

    def lin(k, fi, fo):
        return jax.random.normal(k, (fi, fo), jnp.float32) / jnp.sqrt(float(fi))

    def bias(k, fo):
        return jax.random.normal(k, (fo,), jnp.float32) * 0.01

    return {
        "w0": lin(ks[0], dims_diff[0], dims_diff[1]), "b0": bias(ks[1], dims_diff[1]),
        "w1": lin(ks[2], dims_diff[1], dims_diff[2]), "b1": bias(ks[3], dims_diff[2]),
        "ws0": lin(ks[4], dims_spec[0], dims_spec[1]), "bs0": bias(ks[5], dims_spec[1]),
        "ws1": lin(ks[6], dims_spec[1], dims_spec[2]), "bs1": bias(ks[7], dims_spec[2]),
    }


# ----------------------------------------------------------------------------
# Pure-JAX references (mirror the PyTorch forward exactly)
# ----------------------------------------------------------------------------
def color_regressor_ref(pts, dirs, normals, params):
    hi = jax.lax.Precision.HIGHEST
    x_in = jnp.concatenate([pts, dirs, normals], -1)
    x = jax.nn.relu(jnp.dot(x_in, params["w0"], precision=hi) + params["b0"])
    x = jax.nn.relu(jnp.dot(x, params["w1"], precision=hi) + params["b1"])
    x = jnp.concatenate([x, pts, dirs, normals], -1)     # position defaults to points
    x = jax.nn.relu(jnp.dot(x, params["ws0"], precision=hi) + params["bs0"])
    x = jnp.dot(x, params["ws1"], precision=hi) + params["bs1"]
    return jax.nn.sigmoid(x)


def rendering_ref(density, color, z_vals):
    dists = z_vals[..., 1:] - z_vals[..., :-1]
    dists = jnp.clip(dists, 1e-8, None)
    dists = jnp.concatenate([dists, jnp.full(dists.shape[:-1] + (1,), 1e10)], -1)
    fe = dists * density
    alpha = 1.0 - jnp.exp(-fe)
    shifted = jnp.concatenate([jnp.zeros(dists.shape[:-1] + (1,)), fe[..., :-1]], -1)
    t = jnp.exp(-jnp.cumsum(shifted, -1))
    w = alpha * t
    return jnp.sum(w[..., None] * color, -2), jnp.sum(w * z_vals, -1), w.sum(-1)


# ----------------------------------------------------------------------------
if __name__ == "__main__":
    B, P, S = 2, 1024, 8         # batch, num_pixels, N_samples (small but multi-tile)
    key = jax.random.PRNGKey(0)
    k = jax.random.split(key, 6)

    pts = jax.random.normal(k[0], (B, P, S, 3), jnp.float32) * 0.5
    dirs = jax.random.normal(k[1], (B, P, S, 3), jnp.float32)
    dirs = dirs / jnp.linalg.norm(dirs, axis=-1, keepdims=True)
    normals = jax.random.normal(k[2], (B, P, S, 3), jnp.float32)
    normals = normals / jnp.linalg.norm(normals, axis=-1, keepdims=True)
    z_vals = jnp.sort(jax.random.uniform(k[3], (B, P, S), jnp.float32, 0.5, 2.0), axis=-1)
    sd_vals = jax.random.normal(k[4], (B, P, S), jnp.float32) * 0.1

    params = init_color_params(k[5])

    # LaplaceDensity-style glue (class body not provided in the reference).
    beta = 0.05
    density = (1.0 / beta) * jnp.where(
        sd_vals <= 0.0,
        1.0 - 0.5 * jnp.exp(sd_vals / beta),
        0.5 * jnp.exp(-sd_vals / beta))

    # pure-JAX reference
    flat = lambda a: a.reshape(-1, 3)
    color_r = color_regressor_ref(flat(pts), flat(dirs), flat(normals), params)
    color_r = color_r.reshape(B, P, S, 3)
    rgb_r, depth_r, mask_r = rendering_ref(density, color_r, z_vals)

    # run the fused kernel: f32 (tight check) and bf16-matmul (performance default)
    for cdt, tol in ((jnp.float32, 2e-3), (jnp.bfloat16, 2e-2)):
        rgb_map, depth_map, mask = rendering_network_pallas(
            pts, dirs, normals, density, z_vals, params, tr=512, compute_dtype=cdt)
        jax.block_until_ready((rgb_map, depth_map, mask))
        assert np.allclose(np.asarray(rgb_map), np.asarray(rgb_r), atol=tol, rtol=tol), cdt
        assert np.allclose(np.asarray(depth_map), np.asarray(depth_r), atol=1e-3, rtol=1e-3), cdt
        assert np.allclose(np.asarray(mask), np.asarray(mask_r), atol=1e-3, rtol=1e-3), cdt

    print("KERNEL_OK")
</pallas_src>

<mosaic_0001>
module attributes {stable_mosaic.version = 11 : i64} {
  func.func @_fused_kernel(%arg0: i32, %arg1: memref<16x4096xf32, #tpu.memory_space<vmem>>, %arg2: memref<8x512xf32, #tpu.memory_space<vmem>>, %arg3: memref<8x512xf32, #tpu.memory_space<vmem>>, %arg4: memref<64x16xf32, #tpu.memory_space<vmem>>, %arg5: memref<32x32xf32, #tpu.memory_space<vmem>>, %arg6: memref<32x1xf32, #tpu.memory_space<vmem>>, %arg7: memref<32x32xf32, #tpu.memory_space<vmem>>, %arg8: memref<8x32xf32, #tpu.memory_space<vmem>>, %arg9: memref<8x1xf32, #tpu.memory_space<vmem>>, %arg10: memref<8x512xf32, #tpu.memory_space<vmem>>) attributes {dimension_semantics = [#tpu.dimension_semantics<parallel>], iteration_bounds = array<i64: 4>, scalar_prefetch = 0 : i64, scratch_operands = 0 : i64, tpu.core_type = #tpu.core_type<tc>, window_params = [{transform_indices = @transform_0, window_bounds = array<i64: 16, 4096>}, {transform_indices = @transform_1, window_bounds = array<i64: 8, 512>}, {transform_indices = @transform_2, window_bounds = array<i64: 8, 512>}, {pipeline_mode = #tpu.pipeline_mode<synchronous>, transform_indices = @transform_3, window_bounds = array<i64: 64, 16>}, {pipeline_mode = #tpu.pipeline_mode<synchronous>, transform_indices = @transform_4, window_bounds = array<i64: 32, 32>}, {pipeline_mode = #tpu.pipeline_mode<synchronous>, transform_indices = @transform_5, window_bounds = array<i64: 32, 1>}, {pipeline_mode = #tpu.pipeline_mode<synchronous>, transform_indices = @transform_6, window_bounds = array<i64: 32, 32>}, {pipeline_mode = #tpu.pipeline_mode<synchronous>, transform_indices = @transform_7, window_bounds = array<i64: 8, 32>}, {pipeline_mode = #tpu.pipeline_mode<synchronous>, transform_indices = @transform_8, window_bounds = array<i64: 8, 1>}, {transform_indices = @transform_9, window_bounds = array<i64: 8, 512>}]} {
    %c0 = arith.constant 0 : index
    %c0_0 = arith.constant 0 : index
    %0 = vector.load %arg1[%c0, %c0_0] : memref<16x4096xf32, #tpu.memory_space<vmem>>, vector<16x4096xf32>
    %c0_1 = arith.constant 0 : index
    %c0_2 = arith.constant 0 : index
    %1 = vector.load %arg4[%c0_1, %c0_2] : memref<64x16xf32, #tpu.memory_space<vmem>>, vector<64x16xf32>
    %cst = arith.constant dense<0.000000e+00> : vector<64x4096xf32>
    %2 = tpu.matmul %1, %0, %cst {dimension_numbers = #tpu.dot_dimension_numbers<[1], [0], [0], [1], [0, 0, 1, 1], [], []>} : vector<64x16xf32>, vector<16x4096xf32>, vector<64x4096xf32> -> vector<64x4096xf32>
    %3 = vector.extract_strided_slice %2 {offsets = [0, 0], sizes = [32, 4096], strides = [1, 1]} : vector<64x4096xf32> to vector<32x4096xf32>
    %cst_3 = arith.constant 0.000000e+00 : f32
    %4 = vector.broadcast %cst_3 : f32 to vector<32x4096xf32>
    %5 = arith.maximumf %3, %4 : vector<32x4096xf32>
    %6 = vector.extract_strided_slice %2 {offsets = [32, 0], sizes = [32, 4096], strides = [1, 1]} : vector<64x4096xf32> to vector<32x4096xf32>
    %c0_4 = arith.constant 0 : index
    %c0_5 = arith.constant 0 : index
    %7 = vector.load %arg5[%c0_4, %c0_5] : memref<32x32xf32, #tpu.memory_space<vmem>>, vector<32x32xf32>
    %cst_6 = arith.constant dense<0.000000e+00> : vector<32x4096xf32>
    %8 = tpu.matmul %7, %5, %cst_6 {dimension_numbers = #tpu.dot_dimension_numbers<[1], [0], [0], [1], [0, 0, 1, 1], [], []>} : vector<32x32xf32>, vector<32x4096xf32>, vector<32x4096xf32> -> vector<32x4096xf32>
    %c0_7 = arith.constant 0 : index
    %c0_8 = arith.constant 0 : index
    %9 = vector.load %arg6[%c0_7, %c0_8] : memref<32x1xf32, #tpu.memory_space<vmem>>, vector<32x1xf32>
    %10 = vector.broadcast %9 : vector<32x1xf32> to vector<32x4096xf32>
    %11 = arith.addf %8, %10 : vector<32x4096xf32>
    %cst_9 = arith.constant 0.000000e+00 : f32
    %12 = vector.broadcast %cst_9 : f32 to vector<32x4096xf32>
    %13 = arith.maximumf %11, %12 : vector<32x4096xf32>
    %c0_10 = arith.constant 0 : index
    %c0_11 = arith.constant 0 : index
    %14 = vector.load %arg7[%c0_10, %c0_11] : memref<32x32xf32, #tpu.memory_space<vmem>>, vector<32x32xf32>
    %cst_12 = arith.constant dense<0.000000e+00> : vector<32x4096xf32>
    %15 = tpu.matmul %14, %13, %cst_12 {dimension_numbers = #tpu.dot_dimension_numbers<[1], [0], [0], [1], [0, 0, 1, 1], [], []>} : vector<32x32xf32>, vector<32x4096xf32>, vector<32x4096xf32> -> vector<32x4096xf32>
    %16 = arith.addf %15, %6 : vector<32x4096xf32>
    %cst_13 = arith.constant 0.000000e+00 : f32
    %17 = vector.broadcast %cst_13 : f32 to vector<32x4096xf32>
    %18 = arith.maximumf %16, %17 : vector<32x4096xf32>
    %c0_14 = arith.constant 0 : index
    %c0_15 = arith.constant 0 : index
    %19 = vector.load %arg8[%c0_14, %c0_15] : memref<8x32xf32, #tpu.memory_space<vmem>>, vector<8x32xf32>
    %cst_16 = arith.constant dense<0.000000e+00> : vector<8x4096xf32>
    %20 = tpu.matmul %19, %18, %cst_16 {dimension_numbers = #tpu.dot_dimension_numbers<[1], [0], [0], [1], [0, 0, 1, 1], [], []>} : vector<8x32xf32>, vector<32x4096xf32>, vector<8x4096xf32> -> vector<8x4096xf32>
    %c0_17 = arith.constant 0 : index
    %c0_18 = arith.constant 0 : index
    %21 = vector.load %arg9[%c0_17, %c0_18] : memref<8x1xf32, #tpu.memory_space<vmem>>, vector<8x1xf32>
    %22 = vector.broadcast %21 : vector<8x1xf32> to vector<8x4096xf32>
    %23 = arith.addf %20, %22 : vector<8x4096xf32>
    %24 = arith.negf %23 : vector<8x4096xf32>
    %25 = math.exp %24 : vector<8x4096xf32>
    %cst_19 = arith.constant 1.000000e+00 : f32
    %26 = vector.broadcast %cst_19 : f32 to vector<8x4096xf32>
    %27 = arith.addf %26, %25 : vector<8x4096xf32>
    %28 = arith.divf %26, %27 : vector<8x4096xf32>
    %c0_20 = arith.constant 0 : index
    %c0_21 = arith.constant 0 : index
    %29 = vector.load %arg2[%c0_20, %c0_21] : memref<8x512xf32, #tpu.memory_space<vmem>>, vector<8x512xf32>
    %c0_22 = arith.constant 0 : index
    %c0_23 = arith.constant 0 : index
    %30 = vector.load %arg3[%c0_22, %c0_23] : memref<8x512xf32, #tpu.memory_space<vmem>>, vector<8x512xf32>
    %31 = vector.extract_strided_slice %29 {offsets = [1, 0], sizes = [7, 512], strides = [1, 1]} : vector<8x512xf32> to vector<7x512xf32>
    %32 = vector.extract_strided_slice %29 {offsets = [0, 0], sizes = [7, 512], strides = [1, 1]} : vector<8x512xf32> to vector<7x512xf32>
    %33 = arith.subf %31, %32 : vector<7x512xf32>
    %cst_24 = arith.constant 9.99999993E-9 : f32
    %34 = vector.broadcast %cst_24 : f32 to vector<7x512xf32>
    %35 = arith.maximumf %33, %34 : vector<7x512xf32>
    %36 = vector.extract_strided_slice %30 {offsets = [0, 0], sizes = [7, 512], strides = [1, 1]} : vector<8x512xf32> to vector<7x512xf32>
    %37 = arith.mulf %35, %36 : vector<7x512xf32>
    %38 = vector.extract_strided_slice %30 {offsets = [7, 0], sizes = [1, 512], strides = [1, 1]} : vector<8x512xf32> to vector<1x512xf32>
    %cst_25 = arith.constant 1.000000e+10 : f32
    %39 = vector.broadcast %cst_25 : f32 to vector<1x512xf32>
    %40 = arith.mulf %39, %38 : vector<1x512xf32>
    %41 = tpu.concatenate %37, %40 in 0 : vector<7x512xf32>, vector<1x512xf32> -> vector<8x512xf32>
    %cst_26 = arith.constant 0.000000e+00 : f32
    %42 = vector.broadcast %cst_26 : f32 to vector<8x512xf32>
    %43 = arith.subf %42, %41 : vector<8x512xf32>
    %44 = math.exp %43 : vector<8x512xf32>
    %cst_27 = arith.constant 1.000000e+00 : f32
    %45 = vector.broadcast %cst_27 : f32 to vector<8x512xf32>
    %46 = arith.subf %45, %44 : vector<8x512xf32>
    %cst_28 = arith.constant 0.000000e+00 : f32
    %47 = vector.broadcast %cst_28 : f32 to vector<1x512xf32>
    %48 = tpu.concatenate %47, %37 in 0 : vector<1x512xf32>, vector<7x512xf32> -> vector<8x512xf32>
    %cst_29 = arith.constant 0.000000e+00 : f32
    %49 = vector.broadcast %cst_29 : f32 to vector<1x512xf32>
    %50 = vector.extract_strided_slice %48 {offsets = [0, 0], sizes = [7, 512], strides = [1, 1]} : vector<8x512xf32> to vector<7x512xf32>
    %51 = tpu.concatenate %49, %50 in 0 : vector<1x512xf32>, vector<7x512xf32> -> vector<8x512xf32>
    %52 = arith.addf %48, %51 : vector<8x512xf32>
    %cst_30 = arith.constant 0.000000e+00 : f32
    %53 = vector.broadcast %cst_30 : f32 to vector<2x512xf32>
    %54 = vector.extract_strided_slice %52 {offsets = [0, 0], sizes = [6, 512], strides = [1, 1]} : vector<8x512xf32> to vector<6x512xf32>
    %55 = tpu.concatenate %53, %54 in 0 : vector<2x512xf32>, vector<6x512xf32> -> vector<8x512xf32>
    %56 = arith.addf %52, %55 : vector<8x512xf32>
    %cst_31 = arith.constant 0.000000e+00 : f32
    %57 = vector.broadcast %cst_31 : f32 to vector<4x512xf32>
    %58 = vector.extract_strided_slice %56 {offsets = [0, 0], sizes = [4, 512], strides = [1, 1]} : vector<8x512xf32> to vector<4x512xf32>
    %59 = tpu.concatenate %57, %58 in 0 : vector<4x512xf32>, vector<4x512xf32> -> vector<8x512xf32>
    %60 = arith.addf %56, %59 : vector<8x512xf32>
    %cst_32 = arith.constant 0.000000e+00 : f32
    %61 = vector.broadcast %cst_32 : f32 to vector<8x512xf32>
    %62 = arith.subf %61, %60 : vector<8x512xf32>
    %63 = math.exp %62 : vector<8x512xf32>
    %64 = arith.mulf %46, %63 : vector<8x512xf32>
    %65 = arith.mulf %64, %29 : vector<8x512xf32>
    %cst_33 = arith.constant dense<0.000000e+00> : vector<512xf32>
    %66 = vector.multi_reduction <add>, %65, %cst_33 [0] : vector<8x512xf32> to vector<512xf32>
    %67 = vector.shape_cast %66 : vector<512xf32> to vector<1x512xf32>
    %cst_34 = arith.constant dense<0.000000e+00> : vector<512xf32>
    %68 = vector.multi_reduction <add>, %64, %cst_34 [0] : vector<8x512xf32> to vector<512xf32>
    %69 = vector.shape_cast %68 : vector<512xf32> to vector<1x512xf32>
    %cst_35 = arith.constant 0.000000e+00 : f32
    %70 = vector.broadcast %cst_35 : f32 to vector<8x512xf32>
    %71 = vector.extract_strided_slice %64 {offsets = [0, 0], sizes = [1, 512], strides = [1, 1]} : vector<8x512xf32> to vector<1x512xf32>
    %72 = vector.extract_strided_slice %28 {offsets = [0, 0], sizes = [8, 512], strides = [1, 1]} : vector<8x4096xf32> to vector<8x512xf32>
    %73 = vector.broadcast %71 : vector<1x512xf32> to vector<8x512xf32>
    %74 = arith.mulf %73, %72 : vector<8x512xf32>
    %75 = arith.addf %70, %74 : vector<8x512xf32>
    %76 = vector.extract_strided_slice %64 {offsets = [1, 0], sizes = [1, 512], strides = [1, 1]} : vector<8x512xf32> to vector<1x512xf32>
    %77 = vector.extract_strided_slice %28 {offsets = [0, 512], sizes = [8, 512], strides = [1, 1]} : vector<8x4096xf32> to vector<8x512xf32>
    %78 = vector.broadcast %76 : vector<1x512xf32> to vector<8x512xf32>
    %79 = arith.mulf %78, %77 : vector<8x512xf32>
    %80 = arith.addf %75, %79 : vector<8x512xf32>
    %81 = vector.extract_strided_slice %64 {offsets = [2, 0], sizes = [1, 512], strides = [1, 1]} : vector<8x512xf32> to vector<1x512xf32>
    %82 = vector.extract_strided_slice %28 {offsets = [0, 1024], sizes = [8, 512], strides = [1, 1]} : vector<8x4096xf32> to vector<8x512xf32>
    %83 = vector.broadcast %81 : vector<1x512xf32> to vector<8x512xf32>
    %84 = arith.mulf %83, %82 : vector<8x512xf32>
    %85 = arith.addf %80, %84 : vector<8x512xf32>
    %86 = vector.extract_strided_slice %64 {offsets = [3, 0], sizes = [1, 512], strides = [1, 1]} : vector<8x512xf32> to vector<1x512xf32>
    %87 = vector.extract_strided_slice %28 {offsets = [0, 1536], sizes = [8, 512], strides = [1, 1]} : vector<8x4096xf32> to vector<8x512xf32>
    %88 = vector.broadcast %86 : vector<1x512xf32> to vector<8x512xf32>
    %89 = arith.mulf %88, %87 : vector<8x512xf32>
    %90 = arith.addf %85, %89 : vector<8x512xf32>
    %91 = vector.extract_strided_slice %64 {offsets = [4, 0], sizes = [1, 512], strides = [1, 1]} : vector<8x512xf32> to vector<1x512xf32>
    %92 = vector.extract_strided_slice %28 {offsets = [0, 2048], sizes = [8, 512], strides = [1, 1]} : vector<8x4096xf32> to vector<8x512xf32>
    %93 = vector.broadcast %91 : vector<1x512xf32> to vector<8x512xf32>
    %94 = arith.mulf %93, %92 : vector<8x512xf32>
    %95 = arith.addf %90, %94 : vector<8x512xf32>
    %96 = vector.extract_strided_slice %64 {offsets = [5, 0], sizes = [1, 512], strides = [1, 1]} : vector<8x512xf32> to vector<1x512xf32>
    %97 = vector.extract_strided_slice %28 {offsets = [0, 2560], sizes = [8, 512], strides = [1, 1]} : vector<8x4096xf32> to vector<8x512xf32>
    %98 = vector.broadcast %96 : vector<1x512xf32> to vector<8x512xf32>
    %99 = arith.mulf %98, %97 : vector<8x512xf32>
    %100 = arith.addf %95, %99 : vector<8x512xf32>
    %101 = vector.extract_strided_slice %64 {offsets = [6, 0], sizes = [1, 512], strides = [1, 1]} : vector<8x512xf32> to vector<1x512xf32>
    %102 = vector.extract_strided_slice %28 {offsets = [0, 3072], sizes = [8, 512], strides = [1, 1]} : vector<8x4096xf32> to vector<8x512xf32>
    %103 = vector.broadcast %101 : vector<1x512xf32> to vector<8x512xf32>
    %104 = arith.mulf %103, %102 : vector<8x512xf32>
    %105 = arith.addf %100, %104 : vector<8x512xf32>
    %106 = vector.extract_strided_slice %64 {offsets = [7, 0], sizes = [1, 512], strides = [1, 1]} : vector<8x512xf32> to vector<1x512xf32>
    %107 = vector.extract_strided_slice %28 {offsets = [0, 3584], sizes = [8, 512], strides = [1, 1]} : vector<8x4096xf32> to vector<8x512xf32>
    %108 = vector.broadcast %106 : vector<1x512xf32> to vector<8x512xf32>
    %109 = arith.mulf %108, %107 : vector<8x512xf32>
    %110 = arith.addf %105, %109 : vector<8x512xf32>
    %111 = vector.extract_strided_slice %110 {offsets = [0, 0], sizes = [3, 512], strides = [1, 1]} : vector<8x512xf32> to vector<3x512xf32>
    %cst_36 = arith.constant 0.000000e+00 : f32
    %112 = vector.broadcast %cst_36 : f32 to vector<3x512xf32>
    %113 = tpu.concatenate %111, %67, %69, %112 in 0 : vector<3x512xf32>, vector<1x512xf32>, vector<1x512xf32>, vector<3x512xf32> -> vector<8x512xf32>
    %c0_37 = arith.constant 0 : index
    %c0_38 = arith.constant 0 : index
    %114 = vector.load %arg10[%c0_37, %c0_38] : memref<8x512xf32, #tpu.memory_space<vmem>>, vector<8x512xf32>
    tpu.vector_store %arg10[%c0_37, %c0_38], %113 {strides = array<i32>} : memref<8x512xf32, #tpu.memory_space<vmem>>, vector<8x512xf32>,
    return
  }
  func.func @transform_0(%arg0: i32) -> (i32, i32) {
    %c0_i32 = arith.constant 0 : i32
    %c0_i32_0 = arith.constant 0 : i32
    return %c0_i32, %arg0 : i32, i32
  }
  func.func @transform_1(%arg0: i32) -> (i32, i32) {
    %c0_i32 = arith.constant 0 : i32
    %c0_i32_0 = arith.constant 0 : i32
    return %c0_i32, %arg0 : i32, i32
  }
  func.func @transform_2(%arg0: i32) -> (i32, i32) {
    %c0_i32 = arith.constant 0 : i32
    %c0_i32_0 = arith.constant 0 : i32
    return %c0_i32, %arg0 : i32, i32
  }
  func.func @transform_3(%arg0: i32) -> (i32, i32) {
    %c0_i32 = arith.constant 0 : i32
    %c0_i32_0 = arith.constant 0 : i32
    %c0_i32_1 = arith.constant 0 : i32
    return %c0_i32, %c0_i32_0 : i32, i32
  }
  func.func @transform_4(%arg0: i32) -> (i32, i32) {
    %c0_i32 = arith.constant 0 : i32
    %c0_i32_0 = arith.constant 0 : i32
    %c0_i32_1 = arith.constant 0 : i32
    return %c0_i32, %c0_i32_0 : i32, i32
  }
  func.func @transform_5(%arg0: i32) -> (i32, i32) {
    %c0_i32 = arith.constant 0 : i32
    %c0_i32_0 = arith.constant 0 : i32
    %c0_i32_1 = arith.constant 0 : i32
    return %c0_i32, %c0_i32_0 : i32, i32
  }
  func.func @transform_6(%arg0: i32) -> (i32, i32) {
    %c0_i32 = arith.constant 0 : i32
    %c0_i32_0 = arith.constant 0 : i32
    %c0_i32_1 = arith.constant 0 : i32
    return %c0_i32, %c0_i32_0 : i32, i32
  }
  func.func @transform_7(%arg0: i32) -> (i32, i32) {
    %c0_i32 = arith.constant 0 : i32
    %c0_i32_0 = arith.constant 0 : i32
    %c0_i32_1 = arith.constant 0 : i32
    return %c0_i32, %c0_i32_0 : i32, i32
  }
  func.func @transform_8(%arg0: i32) -> (i32, i32) {
    %c0_i32 = arith.constant 0 : i32
    %c0_i32_0 = arith.constant 0 : i32
    %c0_i32_1 = arith.constant 0 : i32
    return %c0_i32, %c0_i32_0 : i32, i32
  }
  func.func @transform_9(%arg0: i32) -> (i32, i32) {
    %c0_i32 = arith.constant 0 : i32
    %c0_i32_0 = arith.constant 0 : i32
    return %c0_i32, %arg0 : i32, i32
  }
}

</mosaic_0001>

<llo_original>
// kernel: tpu_custom_call.1
$region0: #{tpu_custom_call.1}
  #allocation0 [shape = 'u32[]', space=smem, size = 0x4, offset = 0x4, fixed_abs, tag = 'smem constant byte address 0x4 - core index']
  #allocation1 [shape = 'u32[72,128]{1,0:T(1,128)}', space=vmem, size = 0x9000, scoped, tag = 'internal scratch']
  %s0 = inlined_call_operand.hbm [shape: f32[16,16384], index: 0, kind: input, shape index: {}]
  %s1 = inlined_call_operand.hbm [shape: f32[8,2048], index: 1, kind: input, shape index: {}]
  %s2 = inlined_call_operand.hbm [shape: f32[8,2048], index: 2, kind: input, shape index: {}]
  %s3 = inlined_call_operand.vmem [shape: f32[64,16], index: 3, kind: input, shape index: {}]
  %s4 = inlined_call_operand.vmem [shape: f32[32,32], index: 4, kind: input, shape index: {}]
  %s5 = inlined_call_operand.vmem [shape: f32[32,1], index: 5, kind: input, shape index: {}]
  %s6 = inlined_call_operand.vmem [shape: f32[32,32], index: 6, kind: input, shape index: {}]
  %s7 = inlined_call_operand.vmem [shape: f32[8,32], index: 7, kind: input, shape index: {}]
  %s8 = inlined_call_operand.vmem [shape: f32[8,1], index: 8, kind: input, shape index: {}]
  %s9 = inlined_call_operand.hbm [shape: f32[8,2048], index: 9, kind: output, shape index: {}]
  %s10 = sld [smem:[#allocation0]]
  $region81: #{tpu_custom_call.1} parent=0
    _
  %s12 = ssub.s32 1, %s10
  %s13 = scalar_select 0, %s12, %s10
  $region1: #{tpu_custom_call.1} parent=0
    #allocation2 [shape = 'u8[524288]{0}', space=vmem, size = 0x80000, scoped, tag = 'input window, operand 0']
    #allocation3 [shape = 's32[2]{0}', space=sflag, size = 0x8, scoped, tag = 'scoped memory for tpu_custom_call.1']
    #allocation4 [shape = 's32[2]{0}', space=sflag, size = 0x8, scoped, tag = 'scoped memory for tpu_custom_call.1']
    #allocation5 [shape = 'u8[32768]{0}', space=vmem, size = 0x8000, scoped, tag = 'input window, operand 1']
    #allocation6 [shape = 's32[2]{0}', space=sflag, size = 0x8, scoped, tag = 'scoped memory for tpu_custom_call.1']
    #allocation7 [shape = 'u8[32768]{0}', space=vmem, size = 0x8000, scoped, tag = 'input window, operand 2']
    #allocation8 [shape = 'u8[32768]{0}', space=vmem, size = 0x8000, scoped, tag = 'output window, operand 0']
    %14 = vsyncpa [#allocation3], 0
    %s15 = scalar_lea.sflag [#allocation3], 1
    %16 = vsyncpa %s15, 0
    %17 = vsyncpa [#allocation6], 0
    %s18 = scalar_lea.sflag [#allocation6], 1
    %19 = vsyncpa %s18, 0
    %20 = vsyncpa [#allocation4], 0
    %s21 = scalar_lea.sflag [#allocation4], 1
    %22 = vsyncpa %s21, 0
    loop: start=0, step=1, limit=6
    $region2: #{tpu_custom_call.1} parent=1 // loop_pre_header
      _
    $region3: #{tpu_custom_call.1} parent=1 // loop_header
      %s24 = sphi 0, %s28
      %p25 = scmp.ge.s32.totalorder %s24, 6
      %s34 = sphi 0, %s36
      %s37 = sphi 0, %s34
      %s38 = sphi 0, %s37
      %s54 = sphi 0, %s38
      %s60 = sphi 0, %s62
      %s63 = sphi 0, %s60
      %s64 = sphi 0, %s63
      %s80 = sphi 0, %s64
      %s86 = sphi 0, %s88
      %s89 = sphi 0, %s86
      %s90 = sphi 0, %s89
      %s106 = sphi 0, %s90
      %s110 = sphi 0, %s110
      %s112 = sphi 0, %s110
      %s113 = sphi 0, %s112
      %s127 = sphi 0, %s113
      %s131 = sphi 0, %s131
      %s133 = sphi 0, %s131
      %s134 = sphi 0, %s133
      %s148 = sphi 0, %s134
      %s152 = sphi 0, %s152
      %s154 = sphi 0, %s152
      %s155 = sphi 0, %s154
      %s169 = sphi 0, %s155
      %s173 = sphi 0, %s173
      %s175 = sphi 0, %s173
      %s176 = sphi 0, %s175
      %s190 = sphi 0, %s176
      %s194 = sphi 0, %s194
      %s196 = sphi 0, %s194
      %s197 = sphi 0, %s196
      %s211 = sphi 0, %s197
      %s215 = sphi 0, %s215
      %s217 = sphi 0, %s215
      %s218 = sphi 0, %s217
      %s232 = sphi 0, %s218
      %s238 = sphi 0, %s240
      %s241 = sphi 0, %s238
      %s242 = sphi 0, %s241
      %s258 = sphi 0, %s242
    $region4: #{tpu_custom_call.1} parent=1 // loop_header_branch
      %27 = sbr.rel (%p25) target = $region8
    $region5: #{tpu_custom_call.1} parent=1 // loop_body
      %s29 = ssub.s32 %s24, 1
      %s30 = ssub.s32 %s24, 2
      %s31 = sadd.s32 %s24, 1
      %s32 = ssub.s32 %s24, %s31
      %p33 = scmp.eq.s32.totalorder %s32, 0
      %s35 = sadd.s32 %s34, 1
      %s36 = scalar_select %p33, %s34, %s35
      %p39 = pneg %p33
      %p40 = scmp.eq.s32.totalorder %s24, 3
      %p41 = por %p39, %p40
      %p42 = scmp.ne.s32.totalorder %s34, %s37
      %p43 = scmp.eq.s32.totalorder %s24, 0
      %p44 = por %p42, %p43
      %p45 = scmp.ne.s32.totalorder %s34, %s37
      %p46 = scmp.eq.s32.totalorder %s29, 3
      %p47 = por %p45, %p46
      %p48 = scmp.ne.s32.totalorder %s37, %s38
      %p49 = scmp.eq.s32.totalorder %s29, 0
      %p50 = por %p48, %p49
      %p51 = scmp.ne.s32.totalorder %s37, %s38
      %p52 = scmp.eq.s32.totalorder %s30, 3
      %p53 = por %p51, %p52
      %p55 = scmp.ne.s32.totalorder %s38, %s54
      %p56 = scmp.eq.s32.totalorder %s30, 0
      %p57 = por %p55, %p56
      %s58 = ssub.s32 %s24, %s31
      %p59 = scmp.eq.s32.totalorder %s58, 0
      %s61 = sadd.s32 %s60, 1
      %s62 = scalar_select %p59, %s60, %s61
      %p65 = pneg %p59
      %p66 = scmp.eq.s32.totalorder %s24, 3
      %p67 = por %p65, %p66
      %p68 = scmp.ne.s32.totalorder %s60, %s63
      %p69 = scmp.eq.s32.totalorder %s24, 0
      %p70 = por %p68, %p69
      %p71 = scmp.ne.s32.totalorder %s60, %s63
      %p72 = scmp.eq.s32.totalorder %s29, 3
      %p73 = por %p71, %p72
      %p74 = scmp.ne.s32.totalorder %s63, %s64
      %p75 = scmp.eq.s32.totalorder %s29, 0
      %p76 = por %p74, %p75
      %p77 = scmp.ne.s32.totalorder %s63, %s64
      %p78 = scmp.eq.s32.totalorder %s30, 3
      %p79 = por %p77, %p78
      %p81 = scmp.ne.s32.totalorder %s64, %s80
      %p82 = scmp.eq.s32.totalorder %s30, 0
      %p83 = por %p81, %p82
      %s84 = ssub.s32 %s24, %s31
      %p85 = scmp.eq.s32.totalorder %s84, 0
      %s87 = sadd.s32 %s86, 1
      %s88 = scalar_select %p85, %s86, %s87
      %p91 = pneg %p85
      %p92 = scmp.eq.s32.totalorder %s24, 3
      %p93 = por %p91, %p92
      %p94 = scmp.ne.s32.totalorder %s86, %s89
      %p95 = scmp.eq.s32.totalorder %s24, 0
      %p96 = por %p94, %p95
      %p97 = scmp.ne.s32.totalorder %s86, %s89
      %p98 = scmp.eq.s32.totalorder %s29, 3
      %p99 = por %p97, %p98
      %p100 = scmp.ne.s32.totalorder %s89, %s90
      %p101 = scmp.eq.s32.totalorder %s29, 0
      %p102 = por %p100, %p101
      %p103 = scmp.ne.s32.totalorder %s89, %s90
      %p104 = scmp.eq.s32.totalorder %s30, 3
      %p105 = por %p103, %p104
      %p107 = scmp.ne.s32.totalorder %s90, %s106
      %p108 = scmp.eq.s32.totalorder %s30, 0
      %p109 = por %p107, %p108
      %s111 = sadd.s32 %s110, 1
      %p114 = scmp.eq.s32.totalorder %s24, 3
      %p115 = scmp.ne.s32.totalorder %s110, %s112
      %p116 = scmp.eq.s32.totalorder %s24, 0
      %p117 = por %p115, %p116
      %p118 = scmp.ne.s32.totalorder %s110, %s112
      %p119 = scmp.eq.s32.totalorder %s29, 3
      %p120 = por %p118, %p119
      %p121 = scmp.ne.s32.totalorder %s112, %s113
      %p122 = scmp.eq.s32.totalorder %s29, 0
      %p123 = por %p121, %p122
      %p124 = scmp.ne.s32.totalorder %s112, %s113
      %p125 = scmp.eq.s32.totalorder %s30, 3
      %p126 = por %p124, %p125
      %p128 = scmp.ne.s32.totalorder %s113, %s127
      %p129 = scmp.eq.s32.totalorder %s30, 0
      %p130 = por %p128, %p129
      %s132 = sadd.s32 %s131, 1
      %p135 = scmp.eq.s32.totalorder %s24, 3
      %p136 = scmp.ne.s32.totalorder %s131, %s133
      %p137 = scmp.eq.s32.totalorder %s24, 0
      %p138 = por %p136, %p137
      %p139 = scmp.ne.s32.totalorder %s131, %s133
      %p140 = scmp.eq.s32.totalorder %s29, 3
      %p141 = por %p139, %p140
      %p142 = scmp.ne.s32.totalorder %s133, %s134
      %p143 = scmp.eq.s32.totalorder %s29, 0
      %p144 = por %p142, %p143
      %p145 = scmp.ne.s32.totalorder %s133, %s134
      %p146 = scmp.eq.s32.totalorder %s30, 3
      %p147 = por %p145, %p146
      %p149 = scmp.ne.s32.totalorder %s134, %s148
      %p150 = scmp.eq.s32.totalorder %s30, 0
      %p151 = por %p149, %p150
      %s153 = sadd.s32 %s152, 1
      %p156 = scmp.eq.s32.totalorder %s24, 3
      %p157 = scmp.ne.s32.totalorder %s152, %s154
      %p158 = scmp.eq.s32.totalorder %s24, 0
      %p159 = por %p157, %p158
      %p160 = scmp.ne.s32.totalorder %s152, %s154
      %p161 = scmp.eq.s32.totalorder %s29, 3
      %p162 = por %p160, %p161
      %p163 = scmp.ne.s32.totalorder %s154, %s155
      %p164 = scmp.eq.s32.totalorder %s29, 0
      %p165 = por %p163, %p164
      %p166 = scmp.ne.s32.totalorder %s154, %s155
      %p167 = scmp.eq.s32.totalorder %s30, 3
      %p168 = por %p166, %p167
      %p170 = scmp.ne.s32.totalorder %s155, %s169
      %p171 = scmp.eq.s32.totalorder %s30, 0
      %p172 = por %p170, %p171
      %s174 = sadd.s32 %s173, 1
      %p177 = scmp.eq.s32.totalorder %s24, 3
      %p178 = scmp.ne.s32.totalorder %s173, %s175
      %p179 = scmp.eq.s32.totalorder %s24, 0
      %p180 = por %p178, %p179
      %p181 = scmp.ne.s32.totalorder %s173, %s175
      %p182 = scmp.eq.s32.totalorder %s29, 3
      %p183 = por %p181, %p182
      %p184 = scmp.ne.s32.totalorder %s175, %s176
      %p185 = scmp.eq.s32.totalorder %s29, 0
      %p186 = por %p184, %p185
      %p187 = scmp.ne.s32.totalorder %s175, %s176
      %p188 = scmp.eq.s32.totalorder %s30, 3
      %p189 = por %p187, %p188
      %p191 = scmp.ne.s32.totalorder %s176, %s190
      %p192 = scmp.eq.s32.totalorder %s30, 0
      %p193 = por %p191, %p192
      %s195 = sadd.s32 %s194, 1
      %p198 = scmp.eq.s32.totalorder %s24, 3
      %p199 = scmp.ne.s32.totalorder %s194, %s196
      %p200 = scmp.eq.s32.totalorder %s24, 0
      %p201 = por %p199, %p200
      %p202 = scmp.ne.s32.totalorder %s194, %s196
      %p203 = scmp.eq.s32.totalorder %s29, 3
      %p204 = por %p202, %p203
      %p205 = scmp.ne.s32.totalorder %s196, %s197
      %p206 = scmp.eq.s32.totalorder %s29, 0
      %p207 = por %p205, %p206
      %p208 = scmp.ne.s32.totalorder %s196, %s197
      %p209 = scmp.eq.s32.totalorder %s30, 3
      %p210 = por %p208, %p209
      %p212 = scmp.ne.s32.totalorder %s197, %s211
      %p213 = scmp.eq.s32.totalorder %s30, 0
      %p214 = por %p212, %p213
      %s216 = sadd.s32 %s215, 1
      %p219 = scmp.eq.s32.totalorder %s24, 3
      %p220 = scmp.ne.s32.totalorder %s215, %s217
      %p221 = scmp.eq.s32.totalorder %s24, 0
      %p222 = por %p220, %p221
      %p223 = scmp.ne.s32.totalorder %s215, %s217
      %p224 = scmp.eq.s32.totalorder %s29, 3
      %p225 = por %p223, %p224
      %p226 = scmp.ne.s32.totalorder %s217, %s218
      %p227 = scmp.eq.s32.totalorder %s29, 0
      %p228 = por %p226, %p227
      %p229 = scmp.ne.s32.totalorder %s217, %s218
      %p230 = scmp.eq.s32.totalorder %s30, 3
      %p231 = por %p229, %p230
      %p233 = scmp.ne.s32.totalorder %s218, %s232
      %p234 = scmp.eq.s32.totalorder %s30, 0
      %p235 = por %p233, %p234
      %s236 = ssub.s32 %s24, %s31
      %p237 = scmp.eq.s32.totalorder %s236, 0
      %s239 = sadd.s32 %s238, 1
      %s240 = scalar_select %p237, %s238, %s239
      %p243 = pneg %p237
      %p244 = scmp.eq.s32.totalorder %s24, 3
      %p245 = por %p243, %p244
      %p246 = scmp.ne.s32.totalorder %s238, %s241
      %p247 = scmp.eq.s32.totalorder %s24, 0
      %p248 = por %p246, %p247
      %p249 = scmp.ne.s32.totalorder %s238, %s241
      %p250 = scmp.eq.s32.totalorder %s29, 3
      %p251 = por %p249, %p250
      %p252 = scmp.ne.s32.totalorder %s241, %s242
      %p253 = scmp.eq.s32.totalorder %s29, 0
      %p254 = por %p252, %p253
      %p255 = scmp.ne.s32.totalorder %s241, %s242
      %p256 = scmp.eq.s32.totalorder %s30, 3
      %p257 = por %p255, %p256
      %p259 = scmp.ne.s32.totalorder %s242, %s258
      %p260 = scmp.eq.s32.totalorder %s30, 0
      %p261 = por %p259, %p260
      %p262 = scmp.le.s32.totalorder 1, %s24
      %p263 = scmp.lt.s32.totalorder %s24, 5
      %p264 = pnand %p262, %p263
      %p265 = pneg %p264
      // Predicated region
      $region9: #{tpu_custom_call.1} parent=5 // pred_check
        _
      $region10: #{tpu_custom_call.1} parent=5 // pred_check_branch
        %267 = sbr.rel (%p264) target = $region12
      $region11: #{tpu_custom_call.1} parent=5 // pred_region
        %s268 = ssub.s32 %s24, 1
        // Predicated region
        $region13: #{tpu_custom_call.1} parent=11 // pred_check
          %p269 = pneg %p123
        $region14: #{tpu_custom_call.1} parent=11 // pred_check_branch
          %271 = sbr.rel (%p269) target = $region16
        $region15: #{tpu_custom_call.1} parent=11 // pred_region
          _
        $region16: #{tpu_custom_call.1} parent=11 // pred_fallthru
          _
        // Predicated region
        $region17: #{tpu_custom_call.1} parent=11 // pred_check
          %p272 = pneg %p144
        $region18: #{tpu_custom_call.1} parent=11 // pred_check_branch
          %274 = sbr.rel (%p272) target = $region20
        $region19: #{tpu_custom_call.1} parent=11 // pred_region
          _
        $region20: #{tpu_custom_call.1} parent=11 // pred_fallthru
          _
        // Predicated region
        $region21: #{tpu_custom_call.1} parent=11 // pred_check
          %p275 = pneg %p165
        $region22: #{tpu_custom_call.1} parent=11 // pred_check_branch
          %277 = sbr.rel (%p275) target = $region24
        $region23: #{tpu_custom_call.1} parent=11 // pred_region
          _
        $region24: #{tpu_custom_call.1} parent=11 // pred_fallthru
          _
        // Predicated region
        $region25: #{tpu_custom_call.1} parent=11 // pred_check
          %p278 = pneg %p186
        $region26: #{tpu_custom_call.1} parent=11 // pred_check_branch
          %280 = sbr.rel (%p278) target = $region28
        $region27: #{tpu_custom_call.1} parent=11 // pred_region
          _
        $region28: #{tpu_custom_call.1} parent=11 // pred_fallthru
          _
        // Predicated region
        $region29: #{tpu_custom_call.1} parent=11 // pred_check
          %p281 = pneg %p207
        $region30: #{tpu_custom_call.1} parent=11 // pred_check_branch
          %283 = sbr.rel (%p281) target = $region32
        $region31: #{tpu_custom_call.1} parent=11 // pred_region
          _
        $region32: #{tpu_custom_call.1} parent=11 // pred_fallthru
          _
        // Predicated region
        $region33: #{tpu_custom_call.1} parent=11 // pred_check
          %p284 = pneg %p228
        $region34: #{tpu_custom_call.1} parent=11 // pred_check_branch
          %286 = sbr.rel (%p284) target = $region36
        $region35: #{tpu_custom_call.1} parent=11 // pred_region
          _
        $region36: #{tpu_custom_call.1} parent=11 // pred_fallthru
          _
      $region12: #{tpu_custom_call.1} parent=5 // pred_fallthru
        _
      %p287 = scmp.lt.s32.totalorder %s24, 4
      // Predicated region
      $region37: #{tpu_custom_call.1} parent=5 // pred_check
        %p288 = pneg %p287
      $region38: #{tpu_custom_call.1} parent=5 // pred_check_branch
        %290 = sbr.rel (%p288) target = $region40
      $region39: #{tpu_custom_call.1} parent=5 // pred_region
        // Predicated region
        $region41: #{tpu_custom_call.1} parent=39 // pred_check
          %p291 = pneg %p44
        $region42: #{tpu_custom_call.1} parent=39 // pred_check_branch
          %293 = sbr.rel (%p291) target = $region44
        $region43: #{tpu_custom_call.1} parent=39 // pred_region
          %s294 = sand.u32 %s34, 1
          %s295 = scalar_lea.sflag [#allocation3], %s294
          %s296 = sand.u32 %s34, 1
          %s297 = smul.addr %s296, 512
          %s298 = scalar_lea.vmem [#allocation2], %s297
          %s299 = smul.u32 32, %s24
          %301 = vsyncadd %s295, 0
          %s302 = smul.addr %s299, 8
          %s303 = scalar_lea.hbm %s0, %s302
          %s304 = sshll.u32 %s303, 4
          %s305 = int_to_ptr.hbm [resolvable:$true] %s304
          %s306 = sshll.u32 %s298, 4
          %s307 = int_to_ptr.vmem [resolvable:$true] %s306
          %312 = dma.hbm_to_vmem [thread:$0]  %s305, 8192, %s307, %s295, 16384, 4096, 256
        $region44: #{tpu_custom_call.1} parent=39 // pred_fallthru
          _
        // Predicated region
        $region45: #{tpu_custom_call.1} parent=39 // pred_check
          %p313 = pneg %p70
        $region46: #{tpu_custom_call.1} parent=39 // pred_check_branch
          %315 = sbr.rel (%p313) target = $region48
        $region47: #{tpu_custom_call.1} parent=39 // pred_region
          %s316 = sand.u32 %s24, 1
          %s317 = scalar_lea.sflag [#allocation6], %s316
          %s318 = sand.u32 %s60, 1
          %s319 = smul.addr %s318, 32
          %s320 = scalar_lea.vmem [#allocation5], %s319
          %s321 = smul.u32 4, %s24
          %323 = vsyncadd %s317, 0
          %s324 = smul.addr %s321, 8
          %s325 = scalar_lea.hbm %s1, %s324
          %s327 = sshll.u32 %s325, 4
          %s328 = int_to_ptr.hbm [resolvable:$true] %s327
          %s329 = sshll.u32 %s320, 4
          %s330 = int_to_ptr.vmem [resolvable:$true] %s329
          %332 = dma.hbm_to_vmem [thread:$0]  %s328, 512, %s330, %s317
        $region48: #{tpu_custom_call.1} parent=39 // pred_fallthru
          _
        // Predicated region
        $region49: #{tpu_custom_call.1} parent=39 // pred_check
          %p333 = pneg %p96
        $region50: #{tpu_custom_call.1} parent=39 // pred_check_branch
          %335 = sbr.rel (%p333) target = $region52
        $region51: #{tpu_custom_call.1} parent=39 // pred_region
          %s336 = sand.u32 %s24, 1
          %s337 = scalar_lea.sflag [#allocation6], %s336
          %s338 = sand.u32 %s86, 1
          %s339 = smul.addr %s338, 32
          %s340 = scalar_lea.vmem [#allocation7], %s339
          %s341 = smul.u32 4, %s24
          %343 = vsyncadd %s337, 0
          %s344 = smul.addr %s341, 8
          %s345 = scalar_lea.hbm %s2, %s344
          %s347 = sshll.u32 %s345, 4
          %s348 = int_to_ptr.hbm [resolvable:$true] %s347
          %s349 = sshll.u32 %s340, 4
          %s350 = int_to_ptr.vmem [resolvable:$true] %s349
          %352 = dma.hbm_to_vmem [thread:$0]  %s348, 512, %s350, %s337
        $region52: #{tpu_custom_call.1} parent=39 // pred_fallthru
          _
      $region40: #{tpu_custom_call.1} parent=5 // pred_fallthru
        _
      %p353 = scmp.le.s32.totalorder 1, %s24
      %p354 = scmp.lt.s32.totalorder %s24, 5
      %p355 = pnand %p353, %p354
      %p356 = pneg %p355
      // Predicated region
      $region53: #{tpu_custom_call.1} parent=5 // pred_check
        _
      $region54: #{tpu_custom_call.1} parent=5 // pred_check_branch
        %358 = sbr.rel (%p355) target = $region56
      $region55: #{tpu_custom_call.1} parent=5 // pred_region
        %s359 = ssub.s32 %s24, 1
        %s360 = sand.u32 %s37, 1
        %s361 = scalar_lea.sflag [#allocation3], %s360
        %s362 = sand.u32 %s37, 1
        %s363 = smul.addr %s362, 512
        %s364 = scalar_lea.vmem [#allocation2], %s363
        // Predicated region
        $region57: #{tpu_custom_call.1} parent=55 // pred_check
          %p365 = pneg %p50
        $region58: #{tpu_custom_call.1} parent=55 // pred_check_branch
          %367 = sbr.rel (%p365) target = $region60
        $region59: #{tpu_custom_call.1} parent=55 // pred_region
          %369 = dma.done %s361, 8192
        $region60: #{tpu_custom_call.1} parent=55 // pred_fallthru
          _
        %s370 = sand.u32 %s29, 1
        %s371 = scalar_lea.sflag [#allocation6], %s370
        %s372 = sand.u32 %s63, 1
        %s373 = smul.addr %s372, 32
        %s374 = scalar_lea.vmem [#allocation5], %s373
        // Predicated region
        $region61: #{tpu_custom_call.1} parent=55 // pred_check
          %p375 = pneg %p76
        $region62: #{tpu_custom_call.1} parent=55 // pred_check_branch
          %377 = sbr.rel (%p375) target = $region64
        $region63: #{tpu_custom_call.1} parent=55 // pred_region
          %379 = dma.done %s371, 512
        $region64: #{tpu_custom_call.1} parent=55 // pred_fallthru
          _
        %s380 = sand.u32 %s29, 1
        %s381 = scalar_lea.sflag [#allocation6], %s380
        %s382 = sand.u32 %s89, 1
        %s383 = smul.addr %s382, 32
        %s384 = scalar_lea.vmem [#allocation7], %s383
        // Predicated region
        $region65: #{tpu_custom_call.1} parent=55 // pred_check
          %p385 = pneg %p102
        $region66: #{tpu_custom_call.1} parent=55 // pred_check_branch
          %387 = sbr.rel (%p385) target = $region68
        $region67: #{tpu_custom_call.1} parent=55 // pred_region
          %389 = dma.done %s381, 512
        $region68: #{tpu_custom_call.1} parent=55 // pred_fallthru
          _
        %s390 = sand.u32 %s37, 1
        %s391 = scalar_lea.sflag [#allocation3], %s390
        %s392 = sand.u32 %s37, 1
        %s393 = smul.addr %s392, 512
        %s394 = scalar_lea.vmem [#allocation2], %s393
        %p395 = pneg %p50
        %p396 = pneg %p47
        %s397 = sand.u32 %s29, 1
        %s398 = scalar_lea.sflag [#allocation6], %s397
        %s399 = sand.u32 %s63, 1
        %s400 = smul.addr %s399, 32
        %s401 = scalar_lea.vmem [#allocation5], %s400
        %p402 = pneg %p76
        %p403 = pneg %p73
        %s404 = sand.u32 %s29, 1
        %s405 = scalar_lea.sflag [#allocation6], %s404
        %s406 = sand.u32 %s89, 1
        %s407 = smul.addr %s406, 32
        %s408 = scalar_lea.vmem [#allocation7], %s407
        %p409 = pneg %p102
        %p410 = pneg %p99
        %p411 = pneg %p123
        %p412 = pneg %p120
        %p413 = pneg %p144
        %p414 = pneg %p141
        %p415 = pneg %p165
        %p416 = pneg %p162
        %p417 = pneg %p186
        %p418 = pneg %p183
        %p419 = pneg %p207
        %p420 = pneg %p204
        %p421 = pneg %p228
        %p422 = pneg %p225
        %p423 = pneg %p254
        %p424 = pneg %p251
        %s425 = sand.u32 %s241, 1
        %s426 = scalar_lea.sflag [#allocation4], %s425
        %s427 = sand.u32 %s241, 1
        %s428 = smul.addr %s427, 32
        %s429 = scalar_lea.vmem [#allocation8], %s428
        %s430 = smul.u32 32, %s29
        %s431 = smul.u32 4, %s29
        %s432 = smul.u32 4, %s29
        %s433 = smul.u32 4, %s29
        %v434 = vld [vmem:[%s364] sm:$0xff]
        %v435 = vld [vmem:[%s364 + $0x8] sm:$0xff]
        %v436 = vld [vmem:[%s364 + $0x10] sm:$0xff]
        %v437 = vld [vmem:[%s364 + $0x18] sm:$0xff]
        %v438 = vld [vmem:[%s364 + $0x20] sm:$0xff]
        %v439 = vld [vmem:[%s364 + $0x28] sm:$0xff]
        %v440 = vld [vmem:[%s364 + $0x30] sm:$0xff]
        %v441 = vld [vmem:[%s364 + $0x38] sm:$0xff]
        %v442 = vld [vmem:[%s364 + $0x40] sm:$0xff]
        %v443 = vld [vmem:[%s364 + $0x48] sm:$0xff]
        %v444 = vld [vmem:[%s364 + $0x50] sm:$0xff]
        %v445 = vld [vmem:[%s364 + $0x58] sm:$0xff]
        %v446 = vld [vmem:[%s364 + $0x60] sm:$0xff]
        %v447 = vld [vmem:[%s364 + $0x68] sm:$0xff]
        %v448 = vld [vmem:[%s364 + $0x70] sm:$0xff]
        %v449 = vld [vmem:[%s364 + $0x78] sm:$0xff]
        %v450 = vld [vmem:[%s364 + $0x80] sm:$0xff]
        %v451 = vld [vmem:[%s364 + $0x88] sm:$0xff]
        %v452 = vld [vmem:[%s364 + $0x90] sm:$0xff]
        %v453 = vld [vmem:[%s364 + $0x98] sm:$0xff]
        %v454 = vld [vmem:[%s364 + $0xa0] sm:$0xff]
        %v455 = vld [vmem:[%s364 + $0xa8] sm:$0xff]
        %v456 = vld [vmem:[%s364 + $0xb0] sm:$0xff]
        %v457 = vld [vmem:[%s364 + $0xb8] sm:$0xff]
        %v458 = vld [vmem:[%s364 + $0xc0] sm:$0xff]
        %v459 = vld [vmem:[%s364 + $0xc8] sm:$0xff]
        %v460 = vld [vmem:[%s364 + $0xd0] sm:$0xff]
        %v461 = vld [vmem:[%s364 + $0xd8] sm:$0xff]
        %v462 = vld [vmem:[%s364 + $0xe0] sm:$0xff]
        %v463 = vld [vmem:[%s364 + $0xe8] sm:$0xff]
        %v464 = vld [vmem:[%s364 + $0xf0] sm:$0xff]
        %v465 = vld [vmem:[%s364 + $0xf8] sm:$0xff]
        %v466 = vld [vmem:[%s364 + $0x100] sm:$0xff]
        %v467 = vld [vmem:[%s364 + $0x108] sm:$0xff]
        %v468 = vld [vmem:[%s364 + $0x110] sm:$0xff]
        %v469 = vld [vmem:[%s364 + $0x118] sm:$0xff]
        %v470 = vld [vmem:[%s364 + $0x120] sm:$0xff]
        %v471 = vld [vmem:[%s364 + $0x128] sm:$0xff]
        %v472 = vld [vmem:[%s364 + $0x130] sm:$0xff]
        %v473 = vld [vmem:[%s364 + $0x138] sm:$0xff]
        %v474 = vld [vmem:[%s364 + $0x140] sm:$0xff]
        %v475 = vld [vmem:[%s364 + $0x148] sm:$0xff]
        %v476 = vld [vmem:[%s364 + $0x150] sm:$0xff]
        %v477 = vld [vmem:[%s364 + $0x158] sm:$0xff]
        %v478 = vld [vmem:[%s364 + $0x160] sm:$0xff]
        %v479 = vld [vmem:[%s364 + $0x168] sm:$0xff]
        %v480 = vld [vmem:[%s364 + $0x170] sm:$0xff]
        %v481 = vld [vmem:[%s364 + $0x178] sm:$0xff]
        %v482 = vld [vmem:[%s364 + $0x180] sm:$0xff]
        %v483 = vld [vmem:[%s364 + $0x188] sm:$0xff]
        %v484 = vld [vmem:[%s364 + $0x190] sm:$0xff]
        %v485 = vld [vmem:[%s364 + $0x198] sm:$0xff]
        %v486 = vld [vmem:[%s364 + $0x1a0] sm:$0xff]
        %v487 = vld [vmem:[%s364 + $0x1a8] sm:$0xff]
        %v488 = vld [vmem:[%s364 + $0x1b0] sm:$0xff]
        %v489 = vld [vmem:[%s364 + $0x1b8] sm:$0xff]
        %v490 = vld [vmem:[%s364 + $0x1c0] sm:$0xff]
        %v491 = vld [vmem:[%s364 + $0x1c8] sm:$0xff]
        %v492 = vld [vmem:[%s364 + $0x1d0] sm:$0xff]
        %v493 = vld [vmem:[%s364 + $0x1d8] sm:$0xff]
        %v494 = vld [vmem:[%s364 + $0x1e0] sm:$0xff]
        %v495 = vld [vmem:[%s364 + $0x1e8] sm:$0xff]
        %v496 = vld [vmem:[%s364 + $0x1f0] sm:$0xff]
        %v497 = vld [vmem:[%s364 + $0x1f8] sm:$0xff]
        %v498 = vld [vmem:[%s3] sm:$0xff]
        %v499 = vld [vmem:[%s3 + $0x8] sm:$0xff]
        %v500 = vld [vmem:[%s3 + $0x10] sm:$0xff]
        %v501 = vld [vmem:[%s3 + $0x18] sm:$0xff]
        %v502 = vld [vmem:[%s3 + $0x20] sm:$0xff]
        %v503 = vld [vmem:[%s3 + $0x28] sm:$0xff]
        %v504 = vld [vmem:[%s3 + $0x30] sm:$0xff]
        %v505 = vld [vmem:[%s3 + $0x38] sm:$0xff]
        %vm506 = vcmask 130048
        %v508 = vsel %vm506, %v498, 0
        %v511 = vsel %vm506, %v499, 0
        %v514 = vsel %vm506, %v500, 0
        %v517 = vsel %vm506, %v501, 0
        %v520 = vsel %vm506, %v502, 0
        %v523 = vsel %vm506, %v503, 0
        %v526 = vsel %vm506, %v504, 0
        %v529 = vsel %vm506, %v505, 0
        %531 = vmatpush.msra.mxu0 0.0
        %532 = vmatpush.msra.mxu0 0.0
        %533 = vmatpush.msra.mxu0 0.0
        %534 = vmatpush.msra.mxu0 0.0
        %535 = vmatpush.msra.mxu0 0.0
        %536 = vmatpush.msra.mxu0 0.0
        %537 = vmatpush.msra.mxu0 0.0
        %538 = vmatpush.msra.mxu0 0.0
        %539 = vmatpush.msra.mxu0 0.0
        %540 = vmatpush.msra.mxu0 0.0
        %541 = vmatpush.msra.mxu0 0.0
        %542 = vmatpush.msra.mxu0 0.0
        %543 = vmatpush.msra.mxu0 0.0
        %544 = vmatpush.msra.mxu0 0.0
        %545 = vmatpush.msra.mxu0 %v466
        %546 = vmatpush.msra.mxu0 %v434
        %547 = vmatmul.f32.gmra.mxu0 %v508
        %v548 = vpop.f32.mrf.mxu0
        %v549 = vadd.f32 0.0, %v548
        %550 = vmatmul.f32.gmra.mxu0 %v511
        %v551 = vpop.f32.mrf.mxu0
        %v552 = vadd.f32 0.0, %v551
        %553 = vmatmul.f32.gmra.mxu0 %v514
        %v554 = vpop.f32.mrf.mxu0
        %v555 = vadd.f32 0.0, %v554
        %556 = vmatmul.f32.gmra.mxu0 %v517
        %v557 = vpop.f32.mrf.mxu0
        %v558 = vadd.f32 0.0, %v557
        %559 = vmatmul.f32.gmra.mxu0 %v520
        %v560 = vpop.f32.mrf.mxu0
        %v561 = vadd.f32 0.0, %v560
        %562 = vmatmul.f32.gmra.mxu0 %v523
        %v563 = vpop.f32.mrf.mxu0
        %v564 = vadd.f32 0.0, %v563
        %565 = vmatmul.f32.gmra.mxu0 %v526
        %v566 = vpop.f32.mrf.mxu0
        %v567 = vadd.f32 0.0, %v566
        %568 = vmatmul.f32.gmra.mxu0 %v529
        %v569 = vpop.f32.mrf.mxu0
        %v570 = vadd.f32 0.0, %v569
        %571 = vdwg.mxu0
        %572 = vmatpush.msra.mxu0 0.0
        %573 = vmatpush.msra.mxu0 0.0
        %574 = vmatpush.msra.mxu0 0.0
        %575 = vmatpush.msra.mxu0 0.0
        %576 = vmatpush.msra.mxu0 0.0
        %577 = vmatpush.msra.mxu0 0.0
        %578 = vmatpush.msra.mxu0 0.0
        %579 = vmatpush.msra.mxu0 0.0
        %580 = vmatpush.msra.mxu0 0.0
        %581 = vmatpush.msra.mxu0 0.0
        %582 = vmatpush.msra.mxu0 0.0
        %583 = vmatpush.msra.mxu0 0.0
        %584 = vmatpush.msra.mxu0 0.0
        %585 = vmatpush.msra.mxu0 0.0
        %586 = vmatpush.msra.mxu0 %v467
        %587 = vmatpush.msra.mxu0 %v435
        %588 = vmatmul.f32.gmra.mxu0 %v508
        %v589 = vpop.f32.mrf.mxu0
        %v590 = vadd.f32 0.0, %v589
        %591 = vmatmul.f32.gmra.mxu0 %v511
        %v592 = vpop.f32.mrf.mxu0
        %v593 = vadd.f32 0.0, %v592
        %594 = vmatmul.f32.gmra.mxu0 %v514
        %v595 = vpop.f32.mrf.mxu0
        %v596 = vadd.f32 0.0, %v595
        %597 = vmatmul.f32.gmra.mxu0 %v517
        %v598 = vpop.f32.mrf.mxu0
        %v599 = vadd.f32 0.0, %v598
        %600 = vmatmul.f32.gmra.mxu0 %v520
        %v601 = vpop.f32.mrf.mxu0
        %v602 = vadd.f32 0.0, %v601
        %603 = vmatmul.f32.gmra.mxu0 %v523
        %v604 = vpop.f32.mrf.mxu0
        %v605 = vadd.f32 0.0, %v604
        %606 = vmatmul.f32.gmra.mxu0 %v526
        %v607 = vpop.f32.mrf.mxu0
        %v608 = vadd.f32 0.0, %v607
        %609 = vmatmul.f32.gmra.mxu0 %v529
        %v610 = vpop.f32.mrf.mxu0
        %v611 = vadd.f32 0.0, %v610
        %612 = vdwg.mxu0
        %613 = vmatpush.msra.mxu0 0.0
        %614 = vmatpush.msra.mxu0 0.0
        %615 = vmatpush.msra.mxu0 0.0
        %616 = vmatpush.msra.mxu0 0.0
        %617 = vmatpush.msra.mxu0 0.0
        %618 = vmatpush.msra.mxu0 0.0
        %619 = vmatpush.msra.mxu0 0.0
        %620 = vmatpush.msra.mxu0 0.0
        %621 = vmatpush.msra.mxu0 0.0
        %622 = vmatpush.msra.mxu0 0.0
        %623 = vmatpush.msra.mxu0 0.0
        %624 = vmatpush.msra.mxu0 0.0
        %625 = vmatpush.msra.mxu0 0.0
        %626 = vmatpush.msra.mxu0 0.0
        %627 = vmatpush.msra.mxu0 %v468
        %628 = vmatpush.msra.mxu0 %v436
        %629 = vmatmul.f32.gmra.mxu0 %v508
        %v630 = vpop.f32.mrf.mxu0
        %v631 = vadd.f32 0.0, %v630
        %632 = vmatmul.f32.gmra.mxu0 %v511
        %v633 = vpop.f32.mrf.mxu0
        %v634 = vadd.f32 0.0, %v633
        %635 = vmatmul.f32.gmra.mxu0 %v514
        %v636 = vpop.f32.mrf.mxu0
        %v637 = vadd.f32 0.0, %v636
        %638 = vmatmul.f32.gmra.mxu0 %v517
        %v639 = vpop.f32.mrf.mxu0
        %v640 = vadd.f32 0.0, %v639
        %641 = vmatmul.f32.gmra.mxu0 %v520
        %v642 = vpop.f32.mrf.mxu0
        %v643 = vadd.f32 0.0, %v642
        %644 = vmatmul.f32.gmra.mxu0 %v523
        %v645 = vpop.f32.mrf.mxu0
        %v646 = vadd.f32 0.0, %v645
        %647 = vmatmul.f32.gmra.mxu0 %v526
        %v648 = vpop.f32.mrf.mxu0
        %v649 = vadd.f32 0.0, %v648
        %650 = vmatmul.f32.gmra.mxu0 %v529
        %v651 = vpop.f32.mrf.mxu0
        %v652 = vadd.f32 0.0, %v651
        %653 = vdwg.mxu0
        %654 = vmatpush.msra.mxu0 0.0
        %655 = vmatpush.msra.mxu0 0.0
        %656 = vmatpush.msra.mxu0 0.0
        %657 = vmatpush.msra.mxu0 0.0
        %658 = vmatpush.msra.mxu0 0.0
        %659 = vmatpush.msra.mxu0 0.0
        %660 = vmatpush.msra.mxu0 0.0
        %661 = vmatpush.msra.mxu0 0.0
        %662 = vmatpush.msra.mxu0 0.0
        %663 = vmatpush.msra.mxu0 0.0
        %664 = vmatpush.msra.mxu0 0.0
        %665 = vmatpush.msra.mxu0 0.0
        %666 = vmatpush.msra.mxu0 0.0
        %667 = vmatpush.msra.mxu0 0.0
        %668 = vmatpush.msra.mxu0 %v469
        %669 = vmatpush.msra.mxu0 %v437
        %670 = vmatmul.f32.gmra.mxu0 %v508
        %v671 = vpop.f32.mrf.mxu0
        %v672 = vadd.f32 0.0, %v671
        %673 = vmatmul.f32.gmra.mxu0 %v511
        %v674 = vpop.f32.mrf.mxu0
        %v675 = vadd.f32 0.0, %v674
        %676 = vmatmul.f32.gmra.mxu0 %v514
        %v677 = vpop.f32.mrf.mxu0
        %v678 = vadd.f32 0.0, %v677
        %679 = vmatmul.f32.gmra.mxu0 %v517
        %v680 = vpop.f32.mrf.mxu0
        %v681 = vadd.f32 0.0, %v680
        %682 = vmatmul.f32.gmra.mxu0 %v520
        %v683 = vpop.f32.mrf.mxu0
        %v684 = vadd.f32 0.0, %v683
        %685 = vmatmul.f32.gmra.mxu0 %v523
        %v686 = vpop.f32.mrf.mxu0
        %v687 = vadd.f32 0.0, %v686
        %688 = vmatmul.f32.gmra.mxu0 %v526
        %v689 = vpop.f32.mrf.mxu0
        %v690 = vadd.f32 0.0, %v689
        %691 = vmatmul.f32.gmra.mxu0 %v529
        %v692 = vpop.f32.mrf.mxu0
        %v693 = vadd.f32 0.0, %v692
        %694 = vdwg.mxu0
        %695 = vmatpush.msra.mxu0 0.0
        %696 = vmatpush.msra.mxu0 0.0
        %697 = vmatpush.msra.mxu0 0.0
        %698 = vmatpush.msra.mxu0 0.0
        %699 = vmatpush.msra.mxu0 0.0
        %700 = vmatpush.msra.mxu0 0.0
        %701 = vmatpush.msra.mxu0 0.0
        %702 = vmatpush.msra.mxu0 0.0
        %703 = vmatpush.msra.mxu0 0.0
        %704 = vmatpush.msra.mxu0 0.0
        %705 = vmatpush.msra.mxu0 0.0
        %706 = vmatpush.msra.mxu0 0.0
        %707 = vmatpush.msra.mxu0 0.0
        %708 = vmatpush.msra.mxu0 0.0
        %709 = vmatpush.msra.mxu0 %v470
        %710 = vmatpush.msra.mxu0 %v438
        %711 = vmatmul.f32.gmra.mxu0 %v508
        %v712 = vpop.f32.mrf.mxu0
        %v713 = vadd.f32 0.0, %v712
        %714 = vmatmul.f32.gmra.mxu0 %v511
        %v715 = vpop.f32.mrf.mxu0
        %v716 = vadd.f32 0.0, %v715
        %717 = vmatmul.f32.gmra.mxu0 %v514
        %v718 = vpop.f32.mrf.mxu0
        %v719 = vadd.f32 0.0, %v718
        %720 = vmatmul.f32.gmra.mxu0 %v517
        %v721 = vpop.f32.mrf.mxu0
        %v722 = vadd.f32 0.0, %v721
        %723 = vmatmul.f32.gmra.mxu0 %v520
        %v724 = vpop.f32.mrf.mxu0
        %v725 = vadd.f32 0.0, %v724
        %726 = vmatmul.f32.gmra.mxu0 %v523
        %v727 = vpop.f32.mrf.mxu0
        %v728 = vadd.f32 0.0, %v727
        %729 = vmatmul.f32.gmra.mxu0 %v526
        %v730 = vpop.f32.mrf.mxu0
        %v731 = vadd.f32 0.0, %v730
        %732 = vmatmul.f32.gmra.mxu0 %v529
        %v733 = vpop.f32.mrf.mxu0
        %v734 = vadd.f32 0.0, %v733
        %735 = vdwg.mxu0
        %736 = vmatpush.msra.mxu0 0.0
        %737 = vmatpush.msra.mxu0 0.0
        %738 = vmatpush.msra.mxu0 0.0
        %739 = vmatpush.msra.mxu0 0.0
        %740 = vmatpush.msra.mxu0 0.0
        %741 = vmatpush.msra.mxu0 0.0
        %742 = vmatpush.msra.mxu0 0.0
        %743 = vmatpush.msra.mxu0 0.0
        %744 = vmatpush.msra.mxu0 0.0
        %745 = vmatpush.msra.mxu0 0.0
        %746 = vmatpush.msra.mxu0 0.0
        %747 = vmatpush.msra.mxu0 0.0
        %748 = vmatpush.msra.mxu0 0.0
        %749 = vmatpush.msra.mxu0 0.0
        %750 = vmatpush.msra.mxu0 %v471
        %751 = vmatpush.msra.mxu0 %v439
        %752 = vmatmul.f32.gmra.mxu0 %v508
        %v753 = vpop.f32.mrf.mxu0
        %v754 = vadd.f32 0.0, %v753
        %755 = vmatmul.f32.gmra.mxu0 %v511
        %v756 = vpop.f32.mrf.mxu0
        %v757 = vadd.f32 0.0, %v756
        %758 = vmatmul.f32.gmra.mxu0 %v514
        %v759 = vpop.f32.mrf.mxu0
        %v760 = vadd.f32 0.0, %v759
        %761 = vmatmul.f32.gmra.mxu0 %v517
        %v762 = vpop.f32.mrf.mxu0
        %v763 = vadd.f32 0.0, %v762
        %764 = vmatmul.f32.gmra.mxu0 %v520
        %v765 = vpop.f32.mrf.mxu0
        %v766 = vadd.f32 0.0, %v765
        %767 = vmatmul.f32.gmra.mxu0 %v523
        %v768 = vpop.f32.mrf.mxu0
        %v769 = vadd.f32 0.0, %v768
        %770 = vmatmul.f32.gmra.mxu0 %v526
        %v771 = vpop.f32.mrf.mxu0
        %v772 = vadd.f32 0.0, %v771
        %773 = vmatmul.f32.gmra.mxu0 %v529
        %v774 = vpop.f32.mrf.mxu0
        %v775 = vadd.f32 0.0, %v774
        %776 = vdwg.mxu0
        %777 = vmatpush.msra.mxu0 0.0
        %778 = vmatpush.msra.mxu0 0.0
        %779 = vmatpush.msra.mxu0 0.0
        %780 = vmatpush.msra.mxu0 0.0
        %781 = vmatpush.msra.mxu0 0.0
        %782 = vmatpush.msra.mxu0 0.0
        %783 = vmatpush.msra.mxu0 0.0
        %784 = vmatpush.msra.mxu0 0.0
        %785 = vmatpush.msra.mxu0 0.0
        %786 = vmatpush.msra.mxu0 0.0
        %787 = vmatpush.msra.mxu0 0.0
        %788 = vmatpush.msra.mxu0 0.0
        %789 = vmatpush.msra.mxu0 0.0
        %790 = vmatpush.msra.mxu0 0.0
        %791 = vmatpush.msra.mxu0 %v472
        %792 = vmatpush.msra.mxu0 %v440
        %793 = vmatmul.f32.gmra.mxu0 %v508
        %v794 = vpop.f32.mrf.mxu0
        %v795 = vadd.f32 0.0, %v794
        %796 = vmatmul.f32.gmra.mxu0 %v511
        %v797 = vpop.f32.mrf.mxu0
        %v798 = vadd.f32 0.0, %v797
        %799 = vmatmul.f32.gmra.mxu0 %v514
        %v800 = vpop.f32.mrf.mxu0
        %v801 = vadd.f32 0.0, %v800
        %802 = vmatmul.f32.gmra.mxu0 %v517
        %v803 = vpop.f32.mrf.mxu0
        %v804 = vadd.f32 0.0, %v803
        %805 = vmatmul.f32.gmra.mxu0 %v520
        %v806 = vpop.f32.mrf.mxu0
        %v807 = vadd.f32 0.0, %v806
        %808 = vmatmul.f32.gmra.mxu0 %v523
        %v809 = vpop.f32.mrf.mxu0
        %v810 = vadd.f32 0.0, %v809
        %811 = vmatmul.f32.gmra.mxu0 %v526
        %v812 = vpop.f32.mrf.mxu0
        %v813 = vadd.f32 0.0, %v812
        %814 = vmatmul.f32.gmra.mxu0 %v529
        %v815 = vpop.f32.mrf.mxu0
        %v816 = vadd.f32 0.0, %v815
        %817 = vdwg.mxu0
        %818 = vmatpush.msra.mxu0 0.0
        %819 = vmatpush.msra.mxu0 0.0
        %820 = vmatpush.msra.mxu0 0.0
        %821 = vmatpush.msra.mxu0 0.0
        %822 = vmatpush.msra.mxu0 0.0
        %823 = vmatpush.msra.mxu0 0.0
        %824 = vmatpush.msra.mxu0 0.0
        %825 = vmatpush.msra.mxu0 0.0
        %826 = vmatpush.msra.mxu0 0.0
        %827 = vmatpush.msra.mxu0 0.0
        %828 = vmatpush.msra.mxu0 0.0
        %829 = vmatpush.msra.mxu0 0.0
        %830 = vmatpush.msra.mxu0 0.0
        %831 = vmatpush.msra.mxu0 0.0
        %832 = vmatpush.msra.mxu0 %v473
        %833 = vmatpush.msra.mxu0 %v441
        %834 = vmatmul.f32.gmra.mxu0 %v508
        %v835 = vpop.f32.mrf.mxu0
        %v836 = vadd.f32 0.0, %v835
        %837 = vmatmul.f32.gmra.mxu0 %v511
        %v838 = vpop.f32.mrf.mxu0
        %v839 = vadd.f32 0.0, %v838
        %840 = vmatmul.f32.gmra.mxu0 %v514
        %v841 = vpop.f32.mrf.mxu0
        %v842 = vadd.f32 0.0, %v841
        %843 = vmatmul.f32.gmra.mxu0 %v517
        %v844 = vpop.f32.mrf.mxu0
        %v845 = vadd.f32 0.0, %v844
        %846 = vmatmul.f32.gmra.mxu0 %v520
        %v847 = vpop.f32.mrf.mxu0
        %v848 = vadd.f32 0.0, %v847
        %849 = vmatmul.f32.gmra.mxu0 %v523
        %v850 = vpop.f32.mrf.mxu0
        %v851 = vadd.f32 0.0, %v850
        %852 = vmatmul.f32.gmra.mxu0 %v526
        %v853 = vpop.f32.mrf.mxu0
        %v854 = vadd.f32 0.0, %v853
        %855 = vmatmul.f32.gmra.mxu0 %v529
        %v856 = vpop.f32.mrf.mxu0
        %v857 = vadd.f32 0.0, %v856
        %858 = vdwg.mxu0
        %859 = vmatpush.msra.mxu0 0.0
        %860 = vmatpush.msra.mxu0 0.0
        %861 = vmatpush.msra.mxu0 0.0
        %862 = vmatpush.msra.mxu0 0.0
        %863 = vmatpush.msra.mxu0 0.0
        %864 = vmatpush.msra.mxu0 0.0
        %865 = vmatpush.msra.mxu0 0.0
        %866 = vmatpush.msra.mxu0 0.0
        %867 = vmatpush.msra.mxu0 0.0
        %868 = vmatpush.msra.mxu0 0.0
        %869 = vmatpush.msra.mxu0 0.0
        %870 = vmatpush.msra.mxu0 0.0
        %871 = vmatpush.msra.mxu0 0.0
        %872 = vmatpush.msra.mxu0 0.0
        %873 = vmatpush.msra.mxu0 %v474
        %874 = vmatpush.msra.mxu0 %v442
        %875 = vmatmul.f32.gmra.mxu0 %v508
        %v876 = vpop.f32.mrf.mxu0
        %v877 = vadd.f32 0.0, %v876
        %878 = vmatmul.f32.gmra.mxu0 %v511
        %v879 = vpop.f32.mrf.mxu0
        %v880 = vadd.f32 0.0, %v879
        %881 = vmatmul.f32.gmra.mxu0 %v514
        %v882 = vpop.f32.mrf.mxu0
        %v883 = vadd.f32 0.0, %v882
        %884 = vmatmul.f32.gmra.mxu0 %v517
        %v885 = vpop.f32.mrf.mxu0
        %v886 = vadd.f32 0.0, %v885
        %887 = vmatmul.f32.gmra.mxu0 %v520
        %v888 = vpop.f32.mrf.mxu0
        %v889 = vadd.f32 0.0, %v888
        %890 = vmatmul.f32.gmra.mxu0 %v523
        %v891 = vpop.f32.mrf.mxu0
        %v892 = vadd.f32 0.0, %v891
        %893 = vmatmul.f32.gmra.mxu0 %v526
        %v894 = vpop.f32.mrf.mxu0
        %v895 = vadd.f32 0.0, %v894
        %896 = vmatmul.f32.gmra.mxu0 %v529
        %v897 = vpop.f32.mrf.mxu0
        %v898 = vadd.f32 0.0, %v897
        %899 = vdwg.mxu0
        %900 = vmatpush.msra.mxu0 0.0
        %901 = vmatpush.msra.mxu0 0.0
        %902 = vmatpush.msra.mxu0 0.0
        %903 = vmatpush.msra.mxu0 0.0
        %904 = vmatpush.msra.mxu0 0.0
        %905 = vmatpush.msra.mxu0 0.0
        %906 = vmatpush.msra.mxu0 0.0
        %907 = vmatpush.msra.mxu0 0.0
        %908 = vmatpush.msra.mxu0 0.0
        %909 = vmatpush.msra.mxu0 0.0
        %910 = vmatpush.msra.mxu0 0.0
        %911 = vmatpush.msra.mxu0 0.0
        %912 = vmatpush.msra.mxu0 0.0
        %913 = vmatpush.msra.mxu0 0.0
        %914 = vmatpush.msra.mxu0 %v475
        %915 = vmatpush.msra.mxu0 %v443
        %916 = vmatmul.f32.gmra.mxu0 %v508
        %v917 = vpop.f32.mrf.mxu0
        %v918 = vadd.f32 0.0, %v917
        %919 = vmatmul.f32.gmra.mxu0 %v511
        %v920 = vpop.f32.mrf.mxu0
        %v921 = vadd.f32 0.0, %v920
        %922 = vmatmul.f32.gmra.mxu0 %v514
        %v923 = vpop.f32.mrf.mxu0
        %v924 = vadd.f32 0.0, %v923
        %925 = vmatmul.f32.gmra.mxu0 %v517
        %v926 = vpop.f32.mrf.mxu0
        %v927 = vadd.f32 0.0, %v926
        %928 = vmatmul.f32.gmra.mxu0 %v520
        %v929 = vpop.f32.mrf.mxu0
        %v930 = vadd.f32 0.0, %v929
        %931 = vmatmul.f32.gmra.mxu0 %v523
        %v932 = vpop.f32.mrf.mxu0
        %v933 = vadd.f32 0.0, %v932
        %934 = vmatmul.f32.gmra.mxu0 %v526
        %v935 = vpop.f32.mrf.mxu0
        %v936 = vadd.f32 0.0, %v935
        %937 = vmatmul.f32.gmra.mxu0 %v529
        %v938 = vpop.f32.mrf.mxu0
        %v939 = vadd.f32 0.0, %v938
        %940 = vdwg.mxu0
        %941 = vmatpush.msra.mxu0 0.0
        %942 = vmatpush.msra.mxu0 0.0
        %943 = vmatpush.msra.mxu0 0.0
        %944 = vmatpush.msra.mxu0 0.0
        %945 = vmatpush.msra.mxu0 0.0
        %946 = vmatpush.msra.mxu0 0.0
        %947 = vmatpush.msra.mxu0 0.0
        %948 = vmatpush.msra.mxu0 0.0
        %949 = vmatpush.msra.mxu0 0.0
        %950 = vmatpush.msra.mxu0 0.0
        %951 = vmatpush.msra.mxu0 0.0
        %952 = vmatpush.msra.mxu0 0.0
        %953 = vmatpush.msra.mxu0 0.0
        %954 = vmatpush.msra.mxu0 0.0
        %955 = vmatpush.msra.mxu0 %v476
        %956 = vmatpush.msra.mxu0 %v444
        %957 = vmatmul.f32.gmra.mxu0 %v508
        %v958 = vpop.f32.mrf.mxu0
        %v959 = vadd.f32 0.0, %v958
        %960 = vmatmul.f32.gmra.mxu0 %v511
        %v961 = vpop.f32.mrf.mxu0
        %v962 = vadd.f32 0.0, %v961
        %963 = vmatmul.f32.gmra.mxu0 %v514
        %v964 = vpop.f32.mrf.mxu0
        %v965 = vadd.f32 0.0, %v964
        %966 = vmatmul.f32.gmra.mxu0 %v517
        %v967 = vpop.f32.mrf.mxu0
        %v968 = vadd.f32 0.0, %v967
        %969 = vmatmul.f32.gmra.mxu0 %v520
        %v970 = vpop.f32.mrf.mxu0
        %v971 = vadd.f32 0.0, %v970
        %972 = vmatmul.f32.gmra.mxu0 %v523
        %v973 = vpop.f32.mrf.mxu0
        %v974 = vadd.f32 0.0, %v973
        %975 = vmatmul.f32.gmra.mxu0 %v526
        %v976 = vpop.f32.mrf.mxu0
        %v977 = vadd.f32 0.0, %v976
        %978 = vmatmul.f32.gmra.mxu0 %v529
        %v979 = vpop.f32.mrf.mxu0
        %v980 = vadd.f32 0.0, %v979
        %981 = vdwg.mxu0
        %982 = vmatpush.msra.mxu0 0.0
        %983 = vmatpush.msra.mxu0 0.0
        %984 = vmatpush.msra.mxu0 0.0
        %985 = vmatpush.msra.mxu0 0.0
        %986 = vmatpush.msra.mxu0 0.0
        %987 = vmatpush.msra.mxu0 0.0
        %988 = vmatpush.msra.mxu0 0.0
        %989 = vmatpush.msra.mxu0 0.0
        %990 = vmatpush.msra.mxu0 0.0
        %991 = vmatpush.msra.mxu0 0.0
        %992 = vmatpush.msra.mxu0 0.0
        %993 = vmatpush.msra.mxu0 0.0
        %994 = vmatpush.msra.mxu0 0.0
        %995 = vmatpush.msra.mxu0 0.0
        %996 = vmatpush.msra.mxu0 %v477
        %997 = vmatpush.msra.mxu0 %v445
        %998 = vmatmul.f32.gmra.mxu0 %v508
        %v999 = vpop.f32.mrf.mxu0
        %v1000 = vadd.f32 0.0, %v999
        %1001 = vmatmul.f32.gmra.mxu0 %v511
        %v1002 = vpop.f32.mrf.mxu0
        %v1003 = vadd.f32 0.0, %v1002
        %1004 = vmatmul.f32.gmra.mxu0 %v514
        %v1005 = vpop.f32.mrf.mxu0
        %v1006 = vadd.f32 0.0, %v1005
        %1007 = vmatmul.f32.gmra.mxu0 %v517
        %v1008 = vpop.f32.mrf.mxu0
        %v1009 = vadd.f32 0.0, %v1008
        %1010 = vmatmul.f32.gmra.mxu0 %v520
        %v1011 = vpop.f32.mrf.mxu0
        %v1012 = vadd.f32 0.0, %v1011
        %1013 = vmatmul.f32.gmra.mxu0 %v523
        %v1014 = vpop.f32.mrf.mxu0
        %v1015 = vadd.f32 0.0, %v1014
        %1016 = vmatmul.f32.gmra.mxu0 %v526
        %v1017 = vpop.f32.mrf.mxu0
        %v1018 = vadd.f32 0.0, %v1017
        %1019 = vmatmul.f32.gmra.mxu0 %v529
        %v1020 = vpop.f32.mrf.mxu0
        %v1021 = vadd.f32 0.0, %v1020
        %1022 = vdwg.mxu0
        %1023 = vmatpush.msra.mxu0 0.0
        %1024 = vmatpush.msra.mxu0 0.0
        %1025 = vmatpush.msra.mxu0 0.0
        %1026 = vmatpush.msra.mxu0 0.0
        %1027 = vmatpush.msra.mxu0 0.0
        %1028 = vmatpush.msra.mxu0 0.0
        %1029 = vmatpush.msra.mxu0 0.0
        %1030 = vmatpush.msra.mxu0 0.0
        %1031 = vmatpush.msra.mxu0 0.0
        %1032 = vmatpush.msra.mxu0 0.0
        %1033 = vmatpush.msra.mxu0 0.0
        %1034 = vmatpush.msra.mxu0 0.0
        %1035 = vmatpush.msra.mxu0 0.0
        %1036 = vmatpush.msra.mxu0 0.0
        %1037 = vmatpush.msra.mxu0 %v478
        %1038 = vmatpush.msra.mxu0 %v446
        %1039 = vmatmul.f32.gmra.mxu0 %v508
        %v1040 = vpop.f32.mrf.mxu0
        %v1041 = vadd.f32 0.0, %v1040
        %1042 = vmatmul.f32.gmra.mxu0 %v511
        %v1043 = vpop.f32.mrf.mxu0
        %v1044 = vadd.f32 0.0, %v1043
        %1045 = vmatmul.f32.gmra.mxu0 %v514
        %v1046 = vpop.f32.mrf.mxu0
        %v1047 = vadd.f32 0.0, %v1046
        %1048 = vmatmul.f32.gmra.mxu0 %v517
        %v1049 = vpop.f32.mrf.mxu0
        %v1050 = vadd.f32 0.0, %v1049
        %1051 = vmatmul.f32.gmra.mxu0 %v520
        %v1052 = vpop.f32.mrf.mxu0
        %v1053 = vadd.f32 0.0, %v1052
        %1054 = vmatmul.f32.gmra.mxu0 %v523
        %v1055 = vpop.f32.mrf.mxu0
        %v1056 = vadd.f32 0.0, %v1055
        %1057 = vmatmul.f32.gmra.mxu0 %v526
        %v1058 = vpop.f32.mrf.mxu0
        %v1059 = vadd.f32 0.0, %v1058
        %1060 = vmatmul.f32.gmra.mxu0 %v529
        %v1061 = vpop.f32.mrf.mxu0
        %v1062 = vadd.f32 0.0, %v1061
        %1063 = vdwg.mxu0
        %1064 = vmatpush.msra.mxu0 0.0
        %1065 = vmatpush.msra.mxu0 0.0
        %1066 = vmatpush.msra.mxu0 0.0
        %1067 = vmatpush.msra.mxu0 0.0
        %1068 = vmatpush.msra.mxu0 0.0
        %1069 = vmatpush.msra.mxu0 0.0
        %1070 = vmatpush.msra.mxu0 0.0
        %1071 = vmatpush.msra.mxu0 0.0
        %1072 = vmatpush.msra.mxu0 0.0
        %1073 = vmatpush.msra.mxu0 0.0
        %1074 = vmatpush.msra.mxu0 0.0
        %1075 = vmatpush.msra.mxu0 0.0
        %1076 = vmatpush.msra.mxu0 0.0
        %1077 = vmatpush.msra.mxu0 0.0
        %1078 = vmatpush.msra.mxu0 %v479
        %1079 = vmatpush.msra.mxu0 %v447
        %1080 = vmatmul.f32.gmra.mxu0 %v508
        %v1081 = vpop.f32.mrf.mxu0
        %v1082 = vadd.f32 0.0, %v1081
        %1083 = vmatmul.f32.gmra.mxu0 %v511
        %v1084 = vpop.f32.mrf.mxu0
        %v1085 = vadd.f32 0.0, %v1084
        %1086 = vmatmul.f32.gmra.mxu0 %v514
        %v1087 = vpop.f32.mrf.mxu0
        %v1088 = vadd.f32 0.0, %v1087
        %1089 = vmatmul.f32.gmra.mxu0 %v517
        %v1090 = vpop.f32.mrf.mxu0
        %v1091 = vadd.f32 0.0, %v1090
        %1092 = vmatmul.f32.gmra.mxu0 %v520
        %v1093 = vpop.f32.mrf.mxu0
        %v1094 = vadd.f32 0.0, %v1093
        %1095 = vmatmul.f32.gmra.mxu0 %v523
        %v1096 = vpop.f32.mrf.mxu0
        %v1097 = vadd.f32 0.0, %v1096
        %1098 = vmatmul.f32.gmra.mxu0 %v526
        %v1099 = vpop.f32.mrf.mxu0
        %v1100 = vadd.f32 0.0, %v1099
        %1101 = vmatmul.f32.gmra.mxu0 %v529
        %v1102 = vpop.f32.mrf.mxu0
        %v1103 = vadd.f32 0.0, %v1102
        %1104 = vdwg.mxu0
        %1105 = vmatpush.msra.mxu0 0.0
        %1106 = vmatpush.msra.mxu0 0.0
        %1107 = vmatpush.msra.mxu0 0.0
        %1108 = vmatpush.msra.mxu0 0.0
        %1109 = vmatpush.msra.mxu0 0.0
        %1110 = vmatpush.msra.mxu0 0.0
        %1111 = vmatpush.msra.mxu0 0.0
        %1112 = vmatpush.msra.mxu0 0.0
        %1113 = vmatpush.msra.mxu0 0.0
        %1114 = vmatpush.msra.mxu0 0.0
        %1115 = vmatpush.msra.mxu0 0.0
        %1116 = vmatpush.msra.mxu0 0.0
        %1117 = vmatpush.msra.mxu0 0.0
        %1118 = vmatpush.msra.mxu0 0.0
        %1119 = vmatpush.msra.mxu0 %v480
        %1120 = vmatpush.msra.mxu0 %v448
        %1121 = vmatmul.f32.gmra.mxu0 %v508
        %v1122 = vpop.f32.mrf.mxu0
        %v1123 = vadd.f32 0.0, %v1122
        %1124 = vmatmul.f32.gmra.mxu0 %v511
        %v1125 = vpop.f32.mrf.mxu0
        %v1126 = vadd.f32 0.0, %v1125
        %1127 = vmatmul.f32.gmra.mxu0 %v514
        %v1128 = vpop.f32.mrf.mxu0
        %v1129 = vadd.f32 0.0, %v1128
        %1130 = vmatmul.f32.gmra.mxu0 %v517
        %v1131 = vpop.f32.mrf.mxu0
        %v1132 = vadd.f32 0.0, %v1131
        %1133 = vmatmul.f32.gmra.mxu0 %v520
        %v1134 = vpop.f32.mrf.mxu0
        %v1135 = vadd.f32 0.0, %v1134
        %1136 = vmatmul.f32.gmra.mxu0 %v523
        %v1137 = vpop.f32.mrf.mxu0
        %v1138 = vadd.f32 0.0, %v1137
        %1139 = vmatmul.f32.gmra.mxu0 %v526
        %v1140 = vpop.f32.mrf.mxu0
        %v1141 = vadd.f32 0.0, %v1140
        %1142 = vmatmul.f32.gmra.mxu0 %v529
        %v1143 = vpop.f32.mrf.mxu0
        %v1144 = vadd.f32 0.0, %v1143
        %1145 = vdwg.mxu0
        %1146 = vmatpush.msra.mxu0 0.0
        %1147 = vmatpush.msra.mxu0 0.0
        %1148 = vmatpush.msra.mxu0 0.0
        %1149 = vmatpush.msra.mxu0 0.0
        %1150 = vmatpush.msra.mxu0 0.0
        %1151 = vmatpush.msra.mxu0 0.0
        %1152 = vmatpush.msra.mxu0 0.0
        %1153 = vmatpush.msra.mxu0 0.0
        %1154 = vmatpush.msra.mxu0 0.0
        %1155 = vmatpush.msra.mxu0 0.0
        %1156 = vmatpush.msra.mxu0 0.0
        %1157 = vmatpush.msra.mxu0 0.0
        %1158 = vmatpush.msra.mxu0 0.0
        %1159 = vmatpush.msra.mxu0 0.0
        %1160 = vmatpush.msra.mxu0 %v481
        %1161 = vmatpush.msra.mxu0 %v449
        %1162 = vmatmul.f32.gmra.mxu0 %v508
        %v1163 = vpop.f32.mrf.mxu0
        %v1164 = vadd.f32 0.0, %v1163
        %1165 = vmatmul.f32.gmra.mxu0 %v511
        %v1166 = vpop.f32.mrf.mxu0
        %v1167 = vadd.f32 0.0, %v1166
        %1168 = vmatmul.f32.gmra.mxu0 %v514
        %v1169 = vpop.f32.mrf.mxu0
        %v1170 = vadd.f32 0.0, %v1169
        %1171 = vmatmul.f32.gmra.mxu0 %v517
        %v1172 = vpop.f32.mrf.mxu0
        %v1173 = vadd.f32 0.0, %v1172
        %1174 = vmatmul.f32.gmra.mxu0 %v520
        %v1175 = vpop.f32.mrf.mxu0
        %v1176 = vadd.f32 0.0, %v1175
        %1177 = vmatmul.f32.gmra.mxu0 %v523
        %v1178 = vpop.f32.mrf.mxu0
        %v1179 = vadd.f32 0.0, %v1178
        %1180 = vmatmul.f32.gmra.mxu0 %v526
        %v1181 = vpop.f32.mrf.mxu0
        %v1182 = vadd.f32 0.0, %v1181
        %1183 = vmatmul.f32.gmra.mxu0 %v529
        %v1184 = vpop.f32.mrf.mxu0
        %v1185 = vadd.f32 0.0, %v1184
        %1186 = vdwg.mxu0
        %1187 = vmatpush.msra.mxu0 0.0
        %1188 = vmatpush.msra.mxu0 0.0
        %1189 = vmatpush.msra.mxu0 0.0
        %1190 = vmatpush.msra.mxu0 0.0
        %1191 = vmatpush.msra.mxu0 0.0
        %1192 = vmatpush.msra.mxu0 0.0
        %1193 = vmatpush.msra.mxu0 0.0
        %1194 = vmatpush.msra.mxu0 0.0
        %1195 = vmatpush.msra.mxu0 0.0
        %1196 = vmatpush.msra.mxu0 0.0
        %1197 = vmatpush.msra.mxu0 0.0
        %1198 = vmatpush.msra.mxu0 0.0
        %1199 = vmatpush.msra.mxu0 0.0
        %1200 = vmatpush.msra.mxu0 0.0
        %1201 = vmatpush.msra.mxu0 %v482
        %1202 = vmatpush.msra.mxu0 %v450
        %1203 = vmatmul.f32.gmra.mxu0 %v508
        %v1204 = vpop.f32.mrf.mxu0
        %v1205 = vadd.f32 0.0, %v1204
        %1206 = vmatmul.f32.gmra.mxu0 %v511
        %v1207 = vpop.f32.mrf.mxu0
        %v1208 = vadd.f32 0.0, %v1207
        %1209 = vmatmul.f32.gmra.mxu0 %v514
        %v1210 = vpop.f32.mrf.mxu0
        %v1211 = vadd.f32 0.0, %v1210
        %1212 = vmatmul.f32.gmra.mxu0 %v517
        %v1213 = vpop.f32.mrf.mxu0
        %v1214 = vadd.f32 0.0, %v1213
        %1215 = vmatmul.f32.gmra.mxu0 %v520
        %v1216 = vpop.f32.mrf.mxu0
        %v1217 = vadd.f32 0.0, %v1216
        %1218 = vmatmul.f32.gmra.mxu0 %v523
        %v1219 = vpop.f32.mrf.mxu0
        %v1220 = vadd.f32 0.0, %v1219
        %1221 = vmatmul.f32.gmra.mxu0 %v526
        %v1222 = vpop.f32.mrf.mxu0
        %v1223 = vadd.f32 0.0, %v1222
        %1224 = vmatmul.f32.gmra.mxu0 %v529
        %v1225 = vpop.f32.mrf.mxu0
        %v1226 = vadd.f32 0.0, %v1225
        %1227 = vdwg.mxu0
        %1228 = vmatpush.msra.mxu0 0.0
        %1229 = vmatpush.msra.mxu0 0.0
        %1230 = vmatpush.msra.mxu0 0.0
        %1231 = vmatpush.msra.mxu0 0.0
        %1232 = vmatpush.msra.mxu0 0.0
        %1233 = vmatpush.msra.mxu0 0.0
        %1234 = vmatpush.msra.mxu0 0.0
        %1235 = vmatpush.msra.mxu0 0.0
        %1236 = vmatpush.msra.mxu0 0.0
        %1237 = vmatpush.msra.mxu0 0.0
        %1238 = vmatpush.msra.mxu0 0.0
        %1239 = vmatpush.msra.mxu0 0.0
        %1240 = vmatpush.msra.mxu0 0.0
        %1241 = vmatpush.msra.mxu0 0.0
        %1242 = vmatpush.msra.mxu0 %v483
        %1243 = vmatpush.msra.mxu0 %v451
        %1244 = vmatmul.f32.gmra.mxu0 %v508
        %v1245 = vpop.f32.mrf.mxu0
        %v1246 = vadd.f32 0.0, %v1245
        %1247 = vmatmul.f32.gmra.mxu0 %v511
        %v1248 = vpop.f32.mrf.mxu0
        %v1249 = vadd.f32 0.0, %v1248
        %1250 = vmatmul.f32.gmra.mxu0 %v514
        %v1251 = vpop.f32.mrf.mxu0
        %v1252 = vadd.f32 0.0, %v1251
        %1253 = vmatmul.f32.gmra.mxu0 %v517
        %v1254 = vpop.f32.mrf.mxu0
        %v1255 = vadd.f32 0.0, %v1254
        %1256 = vmatmul.f32.gmra.mxu0 %v520
        %v1257 = vpop.f32.mrf.mxu0
        %v1258 = vadd.f32 0.0, %v1257
        %1259 = vmatmul.f32.gmra.mxu0 %v523
        %v1260 = vpop.f32.mrf.mxu0
        %v1261 = vadd.f32 0.0, %v1260
        %1262 = vmatmul.f32.gmra.mxu0 %v526
        %v1263 = vpop.f32.mrf.mxu0
        %v1264 = vadd.f32 0.0, %v1263
        %1265 = vmatmul.f32.gmra.mxu0 %v529
        %v1266 = vpop.f32.mrf.mxu0
        %v1267 = vadd.f32 0.0, %v1266
        %1268 = vdwg.mxu0
        %1269 = vmatpush.msra.mxu0 0.0
        %1270 = vmatpush.msra.mxu0 0.0
        %1271 = vmatpush.msra.mxu0 0.0
        %1272 = vmatpush.msra.mxu0 0.0
        %1273 = vmatpush.msra.mxu0 0.0
        %1274 = vmatpush.msra.mxu0 0.0
        %1275 = vmatpush.msra.mxu0 0.0
        %1276 = vmatpush.msra.mxu0 0.0
        %1277 = vmatpush.msra.mxu0 0.0
        %1278 = vmatpush.msra.mxu0 0.0
        %1279 = vmatpush.msra.mxu0 0.0
        %1280 = vmatpush.msra.mxu0 0.0
        %1281 = vmatpush.msra.mxu0 0.0
        %1282 = vmatpush.msra.mxu0 0.0
        %1283 = vmatpush.msra.mxu0 %v484
        %1284 = vmatpush.msra.mxu0 %v452
        %1285 = vmatmul.f32.gmra.mxu0 %v508
        %v1286 = vpop.f32.mrf.mxu0
        %v1287 = vadd.f32 0.0, %v1286
        %1288 = vmatmul.f32.gmra.mxu0 %v511
        %v1289 = vpop.f32.mrf.mxu0
        %v1290 = vadd.f32 0.0, %v1289
        %1291 = vmatmul.f32.gmra.mxu0 %v514
        %v1292 = vpop.f32.mrf.mxu0
        %v1293 = vadd.f32 0.0, %v1292
        %1294 = vmatmul.f32.gmra.mxu0 %v517
        %v1295 = vpop.f32.mrf.mxu0
        %v1296 = vadd.f32 0.0, %v1295
        %1297 = vmatmul.f32.gmra.mxu0 %v520
        %v1298 = vpop.f32.mrf.mxu0
        %v1299 = vadd.f32 0.0, %v1298
        %1300 = vmatmul.f32.gmra.mxu0 %v523
        %v1301 = vpop.f32.mrf.mxu0
        %v1302 = vadd.f32 0.0, %v1301
        %1303 = vmatmul.f32.gmra.mxu0 %v526
        %v1304 = vpop.f32.mrf.mxu0
        %v1305 = vadd.f32 0.0, %v1304
        %1306 = vmatmul.f32.gmra.mxu0 %v529
        %v1307 = vpop.f32.mrf.mxu0
        %v1308 = vadd.f32 0.0, %v1307
        %1309 = vdwg.mxu0
        %1310 = vmatpush.msra.mxu0 0.0
        %1311 = vmatpush.msra.mxu0 0.0
        %1312 = vmatpush.msra.mxu0 0.0
        %1313 = vmatpush.msra.mxu0 0.0
        %1314 = vmatpush.msra.mxu0 0.0
        %1315 = vmatpush.msra.mxu0 0.0
        %1316 = vmatpush.msra.mxu0 0.0
        %1317 = vmatpush.msra.mxu0 0.0
        %1318 = vmatpush.msra.mxu0 0.0
        %1319 = vmatpush.msra.mxu0 0.0
        %1320 = vmatpush.msra.mxu0 0.0
        %1321 = vmatpush.msra.mxu0 0.0
        %1322 = vmatpush.msra.mxu0 0.0
        %1323 = vmatpush.msra.mxu0 0.0
        %1324 = vmatpush.msra.mxu0 %v485
        %1325 = vmatpush.msra.mxu0 %v453
        %1326 = vmatmul.f32.gmra.mxu0 %v508
        %v1327 = vpop.f32.mrf.mxu0
        %v1328 = vadd.f32 0.0, %v1327
        %1329 = vmatmul.f32.gmra.mxu0 %v511
        %v1330 = vpop.f32.mrf.mxu0
        %v1331 = vadd.f32 0.0, %v1330
        %1332 = vmatmul.f32.gmra.mxu0 %v514
        %v1333 = vpop.f32.mrf.mxu0
        %v1334 = vadd.f32 0.0, %v1333
        %1335 = vmatmul.f32.gmra.mxu0 %v517
        %v1336 = vpop.f32.mrf.mxu0
        %v1337 = vadd.f32 0.0, %v1336
        %1338 = vmatmul.f32.gmra.mxu0 %v520
        %v1339 = vpop.f32.mrf.mxu0
        %v1340 = vadd.f32 0.0, %v1339
        %1341 = vmatmul.f32.gmra.mxu0 %v523
        %v1342 = vpop.f32.mrf.mxu0
        %v1343 = vadd.f32 0.0, %v1342
        %1344 = vmatmul.f32.gmra.mxu0 %v526
        %v1345 = vpop.f32.mrf.mxu0
        %v1346 = vadd.f32 0.0, %v1345
        %1347 = vmatmul.f32.gmra.mxu0 %v529
        %v1348 = vpop.f32.mrf.mxu0
        %v1349 = vadd.f32 0.0, %v1348
        %1350 = vdwg.mxu0
        %1351 = vmatpush.msra.mxu0 0.0
        %1352 = vmatpush.msra.mxu0 0.0
        %1353 = vmatpush.msra.mxu0 0.0
        %1354 = vmatpush.msra.mxu0 0.0
        %1355 = vmatpush.msra.mxu0 0.0
        %1356 = vmatpush.msra.mxu0 0.0
        %1357 = vmatpush.msra.mxu0 0.0
        %1358 = vmatpush.msra.mxu0 0.0
        %1359 = vmatpush.msra.mxu0 0.0
        %1360 = vmatpush.msra.mxu0 0.0
        %1361 = vmatpush.msra.mxu0 0.0
        %1362 = vmatpush.msra.mxu0 0.0
        %1363 = vmatpush.msra.mxu0 0.0
        %1364 = vmatpush.msra.mxu0 0.0
        %1365 = vmatpush.msra.mxu0 %v486
        %1366 = vmatpush.msra.mxu0 %v454
        %1367 = vmatmul.f32.gmra.mxu0 %v508
        %v1368 = vpop.f32.mrf.mxu0
        %v1369 = vadd.f32 0.0, %v1368
        %1370 = vmatmul.f32.gmra.mxu0 %v511
        %v1371 = vpop.f32.mrf.mxu0
        %v1372 = vadd.f32 0.0, %v1371
        %1373 = vmatmul.f32.gmra.mxu0 %v514
        %v1374 = vpop.f32.mrf.mxu0
        %v1375 = vadd.f32 0.0, %v1374
        %1376 = vmatmul.f32.gmra.mxu0 %v517
        %v1377 = vpop.f32.mrf.mxu0
        %v1378 = vadd.f32 0.0, %v1377
        %1379 = vmatmul.f32.gmra.mxu0 %v520
        %v1380 = vpop.f32.mrf.mxu0
        %v1381 = vadd.f32 0.0, %v1380
        %1382 = vmatmul.f32.gmra.mxu0 %v523
        %v1383 = vpop.f32.mrf.mxu0
        %v1384 = vadd.f32 0.0, %v1383
        %1385 = vmatmul.f32.gmra.mxu0 %v526
        %v1386 = vpop.f32.mrf.mxu0
        %v1387 = vadd.f32 0.0, %v1386
        %1388 = vmatmul.f32.gmra.mxu0 %v529
        %v1389 = vpop.f32.mrf.mxu0
        %v1390 = vadd.f32 0.0, %v1389
        %1391 = vdwg.mxu0
        %1392 = vmatpush.msra.mxu0 0.0
        %1393 = vmatpush.msra.mxu0 0.0
        %1394 = vmatpush.msra.mxu0 0.0
        %1395 = vmatpush.msra.mxu0 0.0
        %1396 = vmatpush.msra.mxu0 0.0
        %1397 = vmatpush.msra.mxu0 0.0
        %1398 = vmatpush.msra.mxu0 0.0
        %1399 = vmatpush.msra.mxu0 0.0
        %1400 = vmatpush.msra.mxu0 0.0
        %1401 = vmatpush.msra.mxu0 0.0
        %1402 = vmatpush.msra.mxu0 0.0
        %1403 = vmatpush.msra.mxu0 0.0
        %1404 = vmatpush.msra.mxu0 0.0
        %1405 = vmatpush.msra.mxu0 0.0
        %1406 = vmatpush.msra.mxu0 %v487
        %1407 = vmatpush.msra.mxu0 %v455
        %1408 = vmatmul.f32.gmra.mxu0 %v508
        %v1409 = vpop.f32.mrf.mxu0
        %v1410 = vadd.f32 0.0, %v1409
        %1411 = vmatmul.f32.gmra.mxu0 %v511
        %v1412 = vpop.f32.mrf.mxu0
        %v1413 = vadd.f32 0.0, %v1412
        %1414 = vmatmul.f32.gmra.mxu0 %v514
        %v1415 = vpop.f32.mrf.mxu0
        %v1416 = vadd.f32 0.0, %v1415
        %1417 = vmatmul.f32.gmra.mxu0 %v517
        %v1418 = vpop.f32.mrf.mxu0
        %v1419 = vadd.f32 0.0, %v1418
        %1420 = vmatmul.f32.gmra.mxu0 %v520
        %v1421 = vpop.f32.mrf.mxu0
        %v1422 = vadd.f32 0.0, %v1421
        %1423 = vmatmul.f32.gmra.mxu0 %v523
        %v1424 = vpop.f32.mrf.mxu0
        %v1425 = vadd.f32 0.0, %v1424
        %1426 = vmatmul.f32.gmra.mxu0 %v526
        %v1427 = vpop.f32.mrf.mxu0
        %v1428 = vadd.f32 0.0, %v1427
        %1429 = vmatmul.f32.gmra.mxu0 %v529
        %v1430 = vpop.f32.mrf.mxu0
        %v1431 = vadd.f32 0.0, %v1430
        %1432 = vdwg.mxu0
        %1433 = vmatpush.msra.mxu0 0.0
        %1434 = vmatpush.msra.mxu0 0.0
        %1435 = vmatpush.msra.mxu0 0.0
        %1436 = vmatpush.msra.mxu0 0.0
        %1437 = vmatpush.msra.mxu0 0.0
        %1438 = vmatpush.msra.mxu0 0.0
        %1439 = vmatpush.msra.mxu0 0.0
        %1440 = vmatpush.msra.mxu0 0.0
        %1441 = vmatpush.msra.mxu0 0.0
        %1442 = vmatpush.msra.mxu0 0.0
        %1443 = vmatpush.msra.mxu0 0.0
        %1444 = vmatpush.msra.mxu0 0.0
        %1445 = vmatpush.msra.mxu0 0.0
        %1446 = vmatpush.msra.mxu0 0.0
        %1447 = vmatpush.msra.mxu0 %v488
        %1448 = vmatpush.msra.mxu0 %v456
        %1449 = vmatmul.f32.gmra.mxu0 %v508
        %v1450 = vpop.f32.mrf.mxu0
        %v1451 = vadd.f32 0.0, %v1450
        %1452 = vmatmul.f32.gmra.mxu0 %v511
        %v1453 = vpop.f32.mrf.mxu0
        %v1454 = vadd.f32 0.0, %v1453
        %1455 = vmatmul.f32.gmra.mxu0 %v514
        %v1456 = vpop.f32.mrf.mxu0
        %v1457 = vadd.f32 0.0, %v1456
        %1458 = vmatmul.f32.gmra.mxu0 %v517
        %v1459 = vpop.f32.mrf.mxu0
        %v1460 = vadd.f32 0.0, %v1459
        %1461 = vmatmul.f32.gmra.mxu0 %v520
        %v1462 = vpop.f32.mrf.mxu0
        %v1463 = vadd.f32 0.0, %v1462
        %1464 = vmatmul.f32.gmra.mxu0 %v523
        %v1465 = vpop.f32.mrf.mxu0
        %v1466 = vadd.f32 0.0, %v1465
        %1467 = vmatmul.f32.gmra.mxu0 %v526
        %v1468 = vpop.f32.mrf.mxu0
        %v1469 = vadd.f32 0.0, %v1468
        %1470 = vmatmul.f32.gmra.mxu0 %v529
        %v1471 = vpop.f32.mrf.mxu0
        %v1472 = vadd.f32 0.0, %v1471
        %1473 = vdwg.mxu0
        %1474 = vmatpush.msra.mxu0 0.0
        %1475 = vmatpush.msra.mxu0 0.0
        %1476 = vmatpush.msra.mxu0 0.0
        %1477 = vmatpush.msra.mxu0 0.0
        %1478 = vmatpush.msra.mxu0 0.0
        %1479 = vmatpush.msra.mxu0 0.0
        %1480 = vmatpush.msra.mxu0 0.0
        %1481 = vmatpush.msra.mxu0 0.0
        %1482 = vmatpush.msra.mxu0 0.0
        %1483 = vmatpush.msra.mxu0 0.0
        %1484 = vmatpush.msra.mxu0 0.0
        %1485 = vmatpush.msra.mxu0 0.0
        %1486 = vmatpush.msra.mxu0 0.0
        %1487 = vmatpush.msra.mxu0 0.0
        %1488 = vmatpush.msra.mxu0 %v489
        %1489 = vmatpush.msra.mxu0 %v457
        %1490 = vmatmul.f32.gmra.mxu0 %v508
        %v1491 = vpop.f32.mrf.mxu0
        %v1492 = vadd.f32 0.0, %v1491
        %1493 = vmatmul.f32.gmra.mxu0 %v511
        %v1494 = vpop.f32.mrf.mxu0
        %v1495 = vadd.f32 0.0, %v1494
        %1496 = vmatmul.f32.gmra.mxu0 %v514
        %v1497 = vpop.f32.mrf.mxu0
        %v1498 = vadd.f32 0.0, %v1497
        %1499 = vmatmul.f32.gmra.mxu0 %v517
        %v1500 = vpop.f32.mrf.mxu0
        %v1501 = vadd.f32 0.0, %v1500
        %1502 = vmatmul.f32.gmra.mxu0 %v520
        %v1503 = vpop.f32.mrf.mxu0
        %v1504 = vadd.f32 0.0, %v1503
        %1505 = vmatmul.f32.gmra.mxu0 %v523
        %v1506 = vpop.f32.mrf.mxu0
        %v1507 = vadd.f32 0.0, %v1506
        %1508 = vmatmul.f32.gmra.mxu0 %v526
        %v1509 = vpop.f32.mrf.mxu0
        %v1510 = vadd.f32 0.0, %v1509
        %1511 = vmatmul.f32.gmra.mxu0 %v529
        %v1512 = vpop.f32.mrf.mxu0
        %v1513 = vadd.f32 0.0, %v1512
        %1514 = vdwg.mxu0
        %1515 = vmatpush.msra.mxu0 0.0
        %1516 = vmatpush.msra.mxu0 0.0
        %1517 = vmatpush.msra.mxu0 0.0
        %1518 = vmatpush.msra.mxu0 0.0
        %1519 = vmatpush.msra.mxu0 0.0
        %1520 = vmatpush.msra.mxu0 0.0
        %1521 = vmatpush.msra.mxu0 0.0
        %1522 = vmatpush.msra.mxu0 0.0
        %1523 = vmatpush.msra.mxu0 0.0
        %1524 = vmatpush.msra.mxu0 0.0
        %1525 = vmatpush.msra.mxu0 0.0
        %1526 = vmatpush.msra.mxu0 0.0
        %1527 = vmatpush.msra.mxu0 0.0
        %1528 = vmatpush.msra.mxu0 0.0
        %1529 = vmatpush.msra.mxu0 %v490
        %1530 = vmatpush.msra.mxu0 %v458
        %1531 = vmatmul.f32.gmra.mxu0 %v508
        %v1532 = vpop.f32.mrf.mxu0
        %v1533 = vadd.f32 0.0, %v1532
        %1534 = vmatmul.f32.gmra.mxu0 %v511
        %v1535 = vpop.f32.mrf.mxu0
        %v1536 = vadd.f32 0.0, %v1535
        %1537 = vmatmul.f32.gmra.mxu0 %v514
        %v1538 = vpop.f32.mrf.mxu0
        %v1539 = vadd.f32 0.0, %v1538
        %1540 = vmatmul.f32.gmra.mxu0 %v517
        %v1541 = vpop.f32.mrf.mxu0
        %v1542 = vadd.f32 0.0, %v1541
        %1543 = vmatmul.f32.gmra.mxu0 %v520
        %v1544 = vpop.f32.mrf.mxu0
        %v1545 = vadd.f32 0.0, %v1544
        %1546 = vmatmul.f32.gmra.mxu0 %v523
        %v1547 = vpop.f32.mrf.mxu0
        %v1548 = vadd.f32 0.0, %v1547
        %1549 = vmatmul.f32.gmra.mxu0 %v526
        %v1550 = vpop.f32.mrf.mxu0
        %v1551 = vadd.f32 0.0, %v1550
        %1552 = vmatmul.f32.gmra.mxu0 %v529
        %v1553 = vpop.f32.mrf.mxu0
        %v1554 = vadd.f32 0.0, %v1553
        %1555 = vdwg.mxu0
        %1556 = vmatpush.msra.mxu0 0.0
        %1557 = vmatpush.msra.mxu0 0.0
        %1558 = vmatpush.msra.mxu0 0.0
        %1559 = vmatpush.msra.mxu0 0.0
        %1560 = vmatpush.msra.mxu0 0.0
        %1561 = vmatpush.msra.mxu0 0.0
        %1562 = vmatpush.msra.mxu0 0.0
        %1563 = vmatpush.msra.mxu0 0.0
        %1564 = vmatpush.msra.mxu0 0.0
        %1565 = vmatpush.msra.mxu0 0.0
        %1566 = vmatpush.msra.mxu0 0.0
        %1567 = vmatpush.msra.mxu0 0.0
        %1568 = vmatpush.msra.mxu0 0.0
        %1569 = vmatpush.msra.mxu0 0.0
        %1570 = vmatpush.msra.mxu0 %v491
        %1571 = vmatpush.msra.mxu0 %v459
        %1572 = vmatmul.f32.gmra.mxu0 %v508
        %v1573 = vpop.f32.mrf.mxu0
        %v1574 = vadd.f32 0.0, %v1573
        %1575 = vmatmul.f32.gmra.mxu0 %v511
        %v1576 = vpop.f32.mrf.mxu0
        %v1577 = vadd.f32 0.0, %v1576
        %1578 = vmatmul.f32.gmra.mxu0 %v514
        %v1579 = vpop.f32.mrf.mxu0
        %v1580 = vadd.f32 0.0, %v1579
        %1581 = vmatmul.f32.gmra.mxu0 %v517
        %v1582 = vpop.f32.mrf.mxu0
        %v1583 = vadd.f32 0.0, %v1582
        %1584 = vmatmul.f32.gmra.mxu0 %v520
        %v1585 = vpop.f32.mrf.mxu0
        %v1586 = vadd.f32 0.0, %v1585
        %1587 = vmatmul.f32.gmra.mxu0 %v523
        %v1588 = vpop.f32.mrf.mxu0
        %v1589 = vadd.f32 0.0, %v1588
        %1590 = vmatmul.f32.gmra.mxu0 %v526
        %v1591 = vpop.f32.mrf.mxu0
        %v1592 = vadd.f32 0.0, %v1591
        %1593 = vmatmul.f32.gmra.mxu0 %v529
        %v1594 = vpop.f32.mrf.mxu0
        %v1595 = vadd.f32 0.0, %v1594
        %1596 = vdwg.mxu0
        %1597 = vmatpush.msra.mxu0 0.0
        %1598 = vmatpush.msra.mxu0 0.0
        %1599 = vmatpush.msra.mxu0 0.0
        %1600 = vmatpush.msra.mxu0 0.0
        %1601 = vmatpush.msra.mxu0 0.0
        %1602 = vmatpush.msra.mxu0 0.0
        %1603 = vmatpush.msra.mxu0 0.0
        %1604 = vmatpush.msra.mxu0 0.0
        %1605 = vmatpush.msra.mxu0 0.0
        %1606 = vmatpush.msra.mxu0 0.0
        %1607 = vmatpush.msra.mxu0 0.0
        %1608 = vmatpush.msra.mxu0 0.0
        %1609 = vmatpush.msra.mxu0 0.0
        %1610 = vmatpush.msra.mxu0 0.0
        %1611 = vmatpush.msra.mxu0 %v492
        %1612 = vmatpush.msra.mxu0 %v460
        %1613 = vmatmul.f32.gmra.mxu0 %v508
        %v1614 = vpop.f32.mrf.mxu0
        %v1615 = vadd.f32 0.0, %v1614
        %1616 = vmatmul.f32.gmra.mxu0 %v511
        %v1617 = vpop.f32.mrf.mxu0
        %v1618 = vadd.f32 0.0, %v1617
        %1619 = vmatmul.f32.gmra.mxu0 %v514
        %v1620 = vpop.f32.mrf.mxu0
        %v1621 = vadd.f32 0.0, %v1620
        %1622 = vmatmul.f32.gmra.mxu0 %v517
        %v1623 = vpop.f32.mrf.mxu0
        %v1624 = vadd.f32 0.0, %v1623
        %1625 = vmatmul.f32.gmra.mxu0 %v520
        %v1626 = vpop.f32.mrf.mxu0
        %v1627 = vadd.f32 0.0, %v1626
        %1628 = vmatmul.f32.gmra.mxu0 %v523
        %v1629 = vpop.f32.mrf.mxu0
        %v1630 = vadd.f32 0.0, %v1629
        %1631 = vmatmul.f32.gmra.mxu0 %v526
        %v1632 = vpop.f32.mrf.mxu0
        %v1633 = vadd.f32 0.0, %v1632
        %1634 = vmatmul.f32.gmra.mxu0 %v529
        %v1635 = vpop.f32.mrf.mxu0
        %v1636 = vadd.f32 0.0, %v1635
        %1637 = vdwg.mxu0
        %1638 = vmatpush.msra.mxu0 0.0
        %1639 = vmatpush.msra.mxu0 0.0
        %1640 = vmatpush.msra.mxu0 0.0
        %1641 = vmatpush.msra.mxu0 0.0
        %1642 = vmatpush.msra.mxu0 0.0
        %1643 = vmatpush.msra.mxu0 0.0
        %1644 = vmatpush.msra.mxu0 0.0
        %1645 = vmatpush.msra.mxu0 0.0
        %1646 = vmatpush.msra.mxu0 0.0
        %1647 = vmatpush.msra.mxu0 0.0
        %1648 = vmatpush.msra.mxu0 0.0
        %1649 = vmatpush.msra.mxu0 0.0
        %1650 = vmatpush.msra.mxu0 0.0
        %1651 = vmatpush.msra.mxu0 0.0
        %1652 = vmatpush.msra.mxu0 %v493
        %1653 = vmatpush.msra.mxu0 %v461
        %1654 = vmatmul.f32.gmra.mxu0 %v508
        %v1655 = vpop.f32.mrf.mxu0
        %v1656 = vadd.f32 0.0, %v1655
        %1657 = vmatmul.f32.gmra.mxu0 %v511
        %v1658 = vpop.f32.mrf.mxu0
        %v1659 = vadd.f32 0.0, %v1658
        %1660 = vmatmul.f32.gmra.mxu0 %v514
        %v1661 = vpop.f32.mrf.mxu0
        %v1662 = vadd.f32 0.0, %v1661
        %1663 = vmatmul.f32.gmra.mxu0 %v517
        %v1664 = vpop.f32.mrf.mxu0
        %v1665 = vadd.f32 0.0, %v1664
        %1666 = vmatmul.f32.gmra.mxu0 %v520
        %v1667 = vpop.f32.mrf.mxu0
        %v1668 = vadd.f32 0.0, %v1667
        %1669 = vmatmul.f32.gmra.mxu0 %v523
        %v1670 = vpop.f32.mrf.mxu0
        %v1671 = vadd.f32 0.0, %v1670
        %1672 = vmatmul.f32.gmra.mxu0 %v526
        %v1673 = vpop.f32.mrf.mxu0
        %v1674 = vadd.f32 0.0, %v1673
        %1675 = vmatmul.f32.gmra.mxu0 %v529
        %v1676 = vpop.f32.mrf.mxu0
        %v1677 = vadd.f32 0.0, %v1676
        %1678 = vdwg.mxu0
        %1679 = vmatpush.msra.mxu0 0.0
        %1680 = vmatpush.msra.mxu0 0.0
        %1681 = vmatpush.msra.mxu0 0.0
        %1682 = vmatpush.msra.mxu0 0.0
        %1683 = vmatpush.msra.mxu0 0.0
        %1684 = vmatpush.msra.mxu0 0.0
        %1685 = vmatpush.msra.mxu0 0.0
        %1686 = vmatpush.msra.mxu0 0.0
        %1687 = vmatpush.msra.mxu0 0.0
        %1688 = vmatpush.msra.mxu0 0.0
        %1689 = vmatpush.msra.mxu0 0.0
        %1690 = vmatpush.msra.mxu0 0.0
        %1691 = vmatpush.msra.mxu0 0.0
        %1692 = vmatpush.msra.mxu0 0.0
        %1693 = vmatpush.msra.mxu0 %v494
        %1694 = vmatpush.msra.mxu0 %v462
        %1695 = vmatmul.f32.gmra.mxu0 %v508
        %v1696 = vpop.f32.mrf.mxu0
        %v1697 = vadd.f32 0.0, %v1696
        %1698 = vmatmul.f32.gmra.mxu0 %v511
        %v1699 = vpop.f32.mrf.mxu0
        %v1700 = vadd.f32 0.0, %v1699
        %1701 = vmatmul.f32.gmra.mxu0 %v514
        %v1702 = vpop.f32.mrf.mxu0
        %v1703 = vadd.f32 0.0, %v1702
        %1704 = vmatmul.f32.gmra.mxu0 %v517
        %v1705 = vpop.f32.mrf.mxu0
        %v1706 = vadd.f32 0.0, %v1705
        %1707 = vmatmul.f32.gmra.mxu0 %v520
        %v1708 = vpop.f32.mrf.mxu0
        %v1709 = vadd.f32 0.0, %v1708
        %1710 = vmatmul.f32.gmra.mxu0 %v523
        %v1711 = vpop.f32.mrf.mxu0
        %v1712 = vadd.f32 0.0, %v1711
        %1713 = vmatmul.f32.gmra.mxu0 %v526
        %v1714 = vpop.f32.mrf.mxu0
        %v1715 = vadd.f32 0.0, %v1714
        %1716 = vmatmul.f32.gmra.mxu0 %v529
        %v1717 = vpop.f32.mrf.mxu0
        %v1718 = vadd.f32 0.0, %v1717
        %1719 = vdwg.mxu0
        %1720 = vmatpush.msra.mxu0 0.0
        %1721 = vmatpush.msra.mxu0 0.0
        %1722 = vmatpush.msra.mxu0 0.0
        %1723 = vmatpush.msra.mxu0 0.0
        %1724 = vmatpush.msra.mxu0 0.0
        %1725 = vmatpush.msra.mxu0 0.0
        %1726 = vmatpush.msra.mxu0 0.0
        %1727 = vmatpush.msra.mxu0 0.0
        %1728 = vmatpush.msra.mxu0 0.0
        %1729 = vmatpush.msra.mxu0 0.0
        %1730 = vmatpush.msra.mxu0 0.0
        %1731 = vmatpush.msra.mxu0 0.0
        %1732 = vmatpush.msra.mxu0 0.0
        %1733 = vmatpush.msra.mxu0 0.0
        %1734 = vmatpush.msra.mxu0 %v495
        %1735 = vmatpush.msra.mxu0 %v463
        %1736 = vmatmul.f32.gmra.mxu0 %v508
        %v1737 = vpop.f32.mrf.mxu0
        %v1738 = vadd.f32 0.0, %v1737
        %1739 = vmatmul.f32.gmra.mxu0 %v511
        %v1740 = vpop.f32.mrf.mxu0
        %v1741 = vadd.f32 0.0, %v1740
        %1742 = vmatmul.f32.gmra.mxu0 %v514
        %v1743 = vpop.f32.mrf.mxu0
        %v1744 = vadd.f32 0.0, %v1743
        %1745 = vmatmul.f32.gmra.mxu0 %v517
        %v1746 = vpop.f32.mrf.mxu0
        %v1747 = vadd.f32 0.0, %v1746
        %1748 = vmatmul.f32.gmra.mxu0 %v520
        %v1749 = vpop.f32.mrf.mxu0
        %v1750 = vadd.f32 0.0, %v1749
        %1751 = vmatmul.f32.gmra.mxu0 %v523
        %v1752 = vpop.f32.mrf.mxu0
        %v1753 = vadd.f32 0.0, %v1752
        %1754 = vmatmul.f32.gmra.mxu0 %v526
        %v1755 = vpop.f32.mrf.mxu0
        %v1756 = vadd.f32 0.0, %v1755
        %1757 = vmatmul.f32.gmra.mxu0 %v529
        %v1758 = vpop.f32.mrf.mxu0
        %v1759 = vadd.f32 0.0, %v1758
        %1760 = vdwg.mxu0
        %1761 = vmatpush.msra.mxu0 0.0
        %1762 = vmatpush.msra.mxu0 0.0
        %1763 = vmatpush.msra.mxu0 0.0
        %1764 = vmatpush.msra.mxu0 0.0
        %1765 = vmatpush.msra.mxu0 0.0
        %1766 = vmatpush.msra.mxu0 0.0
        %1767 = vmatpush.msra.mxu0 0.0
        %1768 = vmatpush.msra.mxu0 0.0
        %1769 = vmatpush.msra.mxu0 0.0
        %1770 = vmatpush.msra.mxu0 0.0
        %1771 = vmatpush.msra.mxu0 0.0
        %1772 = vmatpush.msra.mxu0 0.0
        %1773 = vmatpush.msra.mxu0 0.0
        %1774 = vmatpush.msra.mxu0 0.0
        %1775 = vmatpush.msra.mxu0 %v496
        %1776 = vmatpush.msra.mxu0 %v464
        %1777 = vmatmul.f32.gmra.mxu0 %v508
        %v1778 = vpop.f32.mrf.mxu0
        %v1779 = vadd.f32 0.0, %v1778
        %1780 = vmatmul.f32.gmra.mxu0 %v511
        %v1781 = vpop.f32.mrf.mxu0
        %v1782 = vadd.f32 0.0, %v1781
        %1783 = vmatmul.f32.gmra.mxu0 %v514
        %v1784 = vpop.f32.mrf.mxu0
        %v1785 = vadd.f32 0.0, %v1784
        %1786 = vmatmul.f32.gmra.mxu0 %v517
        %v1787 = vpop.f32.mrf.mxu0
        %v1788 = vadd.f32 0.0, %v1787
        %1789 = vmatmul.f32.gmra.mxu0 %v520
        %v1790 = vpop.f32.mrf.mxu0
        %v1791 = vadd.f32 0.0, %v1790
        %1792 = vmatmul.f32.gmra.mxu0 %v523
        %v1793 = vpop.f32.mrf.mxu0
        %v1794 = vadd.f32 0.0, %v1793
        %1795 = vmatmul.f32.gmra.mxu0 %v526
        %v1796 = vpop.f32.mrf.mxu0
        %v1797 = vadd.f32 0.0, %v1796
        %1798 = vmatmul.f32.gmra.mxu0 %v529
        %v1799 = vpop.f32.mrf.mxu0
        %v1800 = vadd.f32 0.0, %v1799
        %1801 = vdwg.mxu0
        %1802 = vmatpush.msra.mxu0 0.0
        %1803 = vmatpush.msra.mxu0 0.0
        %1804 = vmatpush.msra.mxu0 0.0
        %1805 = vmatpush.msra.mxu0 0.0
        %1806 = vmatpush.msra.mxu0 0.0
        %1807 = vmatpush.msra.mxu0 0.0
        %1808 = vmatpush.msra.mxu0 0.0
        %1809 = vmatpush.msra.mxu0 0.0
        %1810 = vmatpush.msra.mxu0 0.0
        %1811 = vmatpush.msra.mxu0 0.0
        %1812 = vmatpush.msra.mxu0 0.0
        %1813 = vmatpush.msra.mxu0 0.0
        %1814 = vmatpush.msra.mxu0 0.0
        %1815 = vmatpush.msra.mxu0 0.0
        %1816 = vmatpush.msra.mxu0 %v497
        %1817 = vmatpush.msra.mxu0 %v465
        %1818 = vmatmul.f32.gmra.mxu0 %v508
        %v1819 = vpop.f32.mrf.mxu0
        %v1820 = vadd.f32 0.0, %v1819
        %1821 = vmatmul.f32.gmra.mxu0 %v511
        %v1822 = vpop.f32.mrf.mxu0
        %v1823 = vadd.f32 0.0, %v1822
        %1824 = vmatmul.f32.gmra.mxu0 %v514
        %v1825 = vpop.f32.mrf.mxu0
        %v1826 = vadd.f32 0.0, %v1825
        %1827 = vmatmul.f32.gmra.mxu0 %v517
        %v1828 = vpop.f32.mrf.mxu0
        %v1829 = vadd.f32 0.0, %v1828
        %1830 = vmatmul.f32.gmra.mxu0 %v520
        %v1831 = vpop.f32.mrf.mxu0
        %v1832 = vadd.f32 0.0, %v1831
        %1833 = vmatmul.f32.gmra.mxu0 %v523
        %v1834 = vpop.f32.mrf.mxu0
        %v1835 = vadd.f32 0.0, %v1834
        %1836 = vmatmul.f32.gmra.mxu0 %v526
        %v1837 = vpop.f32.mrf.mxu0
        %v1838 = vadd.f32 0.0, %v1837
        %1839 = vmatmul.f32.gmra.mxu0 %v529
        %v1840 = vpop.f32.mrf.mxu0
        %v1841 = vadd.f32 0.0, %v1840
        %1842 = vdwg.mxu0
        %v1843 = vmax.f32 %v549, 0.0
        %v1844 = vmax.f32 %v590, 0.0
        %v1845 = vmax.f32 %v631, 0.0
        %v1846 = vmax.f32 %v672, 0.0
        %v1847 = vmax.f32 %v713, 0.0
        %v1848 = vmax.f32 %v754, 0.0
        %v1849 = vmax.f32 %v795, 0.0
        %v1850 = vmax.f32 %v836, 0.0
        %v1851 = vmax.f32 %v877, 0.0
        %v1852 = vmax.f32 %v918, 0.0
        %v1853 = vmax.f32 %v959, 0.0
        %v1854 = vmax.f32 %v1000, 0.0
        %v1855 = vmax.f32 %v1041, 0.0
        %v1856 = vmax.f32 %v1082, 0.0
        %v1857 = vmax.f32 %v1123, 0.0
        %v1858 = vmax.f32 %v1164, 0.0
        %v1859 = vmax.f32 %v1205, 0.0
        %v1860 = vmax.f32 %v1246, 0.0
        %v1861 = vmax.f32 %v1287, 0.0
        %v1862 = vmax.f32 %v1328, 0.0
        %v1863 = vmax.f32 %v1369, 0.0
        %v1864 = vmax.f32 %v1410, 0.0
        %v1865 = vmax.f32 %v1451, 0.0
        %v1866 = vmax.f32 %v1492, 0.0
        %v1867 = vmax.f32 %v1533, 0.0
        %v1868 = vmax.f32 %v1574, 0.0
        %v1869 = vmax.f32 %v1615, 0.0
        %v1870 = vmax.f32 %v1656, 0.0
        %v1871 = vmax.f32 %v1697, 0.0
        %v1872 = vmax.f32 %v1738, 0.0
        %v1873 = vmax.f32 %v1779, 0.0
        %v1874 = vmax.f32 %v1820, 0.0
        %v1875 = vmax.f32 %v552, 0.0
        %v1876 = vmax.f32 %v593, 0.0
        %v1877 = vmax.f32 %v634, 0.0
        %v1878 = vmax.f32 %v675, 0.0
        %v1879 = vmax.f32 %v716, 0.0
        %v1880 = vmax.f32 %v757, 0.0
        %v1881 = vmax.f32 %v798, 0.0
        %v1882 = vmax.f32 %v839, 0.0
        %v1883 = vmax.f32 %v880, 0.0
        %v1884 = vmax.f32 %v921, 0.0
        %v1885 = vmax.f32 %v962, 0.0
        %v1886 = vmax.f32 %v1003, 0.0
        %v1887 = vmax.f32 %v1044, 0.0
        %v1888 = vmax.f32 %v1085, 0.0
        %v1889 = vmax.f32 %v1126, 0.0
        %v1890 = vmax.f32 %v1167, 0.0
        %v1891 = vmax.f32 %v1208, 0.0
        %v1892 = vmax.f32 %v1249, 0.0
        %v1893 = vmax.f32 %v1290, 0.0
        %v1894 = vmax.f32 %v1331, 0.0
        %v1895 = vmax.f32 %v1372, 0.0
        %v1896 = vmax.f32 %v1413, 0.0
        %v1897 = vmax.f32 %v1454, 0.0
        %v1898 = vmax.f32 %v1495, 0.0
        %v1899 = vmax.f32 %v1536, 0.0
        %v1900 = vmax.f32 %v1577, 0.0
        %v1901 = vmax.f32 %v1618, 0.0
        %v1902 = vmax.f32 %v1659, 0.0
        %v1903 = vmax.f32 %v1700, 0.0
        %v1904 = vmax.f32 %v1741, 0.0
        %v1905 = vmax.f32 %v1782, 0.0
        %v1906 = vmax.f32 %v1823, 0.0
        %v1907 = vmax.f32 %v555, 0.0
        %v1908 = vmax.f32 %v596, 0.0
        %v1909 = vmax.f32 %v637, 0.0
        %v1910 = vmax.f32 %v678, 0.0
        %v1911 = vmax.f32 %v719, 0.0
        %v1912 = vmax.f32 %v760, 0.0
        %v1913 = vmax.f32 %v801, 0.0
        %v1914 = vmax.f32 %v842, 0.0
        %v1915 = vmax.f32 %v883, 0.0
        %v1916 = vmax.f32 %v924, 0.0
        %v1917 = vmax.f32 %v965, 0.0
        %v1918 = vmax.f32 %v1006, 0.0
        %v1919 = vmax.f32 %v1047, 0.0
        %v1920 = vmax.f32 %v1088, 0.0
        %v1921 = vmax.f32 %v1129, 0.0
        %v1922 = vmax.f32 %v1170, 0.0
        %v1923 = vmax.f32 %v1211, 0.0
        %v1924 = vmax.f32 %v1252, 0.0
        %v1925 = vmax.f32 %v1293, 0.0
        %v1926 = vmax.f32 %v1334, 0.0
        %v1927 = vmax.f32 %v1375, 0.0
        %v1928 = vmax.f32 %v1416, 0.0
        %v1929 = vmax.f32 %v1457, 0.0
        %v1930 = vmax.f32 %v1498, 0.0
        %v1931 = vmax.f32 %v1539, 0.0
        %v1932 = vmax.f32 %v1580, 0.0
        %v1933 = vmax.f32 %v1621, 0.0
        %v1934 = vmax.f32 %v1662, 0.0
        %v1935 = vmax.f32 %v1703, 0.0
        %v1936 = vmax.f32 %v1744, 0.0
        %v1937 = vmax.f32 %v1785, 0.0
        %v1938 = vmax.f32 %v1826, 0.0
        %v1939 = vmax.f32 %v558, 0.0
        %v1940 = vmax.f32 %v599, 0.0
        %v1941 = vmax.f32 %v640, 0.0
        %v1942 = vmax.f32 %v681, 0.0
        %v1943 = vmax.f32 %v722, 0.0
        %v1944 = vmax.f32 %v763, 0.0
        %v1945 = vmax.f32 %v804, 0.0
        %v1946 = vmax.f32 %v845, 0.0
        %v1947 = vmax.f32 %v886, 0.0
        %v1948 = vmax.f32 %v927, 0.0
        %v1949 = vmax.f32 %v968, 0.0
        %v1950 = vmax.f32 %v1009, 0.0
        %v1951 = vmax.f32 %v1050, 0.0
        %v1952 = vmax.f32 %v1091, 0.0
        %v1953 = vmax.f32 %v1132, 0.0
        %v1954 = vmax.f32 %v1173, 0.0
        %v1955 = vmax.f32 %v1214, 0.0
        %v1956 = vmax.f32 %v1255, 0.0
        %v1957 = vmax.f32 %v1296, 0.0
        %v1958 = vmax.f32 %v1337, 0.0
        %v1959 = vmax.f32 %v1378, 0.0
        %v1960 = vmax.f32 %v1419, 0.0
        %v1961 = vmax.f32 %v1460, 0.0
        %v1962 = vmax.f32 %v1501, 0.0
        %v1963 = vmax.f32 %v1542, 0.0
        %v1964 = vmax.f32 %v1583, 0.0
        %v1965 = vmax.f32 %v1624, 0.0
        %v1966 = vmax.f32 %v1665, 0.0
        %v1967 = vmax.f32 %v1706, 0.0
        %v1968 = vmax.f32 %v1747, 0.0
        %v1969 = vmax.f32 %v1788, 0.0
        %v1970 = vmax.f32 %v1829, 0.0
        %v1971 = vld [vmem:[%s4] sm:$0xff]
        %v1972 = vld [vmem:[%s4 + $0x8] sm:$0xff]
        %v1973 = vld [vmem:[%s4 + $0x10] sm:$0xff]
        %v1974 = vld [vmem:[%s4 + $0x18] sm:$0xff]
        %v1975 = vld [vmem:[%s5] sm:$0xff]
        %v1976 = vld [vmem:[%s5 + $0x8] sm:$0xff]
        %v1977 = vld [vmem:[%s5 + $0x10] sm:$0xff]
        %v1978 = vld [vmem:[%s5 + $0x18] sm:$0xff]
        %1980 = vset.pattern.permute.xlu0 0
        %1981 = vperm.xlu0 %1980, %v1975
        %v1982 = vpop.permute.xlu0 %1981
        %1985 = vset.pattern.permute.xlu0 0
        %1986 = vperm.xlu0 %1985, %v1976
        %v1987 = vpop.permute.xlu0 %1986
        %1990 = vset.pattern.permute.xlu0 0
        %1991 = vperm.xlu0 %1990, %v1977
        %v1992 = vpop.permute.xlu0 %1991
        %1995 = vset.pattern.permute.xlu0 0
        %1996 = vperm.xlu0 %1995, %v1978
        %v1997 = vpop.permute.xlu0 %1996
        %vm1999 = vcmask 261120
        %v2001 = vsel %vm1999, %v1971, 0
        %v2004 = vsel %vm1999, %v1972, 0
        %v2007 = vsel %vm1999, %v1973, 0
        %v2010 = vsel %vm1999, %v1974, 0
        %2012 = vmatpush.msra.mxu0 0.0
        %2013 = vmatpush.msra.mxu0 0.0
        %2014 = vmatpush.msra.mxu0 0.0
        %2015 = vmatpush.msra.mxu0 0.0
        %2016 = vmatpush.msra.mxu0 0.0
        %2017 = vmatpush.msra.mxu0 0.0
        %2018 = vmatpush.msra.mxu0 0.0
        %2019 = vmatpush.msra.mxu0 0.0
        %2020 = vmatpush.msra.mxu0 0.0
        %2021 = vmatpush.msra.mxu0 0.0
        %2022 = vmatpush.msra.mxu0 0.0
        %2023 = vmatpush.msra.mxu0 0.0
        %2024 = vmatpush.msra.mxu0 %v1939
        %2025 = vmatpush.msra.mxu0 %v1907
        %2026 = vmatpush.msra.mxu0 %v1875
        %2027 = vmatpush.msra.mxu0 %v1843
        %2028 = vmatmul.f32.gmra.mxu0 %v2001
        %v2029 = vpop.f32.mrf.mxu0
        %v2030 = vadd.f32 %v1982, %v2029
        %2031 = vmatmul.f32.gmra.mxu0 %v2004
        %v2032 = vpop.f32.mrf.mxu0
        %v2033 = vadd.f32 %v1987, %v2032
        %2034 = vmatmul.f32.gmra.mxu0 %v2007
        %v2035 = vpop.f32.mrf.mxu0
        %v2036 = vadd.f32 %v1992, %v2035
        %2037 = vmatmul.f32.gmra.mxu0 %v2010
        %v2038 = vpop.f32.mrf.mxu0
        %v2039 = vadd.f32 %v1997, %v2038
        %2040 = vdwg.mxu0
        %2041 = vmatpush.msra.mxu0 0.0
        %2042 = vmatpush.msra.mxu0 0.0
        %2043 = vmatpush.msra.mxu0 0.0
        %2044 = vmatpush.msra.mxu0 0.0
        %2045 = vmatpush.msra.mxu0 0.0
        %2046 = vmatpush.msra.mxu0 0.0
        %2047 = vmatpush.msra.mxu0 0.0
        %2048 = vmatpush.msra.mxu0 0.0
        %2049 = vmatpush.msra.mxu0 0.0
        %2050 = vmatpush.msra.mxu0 0.0
        %2051 = vmatpush.msra.mxu0 0.0
        %2052 = vmatpush.msra.mxu0 0.0
        %2053 = vmatpush.msra.mxu0 %v1940
        %2054 = vmatpush.msra.mxu0 %v1908
        %2055 = vmatpush.msra.mxu0 %v1876
        %2056 = vmatpush.msra.mxu0 %v1844
        %2057 = vmatmul.f32.gmra.mxu0 %v2001
        %v2058 = vpop.f32.mrf.mxu0
        %v2059 = vadd.f32 %v1982, %v2058
        %2060 = vmatmul.f32.gmra.mxu0 %v2004
        %v2061 = vpop.f32.mrf.mxu0
        %v2062 = vadd.f32 %v1987, %v2061
        %2063 = vmatmul.f32.gmra.mxu0 %v2007
        %v2064 = vpop.f32.mrf.mxu0
        %v2065 = vadd.f32 %v1992, %v2064
        %2066 = vmatmul.f32.gmra.mxu0 %v2010
        %v2067 = vpop.f32.mrf.mxu0
        %v2068 = vadd.f32 %v1997, %v2067
        %2069 = vdwg.mxu0
        %2070 = vmatpush.msra.mxu0 0.0
        %2071 = vmatpush.msra.mxu0 0.0
        %2072 = vmatpush.msra.mxu0 0.0
        %2073 = vmatpush.msra.mxu0 0.0
        %2074 = vmatpush.msra.mxu0 0.0
        %2075 = vmatpush.msra.mxu0 0.0
        %2076 = vmatpush.msra.mxu0 0.0
        %2077 = vmatpush.msra.mxu0 0.0
        %2078 = vmatpush.msra.mxu0 0.0
        %2079 = vmatpush.msra.mxu0 0.0
        %2080 = vmatpush.msra.mxu0 0.0
        %2081 = vmatpush.msra.mxu0 0.0
        %2082 = vmatpush.msra.mxu0 %v1941
        %2083 = vmatpush.msra.mxu0 %v1909
        %2084 = vmatpush.msra.mxu0 %v1877
        %2085 = vmatpush.msra.mxu0 %v1845
        %2086 = vmatmul.f32.gmra.mxu0 %v2001
        %v2087 = vpop.f32.mrf.mxu0
        %v2088 = vadd.f32 %v1982, %v2087
        %2089 = vmatmul.f32.gmra.mxu0 %v2004
        %v2090 = vpop.f32.mrf.mxu0
        %v2091 = vadd.f32 %v1987, %v2090
        %2092 = vmatmul.f32.gmra.mxu0 %v2007
        %v2093 = vpop.f32.mrf.mxu0
        %v2094 = vadd.f32 %v1992, %v2093
        %2095 = vmatmul.f32.gmra.mxu0 %v2010
        %v2096 = vpop.f32.mrf.mxu0
        %v2097 = vadd.f32 %v1997, %v2096
        %2098 = vdwg.mxu0
        %2099 = vmatpush.msra.mxu0 0.0
        %2100 = vmatpush.msra.mxu0 0.0
        %2101 = vmatpush.msra.mxu0 0.0
        %2102 = vmatpush.msra.mxu0 0.0
        %2103 = vmatpush.msra.mxu0 0.0
        %2104 = vmatpush.msra.mxu0 0.0
        %2105 = vmatpush.msra.mxu0 0.0
        %2106 = vmatpush.msra.mxu0 0.0
        %2107 = vmatpush.msra.mxu0 0.0
        %2108 = vmatpush.msra.mxu0 0.0
        %2109 = vmatpush.msra.mxu0 0.0
        %2110 = vmatpush.msra.mxu0 0.0
        %2111 = vmatpush.msra.mxu0 %v1942
        %2112 = vmatpush.msra.mxu0 %v1910
        %2113 = vmatpush.msra.mxu0 %v1878
        %2114 = vmatpush.msra.mxu0 %v1846
        %2115 = vmatmul.f32.gmra.mxu0 %v2001
        %v2116 = vpop.f32.mrf.mxu0
        %v2117 = vadd.f32 %v1982, %v2116
        %2118 = vmatmul.f32.gmra.mxu0 %v2004
        %v2119 = vpop.f32.mrf.mxu0
        %v2120 = vadd.f32 %v1987, %v2119
        %2121 = vmatmul.f32.gmra.mxu0 %v2007
        %v2122 = vpop.f32.mrf.mxu0
        %v2123 = vadd.f32 %v1992, %v2122
        %2124 = vmatmul.f32.gmra.mxu0 %v2010
        %v2125 = vpop.f32.mrf.mxu0
        %v2126 = vadd.f32 %v1997, %v2125
        %2127 = vdwg.mxu0
        %2128 = vmatpush.msra.mxu0 0.0
        %2129 = vmatpush.msra.mxu0 0.0
        %2130 = vmatpush.msra.mxu0 0.0
        %2131 = vmatpush.msra.mxu0 0.0
        %2132 = vmatpush.msra.mxu0 0.0
        %2133 = vmatpush.msra.mxu0 0.0
        %2134 = vmatpush.msra.mxu0 0.0
        %2135 = vmatpush.msra.mxu0 0.0
        %2136 = vmatpush.msra.mxu0 0.0
        %2137 = vmatpush.msra.mxu0 0.0
        %2138 = vmatpush.msra.mxu0 0.0
        %2139 = vmatpush.msra.mxu0 0.0
        %2140 = vmatpush.msra.mxu0 %v1943
        %2141 = vmatpush.msra.mxu0 %v1911
        %2142 = vmatpush.msra.mxu0 %v1879
        %2143 = vmatpush.msra.mxu0 %v1847
        %2144 = vmatmul.f32.gmra.mxu0 %v2001
        %v2145 = vpop.f32.mrf.mxu0
        %v2146 = vadd.f32 %v1982, %v2145
        %2147 = vmatmul.f32.gmra.mxu0 %v2004
        %v2148 = vpop.f32.mrf.mxu0
        %v2149 = vadd.f32 %v1987, %v2148
        %2150 = vmatmul.f32.gmra.mxu0 %v2007
        %v2151 = vpop.f32.mrf.mxu0
        %v2152 = vadd.f32 %v1992, %v2151
        %2153 = vmatmul.f32.gmra.mxu0 %v2010
        %v2154 = vpop.f32.mrf.mxu0
        %v2155 = vadd.f32 %v1997, %v2154
        %2156 = vdwg.mxu0
        %2157 = vmatpush.msra.mxu0 0.0
        %2158 = vmatpush.msra.mxu0 0.0
        %2159 = vmatpush.msra.mxu0 0.0
        %2160 = vmatpush.msra.mxu0 0.0
        %2161 = vmatpush.msra.mxu0 0.0
        %2162 = vmatpush.msra.mxu0 0.0
        %2163 = vmatpush.msra.mxu0 0.0
        %2164 = vmatpush.msra.mxu0 0.0
        %2165 = vmatpush.msra.mxu0 0.0
        %2166 = vmatpush.msra.mxu0 0.0
        %2167 = vmatpush.msra.mxu0 0.0
        %2168 = vmatpush.msra.mxu0 0.0
        %2169 = vmatpush.msra.mxu0 %v1944
        %2170 = vmatpush.msra.mxu0 %v1912
        %2171 = vmatpush.msra.mxu0 %v1880
        %2172 = vmatpush.msra.mxu0 %v1848
        %2173 = vmatmul.f32.gmra.mxu0 %v2001
        %v2174 = vpop.f32.mrf.mxu0
        %v2175 = vadd.f32 %v1982, %v2174
        %2176 = vmatmul.f32.gmra.mxu0 %v2004
        %v2177 = vpop.f32.mrf.mxu0
        %v2178 = vadd.f32 %v1987, %v2177
        %2179 = vmatmul.f32.gmra.mxu0 %v2007
        %v2180 = vpop.f32.mrf.mxu0
        %v2181 = vadd.f32 %v1992, %v2180
        %2182 = vmatmul.f32.gmra.mxu0 %v2010
        %v2183 = vpop.f32.mrf.mxu0
        %v2184 = vadd.f32 %v1997, %v2183
        %2185 = vdwg.mxu0
        %2186 = vmatpush.msra.mxu0 0.0
        %2187 = vmatpush.msra.mxu0 0.0
        %2188 = vmatpush.msra.mxu0 0.0
        %2189 = vmatpush.msra.mxu0 0.0
        %2190 = vmatpush.msra.mxu0 0.0
        %2191 = vmatpush.msra.mxu0 0.0
        %2192 = vmatpush.msra.mxu0 0.0
        %2193 = vmatpush.msra.mxu0 0.0
        %2194 = vmatpush.msra.mxu0 0.0
        %2195 = vmatpush.msra.mxu0 0.0
        %2196 = vmatpush.msra.mxu0 0.0
        %2197 = vmatpush.msra.mxu0 0.0
        %2198 = vmatpush.msra.mxu0 %v1945
        %2199 = vmatpush.msra.mxu0 %v1913
        %2200 = vmatpush.msra.mxu0 %v1881
        %2201 = vmatpush.msra.mxu0 %v1849
        %2202 = vmatmul.f32.gmra.mxu0 %v2001
        %v2203 = vpop.f32.mrf.mxu0
        %v2204 = vadd.f32 %v1982, %v2203
        %2205 = vmatmul.f32.gmra.mxu0 %v2004
        %v2206 = vpop.f32.mrf.mxu0
        %v2207 = vadd.f32 %v1987, %v2206
        %2208 = vmatmul.f32.gmra.mxu0 %v2007
        %v2209 = vpop.f32.mrf.mxu0
        %v2210 = vadd.f32 %v1992, %v2209
        %2211 = vmatmul.f32.gmra.mxu0 %v2010
        %v2212 = vpop.f32.mrf.mxu0
        %v2213 = vadd.f32 %v1997, %v2212
        %2214 = vdwg.mxu0
        %2215 = vmatpush.msra.mxu0 0.0
        %2216 = vmatpush.msra.mxu0 0.0
        %2217 = vmatpush.msra.mxu0 0.0
        %2218 = vmatpush.msra.mxu0 0.0
        %2219 = vmatpush.msra.mxu0 0.0
        %2220 = vmatpush.msra.mxu0 0.0
        %2221 = vmatpush.msra.mxu0 0.0
        %2222 = vmatpush.msra.mxu0 0.0
        %2223 = vmatpush.msra.mxu0 0.0
        %2224 = vmatpush.msra.mxu0 0.0
        %2225 = vmatpush.msra.mxu0 0.0
        %2226 = vmatpush.msra.mxu0 0.0
        %2227 = vmatpush.msra.mxu0 %v1946
        %2228 = vmatpush.msra.mxu0 %v1914
        %2229 = vmatpush.msra.mxu0 %v1882
        %2230 = vmatpush.msra.mxu0 %v1850
        %2231 = vmatmul.f32.gmra.mxu0 %v2001
        %v2232 = vpop.f32.mrf.mxu0
        %v2233 = vadd.f32 %v1982, %v2232
        %2234 = vmatmul.f32.gmra.mxu0 %v2004
        %v2235 = vpop.f32.mrf.mxu0
        %v2236 = vadd.f32 %v1987, %v2235
        %2237 = vmatmul.f32.gmra.mxu0 %v2007
        %v2238 = vpop.f32.mrf.mxu0
        %v2239 = vadd.f32 %v1992, %v2238
        %2240 = vmatmul.f32.gmra.mxu0 %v2010
        %v2241 = vpop.f32.mrf.mxu0
        %v2242 = vadd.f32 %v1997, %v2241
        %2243 = vdwg.mxu0
        %2244 = vmatpush.msra.mxu0 0.0
        %2245 = vmatpush.msra.mxu0 0.0
        %2246 = vmatpush.msra.mxu0 0.0
        %2247 = vmatpush.msra.mxu0 0.0
        %2248 = vmatpush.msra.mxu0 0.0
        %2249 = vmatpush.msra.mxu0 0.0
        %2250 = vmatpush.msra.mxu0 0.0
        %2251 = vmatpush.msra.mxu0 0.0
        %2252 = vmatpush.msra.mxu0 0.0
        %2253 = vmatpush.msra.mxu0 0.0
        %2254 = vmatpush.msra.mxu0 0.0
        %2255 = vmatpush.msra.mxu0 0.0
        %2256 = vmatpush.msra.mxu0 %v1947
        %2257 = vmatpush.msra.mxu0 %v1915
        %2258 = vmatpush.msra.mxu0 %v1883
        %2259 = vmatpush.msra.mxu0 %v1851
        %2260 = vmatmul.f32.gmra.mxu0 %v2001
        %v2261 = vpop.f32.mrf.mxu0
        %v2262 = vadd.f32 %v1982, %v2261
        %2263 = vmatmul.f32.gmra.mxu0 %v2004
        %v2264 = vpop.f32.mrf.mxu0
        %v2265 = vadd.f32 %v1987, %v2264
        %2266 = vmatmul.f32.gmra.mxu0 %v2007
        %v2267 = vpop.f32.mrf.mxu0
        %v2268 = vadd.f32 %v1992, %v2267
        %2269 = vmatmul.f32.gmra.mxu0 %v2010
        %v2270 = vpop.f32.mrf.mxu0
        %v2271 = vadd.f32 %v1997, %v2270
        %2272 = vdwg.mxu0
        %2273 = vmatpush.msra.mxu0 0.0
        %2274 = vmatpush.msra.mxu0 0.0
        %2275 = vmatpush.msra.mxu0 0.0
        %2276 = vmatpush.msra.mxu0 0.0
        %2277 = vmatpush.msra.mxu0 0.0
        %2278 = vmatpush.msra.mxu0 0.0
        %2279 = vmatpush.msra.mxu0 0.0
        %2280 = vmatpush.msra.mxu0 0.0
        %2281 = vmatpush.msra.mxu0 0.0
        %2282 = vmatpush.msra.mxu0 0.0
        %2283 = vmatpush.msra.mxu0 0.0
        %2284 = vmatpush.msra.mxu0 0.0
        %2285 = vmatpush.msra.mxu0 %v1948
        %2286 = vmatpush.msra.mxu0 %v1916
        %2287 = vmatpush.msra.mxu0 %v1884
        %2288 = vmatpush.msra.mxu0 %v1852
        %2289 = vmatmul.f32.gmra.mxu0 %v2001
        %v2290 = vpop.f32.mrf.mxu0
        %v2291 = vadd.f32 %v1982, %v2290
        %2292 = vmatmul.f32.gmra.mxu0 %v2004
        %v2293 = vpop.f32.mrf.mxu0
        %v2294 = vadd.f32 %v1987, %v2293
        %2295 = vmatmul.f32.gmra.mxu0 %v2007
        %v2296 = vpop.f32.mrf.mxu0
        %v2297 = vadd.f32 %v1992, %v2296
        %2298 = vmatmul.f32.gmra.mxu0 %v2010
        %v2299 = vpop.f32.mrf.mxu0
        %v2300 = vadd.f32 %v1997, %v2299
        %2301 = vdwg.mxu0
        %2302 = vmatpush.msra.mxu0 0.0
        %2303 = vmatpush.msra.mxu0 0.0
        %2304 = vmatpush.msra.mxu0 0.0
        %2305 = vmatpush.msra.mxu0 0.0
        %2306 = vmatpush.msra.mxu0 0.0
        %2307 = vmatpush.msra.mxu0 0.0
        %2308 = vmatpush.msra.mxu0 0.0
        %2309 = vmatpush.msra.mxu0 0.0
        %2310 = vmatpush.msra.mxu0 0.0
        %2311 = vmatpush.msra.mxu0 0.0
        %2312 = vmatpush.msra.mxu0 0.0
        %2313 = vmatpush.msra.mxu0 0.0
        %2314 = vmatpush.msra.mxu0 %v1949
        %2315 = vmatpush.msra.mxu0 %v1917
        %2316 = vmatpush.msra.mxu0 %v1885
        %2317 = vmatpush.msra.mxu0 %v1853
        %2318 = vmatmul.f32.gmra.mxu0 %v2001
        %v2319 = vpop.f32.mrf.mxu0
        %v2320 = vadd.f32 %v1982, %v2319
        %2321 = vmatmul.f32.gmra.mxu0 %v2004
        %v2322 = vpop.f32.mrf.mxu0
        %v2323 = vadd.f32 %v1987, %v2322
        %2324 = vmatmul.f32.gmra.mxu0 %v2007
        %v2325 = vpop.f32.mrf.mxu0
        %v2326 = vadd.f32 %v1992, %v2325
        %2327 = vmatmul.f32.gmra.mxu0 %v2010
        %v2328 = vpop.f32.mrf.mxu0
        %v2329 = vadd.f32 %v1997, %v2328
        %2330 = vdwg.mxu0
        %2331 = vmatpush.msra.mxu0 0.0
        %2332 = vmatpush.msra.mxu0 0.0
        %2333 = vmatpush.msra.mxu0 0.0
        %2334 = vmatpush.msra.mxu0 0.0
        %2335 = vmatpush.msra.mxu0 0.0
        %2336 = vmatpush.msra.mxu0 0.0
        %2337 = vmatpush.msra.mxu0 0.0
        %2338 = vmatpush.msra.mxu0 0.0
        %2339 = vmatpush.msra.mxu0 0.0
        %2340 = vmatpush.msra.mxu0 0.0
        %2341 = vmatpush.msra.mxu0 0.0
        %2342 = vmatpush.msra.mxu0 0.0
        %2343 = vmatpush.msra.mxu0 %v1950
        %2344 = vmatpush.msra.mxu0 %v1918
        %2345 = vmatpush.msra.mxu0 %v1886
        %2346 = vmatpush.msra.mxu0 %v1854
        %2347 = vmatmul.f32.gmra.mxu0 %v2001
        %v2348 = vpop.f32.mrf.mxu0
        %v2349 = vadd.f32 %v1982, %v2348
        %2350 = vmatmul.f32.gmra.mxu0 %v2004
        %v2351 = vpop.f32.mrf.mxu0
        %v2352 = vadd.f32 %v1987, %v2351
        %2353 = vmatmul.f32.gmra.mxu0 %v2007
        %v2354 = vpop.f32.mrf.mxu0
        %v2355 = vadd.f32 %v1992, %v2354
        %2356 = vmatmul.f32.gmra.mxu0 %v2010
        %v2357 = vpop.f32.mrf.mxu0
        %v2358 = vadd.f32 %v1997, %v2357
        %2359 = vdwg.mxu0
        %2360 = vmatpush.msra.mxu0 0.0
        %2361 = vmatpush.msra.mxu0 0.0
        %2362 = vmatpush.msra.mxu0 0.0
        %2363 = vmatpush.msra.mxu0 0.0
        %2364 = vmatpush.msra.mxu0 0.0
        %2365 = vmatpush.msra.mxu0 0.0
        %2366 = vmatpush.msra.mxu0 0.0
        %2367 = vmatpush.msra.mxu0 0.0
        %2368 = vmatpush.msra.mxu0 0.0
        %2369 = vmatpush.msra.mxu0 0.0
        %2370 = vmatpush.msra.mxu0 0.0
        %2371 = vmatpush.msra.mxu0 0.0
        %2372 = vmatpush.msra.mxu0 %v1951
        %2373 = vmatpush.msra.mxu0 %v1919
        %2374 = vmatpush.msra.mxu0 %v1887
        %2375 = vmatpush.msra.mxu0 %v1855
        %2376 = vmatmul.f32.gmra.mxu0 %v2001
        %v2377 = vpop.f32.mrf.mxu0
        %v2378 = vadd.f32 %v1982, %v2377
        %2379 = vmatmul.f32.gmra.mxu0 %v2004
        %v2380 = vpop.f32.mrf.mxu0
        %v2381 = vadd.f32 %v1987, %v2380
        %2382 = vmatmul.f32.gmra.mxu0 %v2007
        %v2383 = vpop.f32.mrf.mxu0
        %v2384 = vadd.f32 %v1992, %v2383
        %2385 = vmatmul.f32.gmra.mxu0 %v2010
        %v2386 = vpop.f32.mrf.mxu0
        %v2387 = vadd.f32 %v1997, %v2386
        %2388 = vdwg.mxu0
        %2389 = vmatpush.msra.mxu0 0.0
        %2390 = vmatpush.msra.mxu0 0.0
        %2391 = vmatpush.msra.mxu0 0.0
        %2392 = vmatpush.msra.mxu0 0.0
        %2393 = vmatpush.msra.mxu0 0.0
        %2394 = vmatpush.msra.mxu0 0.0
        %2395 = vmatpush.msra.mxu0 0.0
        %2396 = vmatpush.msra.mxu0 0.0
        %2397 = vmatpush.msra.mxu0 0.0
        %2398 = vmatpush.msra.mxu0 0.0
        %2399 = vmatpush.msra.mxu0 0.0
        %2400 = vmatpush.msra.mxu0 0.0
        %2401 = vmatpush.msra.mxu0 %v1952
        %2402 = vmatpush.msra.mxu0 %v1920
        %2403 = vmatpush.msra.mxu0 %v1888
        %2404 = vmatpush.msra.mxu0 %v1856
        %2405 = vmatmul.f32.gmra.mxu0 %v2001
        %v2406 = vpop.f32.mrf.mxu0
        %v2407 = vadd.f32 %v1982, %v2406
        %2408 = vmatmul.f32.gmra.mxu0 %v2004
        %v2409 = vpop.f32.mrf.mxu0
        %v2410 = vadd.f32 %v1987, %v2409
        %2411 = vmatmul.f32.gmra.mxu0 %v2007
        %v2412 = vpop.f32.mrf.mxu0
        %v2413 = vadd.f32 %v1992, %v2412
        %2414 = vmatmul.f32.gmra.mxu0 %v2010
        %v2415 = vpop.f32.mrf.mxu0
        %v2416 = vadd.f32 %v1997, %v2415
        %2417 = vdwg.mxu0
        %2418 = vmatpush.msra.mxu0 0.0
        %2419 = vmatpush.msra.mxu0 0.0
        %2420 = vmatpush.msra.mxu0 0.0
        %2421 = vmatpush.msra.mxu0 0.0
        %2422 = vmatpush.msra.mxu0 0.0
        %2423 = vmatpush.msra.mxu0 0.0
        %2424 = vmatpush.msra.mxu0 0.0
        %2425 = vmatpush.msra.mxu0 0.0
        %2426 = vmatpush.msra.mxu0 0.0
        %2427 = vmatpush.msra.mxu0 0.0
        %2428 = vmatpush.msra.mxu0 0.0
        %2429 = vmatpush.msra.mxu0 0.0
        %2430 = vmatpush.msra.mxu0 %v1953
        %2431 = vmatpush.msra.mxu0 %v1921
        %2432 = vmatpush.msra.mxu0 %v1889
        %2433 = vmatpush.msra.mxu0 %v1857
        %2434 = vmatmul.f32.gmra.mxu0 %v2001
        %v2435 = vpop.f32.mrf.mxu0
        %v2436 = vadd.f32 %v1982, %v2435
        %2437 = vmatmul.f32.gmra.mxu0 %v2004
        %v2438 = vpop.f32.mrf.mxu0
        %v2439 = vadd.f32 %v1987, %v2438
        %2440 = vmatmul.f32.gmra.mxu0 %v2007
        %v2441 = vpop.f32.mrf.mxu0
        %v2442 = vadd.f32 %v1992, %v2441
        %2443 = vmatmul.f32.gmra.mxu0 %v2010
        %v2444 = vpop.f32.mrf.mxu0
        %v2445 = vadd.f32 %v1997, %v2444
        %2446 = vdwg.mxu0
        %2447 = vmatpush.msra.mxu0 0.0
        %2448 = vmatpush.msra.mxu0 0.0
        %2449 = vmatpush.msra.mxu0 0.0
        %2450 = vmatpush.msra.mxu0 0.0
        %2451 = vmatpush.msra.mxu0 0.0
        %2452 = vmatpush.msra.mxu0 0.0
        %2453 = vmatpush.msra.mxu0 0.0
        %2454 = vmatpush.msra.mxu0 0.0
        %2455 = vmatpush.msra.mxu0 0.0
        %2456 = vmatpush.msra.mxu0 0.0
        %2457 = vmatpush.msra.mxu0 0.0
        %2458 = vmatpush.msra.mxu0 0.0
        %2459 = vmatpush.msra.mxu0 %v1954
        %2460 = vmatpush.msra.mxu0 %v1922
        %2461 = vmatpush.msra.mxu0 %v1890
        %2462 = vmatpush.msra.mxu0 %v1858
        %2463 = vmatmul.f32.gmra.mxu0 %v2001
        %v2464 = vpop.f32.mrf.mxu0
        %v2465 = vadd.f32 %v1982, %v2464
        %2466 = vmatmul.f32.gmra.mxu0 %v2004
        %v2467 = vpop.f32.mrf.mxu0
        %v2468 = vadd.f32 %v1987, %v2467
        %2469 = vmatmul.f32.gmra.mxu0 %v2007
        %v2470 = vpop.f32.mrf.mxu0
        %v2471 = vadd.f32 %v1992, %v2470
        %2472 = vmatmul.f32.gmra.mxu0 %v2010
        %v2473 = vpop.f32.mrf.mxu0
        %v2474 = vadd.f32 %v1997, %v2473
        %2475 = vdwg.mxu0
        %2476 = vmatpush.msra.mxu0 0.0
        %2477 = vmatpush.msra.mxu0 0.0
        %2478 = vmatpush.msra.mxu0 0.0
        %2479 = vmatpush.msra.mxu0 0.0
        %2480 = vmatpush.msra.mxu0 0.0
        %2481 = vmatpush.msra.mxu0 0.0
        %2482 = vmatpush.msra.mxu0 0.0
        %2483 = vmatpush.msra.mxu0 0.0
        %2484 = vmatpush.msra.mxu0 0.0
        %2485 = vmatpush.msra.mxu0 0.0
        %2486 = vmatpush.msra.mxu0 0.0
        %2487 = vmatpush.msra.mxu0 0.0
        %2488 = vmatpush.msra.mxu0 %v1955
        %2489 = vmatpush.msra.mxu0 %v1923
        %2490 = vmatpush.msra.mxu0 %v1891
        %2491 = vmatpush.msra.mxu0 %v1859
        %2492 = vmatmul.f32.gmra.mxu0 %v2001
        %v2493 = vpop.f32.mrf.mxu0
        %v2494 = vadd.f32 %v1982, %v2493
        %2495 = vmatmul.f32.gmra.mxu0 %v2004
        %v2496 = vpop.f32.mrf.mxu0
        %v2497 = vadd.f32 %v1987, %v2496
        %2498 = vmatmul.f32.gmra.mxu0 %v2007
        %v2499 = vpop.f32.mrf.mxu0
        %v2500 = vadd.f32 %v1992, %v2499
        %2501 = vmatmul.f32.gmra.mxu0 %v2010
        %v2502 = vpop.f32.mrf.mxu0
        %v2503 = vadd.f32 %v1997, %v2502
        %2504 = vdwg.mxu0
        %2505 = vmatpush.msra.mxu0 0.0
        %2506 = vmatpush.msra.mxu0 0.0
        %2507 = vmatpush.msra.mxu0 0.0
        %2508 = vmatpush.msra.mxu0 0.0
        %2509 = vmatpush.msra.mxu0 0.0
        %2510 = vmatpush.msra.mxu0 0.0
        %2511 = vmatpush.msra.mxu0 0.0
        %2512 = vmatpush.msra.mxu0 0.0
        %2513 = vmatpush.msra.mxu0 0.0
        %2514 = vmatpush.msra.mxu0 0.0
        %2515 = vmatpush.msra.mxu0 0.0
        %2516 = vmatpush.msra.mxu0 0.0
        %2517 = vmatpush.msra.mxu0 %v1956
        %2518 = vmatpush.msra.mxu0 %v1924
        %2519 = vmatpush.msra.mxu0 %v1892
        %2520 = vmatpush.msra.mxu0 %v1860
        %2521 = vmatmul.f32.gmra.mxu0 %v2001
        %v2522 = vpop.f32.mrf.mxu0
        %v2523 = vadd.f32 %v1982, %v2522
        %2524 = vmatmul.f32.gmra.mxu0 %v2004
        %v2525 = vpop.f32.mrf.mxu0
        %v2526 = vadd.f32 %v1987, %v2525
        %2527 = vmatmul.f32.gmra.mxu0 %v2007
        %v2528 = vpop.f32.mrf.mxu0
        %v2529 = vadd.f32 %v1992, %v2528
        %2530 = vmatmul.f32.gmra.mxu0 %v2010
        %v2531 = vpop.f32.mrf.mxu0
        %v2532 = vadd.f32 %v1997, %v2531
        %2533 = vdwg.mxu0
        %2534 = vmatpush.msra.mxu0 0.0
        %2535 = vmatpush.msra.mxu0 0.0
        %2536 = vmatpush.msra.mxu0 0.0
        %2537 = vmatpush.msra.mxu0 0.0
        %2538 = vmatpush.msra.mxu0 0.0
        %2539 = vmatpush.msra.mxu0 0.0
        %2540 = vmatpush.msra.mxu0 0.0
        %2541 = vmatpush.msra.mxu0 0.0
        %2542 = vmatpush.msra.mxu0 0.0
        %2543 = vmatpush.msra.mxu0 0.0
        %2544 = vmatpush.msra.mxu0 0.0
        %2545 = vmatpush.msra.mxu0 0.0
        %2546 = vmatpush.msra.mxu0 %v1957
        %2547 = vmatpush.msra.mxu0 %v1925
        %2548 = vmatpush.msra.mxu0 %v1893
        %2549 = vmatpush.msra.mxu0 %v1861
        %2550 = vmatmul.f32.gmra.mxu0 %v2001
        %v2551 = vpop.f32.mrf.mxu0
        %v2552 = vadd.f32 %v1982, %v2551
        %2553 = vmatmul.f32.gmra.mxu0 %v2004
        %v2554 = vpop.f32.mrf.mxu0
        %v2555 = vadd.f32 %v1987, %v2554
        %2556 = vmatmul.f32.gmra.mxu0 %v2007
        %v2557 = vpop.f32.mrf.mxu0
        %v2558 = vadd.f32 %v1992, %v2557
        %2559 = vmatmul.f32.gmra.mxu0 %v2010
        %v2560 = vpop.f32.mrf.mxu0
        %v2561 = vadd.f32 %v1997, %v2560
        %2562 = vdwg.mxu0
        %2563 = vmatpush.msra.mxu0 0.0
        %2564 = vmatpush.msra.mxu0 0.0
        %2565 = vmatpush.msra.mxu0 0.0
        %2566 = vmatpush.msra.mxu0 0.0
        %2567 = vmatpush.msra.mxu0 0.0
        %2568 = vmatpush.msra.mxu0 0.0
        %2569 = vmatpush.msra.mxu0 0.0
        %2570 = vmatpush.msra.mxu0 0.0
        %2571 = vmatpush.msra.mxu0 0.0
        %2572 = vmatpush.msra.mxu0 0.0
        %2573 = vmatpush.msra.mxu0 0.0
        %2574 = vmatpush.msra.mxu0 0.0
        %2575 = vmatpush.msra.mxu0 %v1958
        %2576 = vmatpush.msra.mxu0 %v1926
        %2577 = vmatpush.msra.mxu0 %v1894
        %2578 = vmatpush.msra.mxu0 %v1862
        %2579 = vmatmul.f32.gmra.mxu0 %v2001
        %v2580 = vpop.f32.mrf.mxu0
        %v2581 = vadd.f32 %v1982, %v2580
        %2582 = vmatmul.f32.gmra.mxu0 %v2004
        %v2583 = vpop.f32.mrf.mxu0
        %v2584 = vadd.f32 %v1987, %v2583
        %2585 = vmatmul.f32.gmra.mxu0 %v2007
        %v2586 = vpop.f32.mrf.mxu0
        %v2587 = vadd.f32 %v1992, %v2586
        %2588 = vmatmul.f32.gmra.mxu0 %v2010
        %v2589 = vpop.f32.mrf.mxu0
        %v2590 = vadd.f32 %v1997, %v2589
        %2591 = vdwg.mxu0
        %2592 = vmatpush.msra.mxu0 0.0
        %2593 = vmatpush.msra.mxu0 0.0
        %2594 = vmatpush.msra.mxu0 0.0
        %2595 = vmatpush.msra.mxu0 0.0
        %2596 = vmatpush.msra.mxu0 0.0
        %2597 = vmatpush.msra.mxu0 0.0
        %2598 = vmatpush.msra.mxu0 0.0
        %2599 = vmatpush.msra.mxu0 0.0
        %2600 = vmatpush.msra.mxu0 0.0
        %2601 = vmatpush.msra.mxu0 0.0
        %2602 = vmatpush.msra.mxu0 0.0
        %2603 = vmatpush.msra.mxu0 0.0
        %2604 = vmatpush.msra.mxu0 %v1959
        %2605 = vmatpush.msra.mxu0 %v1927
        %2606 = vmatpush.msra.mxu0 %v1895
        %2607 = vmatpush.msra.mxu0 %v1863
        %2608 = vmatmul.f32.gmra.mxu0 %v2001
        %v2609 = vpop.f32.mrf.mxu0
        %v2610 = vadd.f32 %v1982, %v2609
        %2611 = vmatmul.f32.gmra.mxu0 %v2004
        %v2612 = vpop.f32.mrf.mxu0
        %v2613 = vadd.f32 %v1987, %v2612
        %2614 = vmatmul.f32.gmra.mxu0 %v2007
        %v2615 = vpop.f32.mrf.mxu0
        %v2616 = vadd.f32 %v1992, %v2615
        %2617 = vmatmul.f32.gmra.mxu0 %v2010
        %v2618 = vpop.f32.mrf.mxu0
        %v2619 = vadd.f32 %v1997, %v2618
        %2620 = vdwg.mxu0
        %2621 = vmatpush.msra.mxu0 0.0
        %2622 = vmatpush.msra.mxu0 0.0
        %2623 = vmatpush.msra.mxu0 0.0
        %2624 = vmatpush.msra.mxu0 0.0
        %2625 = vmatpush.msra.mxu0 0.0
        %2626 = vmatpush.msra.mxu0 0.0
        %2627 = vmatpush.msra.mxu0 0.0
        %2628 = vmatpush.msra.mxu0 0.0
        %2629 = vmatpush.msra.mxu0 0.0
        %2630 = vmatpush.msra.mxu0 0.0
        %2631 = vmatpush.msra.mxu0 0.0
        %2632 = vmatpush.msra.mxu0 0.0
        %2633 = vmatpush.msra.mxu0 %v1960
        %2634 = vmatpush.msra.mxu0 %v1928
        %2635 = vmatpush.msra.mxu0 %v1896
        %2636 = vmatpush.msra.mxu0 %v1864
        %2637 = vmatmul.f32.gmra.mxu0 %v2001
        %v2638 = vpop.f32.mrf.mxu0
        %v2639 = vadd.f32 %v1982, %v2638
        %2640 = vmatmul.f32.gmra.mxu0 %v2004
        %v2641 = vpop.f32.mrf.mxu0
        %v2642 = vadd.f32 %v1987, %v2641
        %2643 = vmatmul.f32.gmra.mxu0 %v2007
        %v2644 = vpop.f32.mrf.mxu0
        %v2645 = vadd.f32 %v1992, %v2644
        %2646 = vmatmul.f32.gmra.mxu0 %v2010
        %v2647 = vpop.f32.mrf.mxu0
        %v2648 = vadd.f32 %v1997, %v2647
        %2649 = vdwg.mxu0
        %2650 = vmatpush.msra.mxu0 0.0
        %2651 = vmatpush.msra.mxu0 0.0
        %2652 = vmatpush.msra.mxu0 0.0
        %2653 = vmatpush.msra.mxu0 0.0
        %2654 = vmatpush.msra.mxu0 0.0
        %2655 = vmatpush.msra.mxu0 0.0
        %2656 = vmatpush.msra.mxu0 0.0
        %2657 = vmatpush.msra.mxu0 0.0
        %2658 = vmatpush.msra.mxu0 0.0
        %2659 = vmatpush.msra.mxu0 0.0
        %2660 = vmatpush.msra.mxu0 0.0
        %2661 = vmatpush.msra.mxu0 0.0
        %2662 = vmatpush.msra.mxu0 %v1961
        %2663 = vmatpush.msra.mxu0 %v1929
        %2664 = vmatpush.msra.mxu0 %v1897
        %2665 = vmatpush.msra.mxu0 %v1865
        %2666 = vmatmul.f32.gmra.mxu0 %v2001
        %v2667 = vpop.f32.mrf.mxu0
        %v2668 = vadd.f32 %v1982, %v2667
        %2669 = vmatmul.f32.gmra.mxu0 %v2004
        %v2670 = vpop.f32.mrf.mxu0
        %v2671 = vadd.f32 %v1987, %v2670
        %2672 = vmatmul.f32.gmra.mxu0 %v2007
        %v2673 = vpop.f32.mrf.mxu0
        %v2674 = vadd.f32 %v1992, %v2673
        %2675 = vmatmul.f32.gmra.mxu0 %v2010
        %v2676 = vpop.f32.mrf.mxu0
        %v2677 = vadd.f32 %v1997, %v2676
        %2678 = vdwg.mxu0
        %2679 = vmatpush.msra.mxu0 0.0
        %2680 = vmatpush.msra.mxu0 0.0
        %2681 = vmatpush.msra.mxu0 0.0
        %2682 = vmatpush.msra.mxu0 0.0
        %2683 = vmatpush.msra.mxu0 0.0
        %2684 = vmatpush.msra.mxu0 0.0
        %2685 = vmatpush.msra.mxu0 0.0
        %2686 = vmatpush.msra.mxu0 0.0
        %2687 = vmatpush.msra.mxu0 0.0
        %2688 = vmatpush.msra.mxu0 0.0
        %2689 = vmatpush.msra.mxu0 0.0
        %2690 = vmatpush.msra.mxu0 0.0
        %2691 = vmatpush.msra.mxu0 %v1962
        %2692 = vmatpush.msra.mxu0 %v1930
        %2693 = vmatpush.msra.mxu0 %v1898
        %2694 = vmatpush.msra.mxu0 %v1866
        %2695 = vmatmul.f32.gmra.mxu0 %v2001
        %v2696 = vpop.f32.mrf.mxu0
        %v2697 = vadd.f32 %v1982, %v2696
        %2698 = vmatmul.f32.gmra.mxu0 %v2004
        %v2699 = vpop.f32.mrf.mxu0
        %v2700 = vadd.f32 %v1987, %v2699
        %2701 = vmatmul.f32.gmra.mxu0 %v2007
        %v2702 = vpop.f32.mrf.mxu0
        %v2703 = vadd.f32 %v1992, %v2702
        %2704 = vmatmul.f32.gmra.mxu0 %v2010
        %v2705 = vpop.f32.mrf.mxu0
        %v2706 = vadd.f32 %v1997, %v2705
        %2707 = vdwg.mxu0
        %2708 = vmatpush.msra.mxu0 0.0
        %2709 = vmatpush.msra.mxu0 0.0
        %2710 = vmatpush.msra.mxu0 0.0
        %2711 = vmatpush.msra.mxu0 0.0
        %2712 = vmatpush.msra.mxu0 0.0
        %2713 = vmatpush.msra.mxu0 0.0
        %2714 = vmatpush.msra.mxu0 0.0
        %2715 = vmatpush.msra.mxu0 0.0
        %2716 = vmatpush.msra.mxu0 0.0
        %2717 = vmatpush.msra.mxu0 0.0
        %2718 = vmatpush.msra.mxu0 0.0
        %2719 = vmatpush.msra.mxu0 0.0
        %2720 = vmatpush.msra.mxu0 %v1963
        %2721 = vmatpush.msra.mxu0 %v1931
        %2722 = vmatpush.msra.mxu0 %v1899
        %2723 = vmatpush.msra.mxu0 %v1867
        %2724 = vmatmul.f32.gmra.mxu0 %v2001
        %v2725 = vpop.f32.mrf.mxu0
        %v2726 = vadd.f32 %v1982, %v2725
        %2727 = vmatmul.f32.gmra.mxu0 %v2004
        %v2728 = vpop.f32.mrf.mxu0
        %v2729 = vadd.f32 %v1987, %v2728
        %2730 = vmatmul.f32.gmra.mxu0 %v2007
        %v2731 = vpop.f32.mrf.mxu0
        %v2732 = vadd.f32 %v1992, %v2731
        %2733 = vmatmul.f32.gmra.mxu0 %v2010
        %v2734 = vpop.f32.mrf.mxu0
        %v2735 = vadd.f32 %v1997, %v2734
        %2736 = vdwg.mxu0
        %2737 = vmatpush.msra.mxu0 0.0
        %2738 = vmatpush.msra.mxu0 0.0
        %2739 = vmatpush.msra.mxu0 0.0
        %2740 = vmatpush.msra.mxu0 0.0
        %2741 = vmatpush.msra.mxu0 0.0
        %2742 = vmatpush.msra.mxu0 0.0
        %2743 = vmatpush.msra.mxu0 0.0
        %2744 = vmatpush.msra.mxu0 0.0
        %2745 = vmatpush.msra.mxu0 0.0
        %2746 = vmatpush.msra.mxu0 0.0
        %2747 = vmatpush.msra.mxu0 0.0
        %2748 = vmatpush.msra.mxu0 0.0
        %2749 = vmatpush.msra.mxu0 %v1964
        %2750 = vmatpush.msra.mxu0 %v1932
        %2751 = vmatpush.msra.mxu0 %v1900
        %2752 = vmatpush.msra.mxu0 %v1868
        %2753 = vmatmul.f32.gmra.mxu0 %v2001
        %v2754 = vpop.f32.mrf.mxu0
        %v2755 = vadd.f32 %v1982, %v2754
        %2756 = vmatmul.f32.gmra.mxu0 %v2004
        %v2757 = vpop.f32.mrf.mxu0
        %v2758 = vadd.f32 %v1987, %v2757
        %2759 = vmatmul.f32.gmra.mxu0 %v2007
        %v2760 = vpop.f32.mrf.mxu0
        %v2761 = vadd.f32 %v1992, %v2760
        %2762 = vmatmul.f32.gmra.mxu0 %v2010
        %v2763 = vpop.f32.mrf.mxu0
        %v2764 = vadd.f32 %v1997, %v2763
        %2765 = vdwg.mxu0
        %2766 = vmatpush.msra.mxu0 0.0
        %2767 = vmatpush.msra.mxu0 0.0
        %2768 = vmatpush.msra.mxu0 0.0
        %2769 = vmatpush.msra.mxu0 0.0
        %2770 = vmatpush.msra.mxu0 0.0
        %2771 = vmatpush.msra.mxu0 0.0
        %2772 = vmatpush.msra.mxu0 0.0
        %2773 = vmatpush.msra.mxu0 0.0
        %2774 = vmatpush.msra.mxu0 0.0
        %2775 = vmatpush.msra.mxu0 0.0
        %2776 = vmatpush.msra.mxu0 0.0
        %2777 = vmatpush.msra.mxu0 0.0
        %2778 = vmatpush.msra.mxu0 %v1965
        %2779 = vmatpush.msra.mxu0 %v1933
        %2780 = vmatpush.msra.mxu0 %v1901
        %2781 = vmatpush.msra.mxu0 %v1869
        %2782 = vmatmul.f32.gmra.mxu0 %v2001
        %v2783 = vpop.f32.mrf.mxu0
        %v2784 = vadd.f32 %v1982, %v2783
        %2785 = vmatmul.f32.gmra.mxu0 %v2004
        %v2786 = vpop.f32.mrf.mxu0
        %v2787 = vadd.f32 %v1987, %v2786
        %2788 = vmatmul.f32.gmra.mxu0 %v2007
        %v2789 = vpop.f32.mrf.mxu0
        %v2790 = vadd.f32 %v1992, %v2789
        %2791 = vmatmul.f32.gmra.mxu0 %v2010
        %v2792 = vpop.f32.mrf.mxu0
        %v2793 = vadd.f32 %v1997, %v2792
        %2794 = vdwg.mxu0
        %2795 = vmatpush.msra.mxu0 0.0
        %2796 = vmatpush.msra.mxu0 0.0
        %2797 = vmatpush.msra.mxu0 0.0
        %2798 = vmatpush.msra.mxu0 0.0
        %2799 = vmatpush.msra.mxu0 0.0
        %2800 = vmatpush.msra.mxu0 0.0
        %2801 = vmatpush.msra.mxu0 0.0
        %2802 = vmatpush.msra.mxu0 0.0
        %2803 = vmatpush.msra.mxu0 0.0
        %2804 = vmatpush.msra.mxu0 0.0
        %2805 = vmatpush.msra.mxu0 0.0
        %2806 = vmatpush.msra.mxu0 0.0
        %2807 = vmatpush.msra.mxu0 %v1966
        %2808 = vmatpush.msra.mxu0 %v1934
        %2809 = vmatpush.msra.mxu0 %v1902
        %2810 = vmatpush.msra.mxu0 %v1870
        %2811 = vmatmul.f32.gmra.mxu0 %v2001
        %v2812 = vpop.f32.mrf.mxu0
        %v2813 = vadd.f32 %v1982, %v2812
        %2814 = vmatmul.f32.gmra.mxu0 %v2004
        %v2815 = vpop.f32.mrf.mxu0
        %v2816 = vadd.f32 %v1987, %v2815
        %2817 = vmatmul.f32.gmra.mxu0 %v2007
        %v2818 = vpop.f32.mrf.mxu0
        %v2819 = vadd.f32 %v1992, %v2818
        %2820 = vmatmul.f32.gmra.mxu0 %v2010
        %v2821 = vpop.f32.mrf.mxu0
        %v2822 = vadd.f32 %v1997, %v2821
        %2823 = vdwg.mxu0
        %2824 = vmatpush.msra.mxu0 0.0
        %2825 = vmatpush.msra.mxu0 0.0
        %2826 = vmatpush.msra.mxu0 0.0
        %2827 = vmatpush.msra.mxu0 0.0
        %2828 = vmatpush.msra.mxu0 0.0
        %2829 = vmatpush.msra.mxu0 0.0
        %2830 = vmatpush.msra.mxu0 0.0
        %2831 = vmatpush.msra.mxu0 0.0
        %2832 = vmatpush.msra.mxu0 0.0
        %2833 = vmatpush.msra.mxu0 0.0
        %2834 = vmatpush.msra.mxu0 0.0
        %2835 = vmatpush.msra.mxu0 0.0
        %2836 = vmatpush.msra.mxu0 %v1967
        %2837 = vmatpush.msra.mxu0 %v1935
        %2838 = vmatpush.msra.mxu0 %v1903
        %2839 = vmatpush.msra.mxu0 %v1871
        %2840 = vmatmul.f32.gmra.mxu0 %v2001
        %v2841 = vpop.f32.mrf.mxu0
        %v2842 = vadd.f32 %v1982, %v2841
        %2843 = vmatmul.f32.gmra.mxu0 %v2004
        %v2844 = vpop.f32.mrf.mxu0
        %v2845 = vadd.f32 %v1987, %v2844
        %2846 = vmatmul.f32.gmra.mxu0 %v2007
        %v2847 = vpop.f32.mrf.mxu0
        %v2848 = vadd.f32 %v1992, %v2847
        %2849 = vmatmul.f32.gmra.mxu0 %v2010
        %v2850 = vpop.f32.mrf.mxu0
        %v2851 = vadd.f32 %v1997, %v2850
        %2852 = vdwg.mxu0
        %2853 = vmatpush.msra.mxu0 0.0
        %2854 = vmatpush.msra.mxu0 0.0
        %2855 = vmatpush.msra.mxu0 0.0
        %2856 = vmatpush.msra.mxu0 0.0
        %2857 = vmatpush.msra.mxu0 0.0
        %2858 = vmatpush.msra.mxu0 0.0
        %2859 = vmatpush.msra.mxu0 0.0
        %2860 = vmatpush.msra.mxu0 0.0
        %2861 = vmatpush.msra.mxu0 0.0
        %2862 = vmatpush.msra.mxu0 0.0
        %2863 = vmatpush.msra.mxu0 0.0
        %2864 = vmatpush.msra.mxu0 0.0
        %2865 = vmatpush.msra.mxu0 %v1968
        %2866 = vmatpush.msra.mxu0 %v1936
        %2867 = vmatpush.msra.mxu0 %v1904
        %2868 = vmatpush.msra.mxu0 %v1872
        %2869 = vmatmul.f32.gmra.mxu0 %v2001
        %v2870 = vpop.f32.mrf.mxu0
        %v2871 = vadd.f32 %v1982, %v2870
        %2872 = vmatmul.f32.gmra.mxu0 %v2004
        %v2873 = vpop.f32.mrf.mxu0
        %v2874 = vadd.f32 %v1987, %v2873
        %2875 = vmatmul.f32.gmra.mxu0 %v2007
        %v2876 = vpop.f32.mrf.mxu0
        %v2877 = vadd.f32 %v1992, %v2876
        %2878 = vmatmul.f32.gmra.mxu0 %v2010
        %v2879 = vpop.f32.mrf.mxu0
        %v2880 = vadd.f32 %v1997, %v2879
        %2881 = vdwg.mxu0
        %2882 = vmatpush.msra.mxu0 0.0
        %2883 = vmatpush.msra.mxu0 0.0
        %2884 = vmatpush.msra.mxu0 0.0
        %2885 = vmatpush.msra.mxu0 0.0
        %2886 = vmatpush.msra.mxu0 0.0
        %2887 = vmatpush.msra.mxu0 0.0
        %2888 = vmatpush.msra.mxu0 0.0
        %2889 = vmatpush.msra.mxu0 0.0
        %2890 = vmatpush.msra.mxu0 0.0
        %2891 = vmatpush.msra.mxu0 0.0
        %2892 = vmatpush.msra.mxu0 0.0
        %2893 = vmatpush.msra.mxu0 0.0
        %2894 = vmatpush.msra.mxu0 %v1969
        %2895 = vmatpush.msra.mxu0 %v1937
        %2896 = vmatpush.msra.mxu0 %v1905
        %2897 = vmatpush.msra.mxu0 %v1873
        %2898 = vmatmul.f32.gmra.mxu0 %v2001
        %v2899 = vpop.f32.mrf.mxu0
        %v2900 = vadd.f32 %v1982, %v2899
        %2901 = vmatmul.f32.gmra.mxu0 %v2004
        %v2902 = vpop.f32.mrf.mxu0
        %v2903 = vadd.f32 %v1987, %v2902
        %2904 = vmatmul.f32.gmra.mxu0 %v2007
        %v2905 = vpop.f32.mrf.mxu0
        %v2906 = vadd.f32 %v1992, %v2905
        %2907 = vmatmul.f32.gmra.mxu0 %v2010
        %v2908 = vpop.f32.mrf.mxu0
        %v2909 = vadd.f32 %v1997, %v2908
        %2910 = vdwg.mxu0
        %2911 = vmatpush.msra.mxu0 0.0
        %2912 = vmatpush.msra.mxu0 0.0
        %2913 = vmatpush.msra.mxu0 0.0
        %2914 = vmatpush.msra.mxu0 0.0
        %2915 = vmatpush.msra.mxu0 0.0
        %2916 = vmatpush.msra.mxu0 0.0
        %2917 = vmatpush.msra.mxu0 0.0
        %2918 = vmatpush.msra.mxu0 0.0
        %2919 = vmatpush.msra.mxu0 0.0
        %2920 = vmatpush.msra.mxu0 0.0
        %2921 = vmatpush.msra.mxu0 0.0
        %2922 = vmatpush.msra.mxu0 0.0
        %2923 = vmatpush.msra.mxu0 %v1970
        %2924 = vmatpush.msra.mxu0 %v1938
        %2925 = vmatpush.msra.mxu0 %v1906
        %2926 = vmatpush.msra.mxu0 %v1874
        %2927 = vmatmul.f32.gmra.mxu0 %v2001
        %v2928 = vpop.f32.mrf.mxu0
        %v2929 = vadd.f32 %v1982, %v2928
        %2930 = vmatmul.f32.gmra.mxu0 %v2004
        %v2931 = vpop.f32.mrf.mxu0
        %v2932 = vadd.f32 %v1987, %v2931
        %2933 = vmatmul.f32.gmra.mxu0 %v2007
        %v2934 = vpop.f32.mrf.mxu0
        %v2935 = vadd.f32 %v1992, %v2934
        %2936 = vmatmul.f32.gmra.mxu0 %v2010
        %v2937 = vpop.f32.mrf.mxu0
        %v2938 = vadd.f32 %v1997, %v2937
        %2939 = vdwg.mxu0
        %v2940 = vmax.f32 %v2030, 0.0
        %v2941 = vmax.f32 %v2059, 0.0
        %v2942 = vmax.f32 %v2088, 0.0
        %v2943 = vmax.f32 %v2117, 0.0
        %v2944 = vmax.f32 %v2146, 0.0
        %v2945 = vmax.f32 %v2175, 0.0
        %v2946 = vmax.f32 %v2204, 0.0
        %v2947 = vmax.f32 %v2233, 0.0
        %v2948 = vmax.f32 %v2262, 0.0
        %v2949 = vmax.f32 %v2291, 0.0
        %v2950 = vmax.f32 %v2320, 0.0
        %v2951 = vmax.f32 %v2349, 0.0
        %v2952 = vmax.f32 %v2378, 0.0
        %v2953 = vmax.f32 %v2407, 0.0
        %v2954 = vmax.f32 %v2436, 0.0
        %v2955 = vmax.f32 %v2465, 0.0
        %v2956 = vmax.f32 %v2494, 0.0
        %v2957 = vmax.f32 %v2523, 0.0
        %v2958 = vmax.f32 %v2552, 0.0
        %v2959 = vmax.f32 %v2581, 0.0
        %v2960 = vmax.f32 %v2610, 0.0
        %v2961 = vmax.f32 %v2639, 0.0
        %v2962 = vmax.f32 %v2668, 0.0
        %v2963 = vmax.f32 %v2697, 0.0
        %v2964 = vmax.f32 %v2726, 0.0
        %v2965 = vmax.f32 %v2755, 0.0
        %v2966 = vmax.f32 %v2784, 0.0
        %v2967 = vmax.f32 %v2813, 0.0
        %v2968 = vmax.f32 %v2842, 0.0
        %v2969 = vmax.f32 %v2871, 0.0
        %v2970 = vmax.f32 %v2900, 0.0
        %v2971 = vmax.f32 %v2929, 0.0
        %v2972 = vmax.f32 %v2033, 0.0
        %v2973 = vmax.f32 %v2062, 0.0
        %v2974 = vmax.f32 %v2091, 0.0
        %v2975 = vmax.f32 %v2120, 0.0
        %v2976 = vmax.f32 %v2149, 0.0
        %v2977 = vmax.f32 %v2178, 0.0
        %v2978 = vmax.f32 %v2207, 0.0
        %v2979 = vmax.f32 %v2236, 0.0
        %v2980 = vmax.f32 %v2265, 0.0
        %v2981 = vmax.f32 %v2294, 0.0
        %v2982 = vmax.f32 %v2323, 0.0
        %v2983 = vmax.f32 %v2352, 0.0
        %v2984 = vmax.f32 %v2381, 0.0
        %v2985 = vmax.f32 %v2410, 0.0
        %v2986 = vmax.f32 %v2439, 0.0
        %v2987 = vmax.f32 %v2468, 0.0
        %v2988 = vmax.f32 %v2497, 0.0
        %v2989 = vmax.f32 %v2526, 0.0
        %v2990 = vmax.f32 %v2555, 0.0
        %v2991 = vmax.f32 %v2584, 0.0
        %v2992 = vmax.f32 %v2613, 0.0
        %v2993 = vmax.f32 %v2642, 0.0
        %v2994 = vmax.f32 %v2671, 0.0
        %v2995 = vmax.f32 %v2700, 0.0
        %v2996 = vmax.f32 %v2729, 0.0
        %v2997 = vmax.f32 %v2758, 0.0
        %v2998 = vmax.f32 %v2787, 0.0
        %v2999 = vmax.f32 %v2816, 0.0
        %v3000 = vmax.f32 %v2845, 0.0
        %v3001 = vmax.f32 %v2874, 0.0
        %v3002 = vmax.f32 %v2903, 0.0
        %v3003 = vmax.f32 %v2932, 0.0
        %v3004 = vmax.f32 %v2036, 0.0
        %v3005 = vmax.f32 %v2065, 0.0
        %v3006 = vmax.f32 %v2094, 0.0
        %v3007 = vmax.f32 %v2123, 0.0
        %v3008 = vmax.f32 %v2152, 0.0
        %v3009 = vmax.f32 %v2181, 0.0
        %v3010 = vmax.f32 %v2210, 0.0
        %v3011 = vmax.f32 %v2239, 0.0
        %v3012 = vmax.f32 %v2268, 0.0
        %v3013 = vmax.f32 %v2297, 0.0
        %v3014 = vmax.f32 %v2326, 0.0
        %v3015 = vmax.f32 %v2355, 0.0
        %v3016 = vmax.f32 %v2384, 0.0
        %v3017 = vmax.f32 %v2413, 0.0
        %v3018 = vmax.f32 %v2442, 0.0
        %v3019 = vmax.f32 %v2471, 0.0
        %v3020 = vmax.f32 %v2500, 0.0
        %v3021 = vmax.f32 %v2529, 0.0
        %v3022 = vmax.f32 %v2558, 0.0
        %v3023 = vmax.f32 %v2587, 0.0
        %v3024 = vmax.f32 %v2616, 0.0
        %v3025 = vmax.f32 %v2645, 0.0
        %v3026 = vmax.f32 %v2674, 0.0
        %v3027 = vmax.f32 %v2703, 0.0
        %v3028 = vmax.f32 %v2732, 0.0
        %v3029 = vmax.f32 %v2761, 0.0
        %v3030 = vmax.f32 %v2790, 0.0
        %v3031 = vmax.f32 %v2819, 0.0
        %v3032 = vmax.f32 %v2848, 0.0
        %v3033 = vmax.f32 %v2877, 0.0
        %v3034 = vmax.f32 %v2906, 0.0
        %v3035 = vmax.f32 %v2935, 0.0
        %v3036 = vmax.f32 %v2039, 0.0
        %v3037 = vmax.f32 %v2068, 0.0
        %v3038 = vmax.f32 %v2097, 0.0
        %v3039 = vmax.f32 %v2126, 0.0
        %v3040 = vmax.f32 %v2155, 0.0
        %v3041 = vmax.f32 %v2184, 0.0
        %v3042 = vmax.f32 %v2213, 0.0
        %v3043 = vmax.f32 %v2242, 0.0
        %v3044 = vmax.f32 %v2271, 0.0
        %v3045 = vmax.f32 %v2300, 0.0
        %v3046 = vmax.f32 %v2329, 0.0
        %v3047 = vmax.f32 %v2358, 0.0
        %v3048 = vmax.f32 %v2387, 0.0
        %v3049 = vmax.f32 %v2416, 0.0
        %v3050 = vmax.f32 %v2445, 0.0
        %v3051 = vmax.f32 %v2474, 0.0
        %v3052 = vmax.f32 %v2503, 0.0
        %v3053 = vmax.f32 %v2532, 0.0
        %v3054 = vmax.f32 %v2561, 0.0
        %v3055 = vmax.f32 %v2590, 0.0
        %v3056 = vmax.f32 %v2619, 0.0
        %v3057 = vmax.f32 %v2648, 0.0
        %v3058 = vmax.f32 %v2677, 0.0
        %v3059 = vmax.f32 %v2706, 0.0
        %v3060 = vmax.f32 %v2735, 0.0
        %v3061 = vmax.f32 %v2764, 0.0
        %v3062 = vmax.f32 %v2793, 0.0
        %v3063 = vmax.f32 %v2822, 0.0
        %v3064 = vmax.f32 %v2851, 0.0
        %v3065 = vmax.f32 %v2880, 0.0
        %v3066 = vmax.f32 %v2909, 0.0
        %v3067 = vmax.f32 %v2938, 0.0
        %v3068 = vld [vmem:[%s6] sm:$0xff]
        %v3069 = vld [vmem:[%s6 + $0x8] sm:$0xff]
        %v3070 = vld [vmem:[%s6 + $0x10] sm:$0xff]
        %v3071 = vld [vmem:[%s6 + $0x18] sm:$0xff]
        %v3073 = vsel %vm1999, %v3068, 0
        %v3076 = vsel %vm1999, %v3069, 0
        %v3079 = vsel %vm1999, %v3070, 0
        %v3082 = vsel %vm1999, %v3071, 0
        %3084 = vmatpush.msra.mxu0 0.0
        %3085 = vmatpush.msra.mxu0 0.0
        %3086 = vmatpush.msra.mxu0 0.0
        %3087 = vmatpush.msra.mxu0 0.0
        %3088 = vmatpush.msra.mxu0 0.0
        %3089 = vmatpush.msra.mxu0 0.0
        %3090 = vmatpush.msra.mxu0 0.0
        %3091 = vmatpush.msra.mxu0 0.0
        %3092 = vmatpush.msra.mxu0 0.0
        %3093 = vmatpush.msra.mxu0 0.0
        %3094 = vmatpush.msra.mxu0 0.0
        %3095 = vmatpush.msra.mxu0 0.0
        %3096 = vmatpush.msra.mxu0 %v3036
        %3097 = vmatpush.msra.mxu0 %v3004
        %3098 = vmatpush.msra.mxu0 %v2972
        %3099 = vmatpush.msra.mxu0 %v2940
        %3100 = vmatmul.f32.gmra.mxu0 %v3073
        %v3101 = vpop.f32.mrf.mxu0
        %v3102 = vadd.f32 %v561, %v3101
        %3103 = vmatmul.f32.gmra.mxu0 %v3076
        %v3104 = vpop.f32.mrf.mxu0
        %v3105 = vadd.f32 %v564, %v3104
        %3106 = vmatmul.f32.gmra.mxu0 %v3079
        %v3107 = vpop.f32.mrf.mxu0
        %v3108 = vadd.f32 %v567, %v3107
        %3109 = vmatmul.f32.gmra.mxu0 %v3082
        %v3110 = vpop.f32.mrf.mxu0
        %v3111 = vadd.f32 %v570, %v3110
        %3112 = vdwg.mxu0
        %3113 = vmatpush.msra.mxu0 0.0
        %3114 = vmatpush.msra.mxu0 0.0
        %3115 = vmatpush.msra.mxu0 0.0
        %3116 = vmatpush.msra.mxu0 0.0
        %3117 = vmatpush.msra.mxu0 0.0
        %3118 = vmatpush.msra.mxu0 0.0
        %3119 = vmatpush.msra.mxu0 0.0
        %3120 = vmatpush.msra.mxu0 0.0
        %3121 = vmatpush.msra.mxu0 0.0
        %3122 = vmatpush.msra.mxu0 0.0
        %3123 = vmatpush.msra.mxu0 0.0
        %3124 = vmatpush.msra.mxu0 0.0
        %3125 = vmatpush.msra.mxu0 %v3037
        %3126 = vmatpush.msra.mxu0 %v3005
        %3127 = vmatpush.msra.mxu0 %v2973
        %3128 = vmatpush.msra.mxu0 %v2941
        %3129 = vmatmul.f32.gmra.mxu0 %v3073
        %v3130 = vpop.f32.mrf.mxu0
        %v3131 = vadd.f32 %v602, %v3130
        %3132 = vmatmul.f32.gmra.mxu0 %v3076
        %v3133 = vpop.f32.mrf.mxu0
        %v3134 = vadd.f32 %v605, %v3133
        %3135 = vmatmul.f32.gmra.mxu0 %v3079
        %v3136 = vpop.f32.mrf.mxu0
        %v3137 = vadd.f32 %v608, %v3136
        %3138 = vmatmul.f32.gmra.mxu0 %v3082
        %v3139 = vpop.f32.mrf.mxu0
        %v3140 = vadd.f32 %v611, %v3139
        %3141 = vdwg.mxu0
        %3142 = vmatpush.msra.mxu0 0.0
        %3143 = vmatpush.msra.mxu0 0.0
        %3144 = vmatpush.msra.mxu0 0.0
        %3145 = vmatpush.msra.mxu0 0.0
        %3146 = vmatpush.msra.mxu0 0.0
        %3147 = vmatpush.msra.mxu0 0.0
        %3148 = vmatpush.msra.mxu0 0.0
        %3149 = vmatpush.msra.mxu0 0.0
        %3150 = vmatpush.msra.mxu0 0.0
        %3151 = vmatpush.msra.mxu0 0.0
        %3152 = vmatpush.msra.mxu0 0.0
        %3153 = vmatpush.msra.mxu0 0.0
        %3154 = vmatpush.msra.mxu0 %v3038
        %3155 = vmatpush.msra.mxu0 %v3006
        %3156 = vmatpush.msra.mxu0 %v2974
        %3157 = vmatpush.msra.mxu0 %v2942
        %3158 = vmatmul.f32.gmra.mxu0 %v3073
        %v3159 = vpop.f32.mrf.mxu0
        %v3160 = vadd.f32 %v643, %v3159
        %3161 = vmatmul.f32.gmra.mxu0 %v3076
        %v3162 = vpop.f32.mrf.mxu0
        %v3163 = vadd.f32 %v646, %v3162
        %3164 = vmatmul.f32.gmra.mxu0 %v3079
        %v3165 = vpop.f32.mrf.mxu0
        %v3166 = vadd.f32 %v649, %v3165
        %3167 = vmatmul.f32.gmra.mxu0 %v3082
        %v3168 = vpop.f32.mrf.mxu0
        %v3169 = vadd.f32 %v652, %v3168
        %3170 = vdwg.mxu0
        %3171 = vmatpush.msra.mxu0 0.0
        %3172 = vmatpush.msra.mxu0 0.0
        %3173 = vmatpush.msra.mxu0 0.0
        %3174 = vmatpush.msra.mxu0 0.0
        %3175 = vmatpush.msra.mxu0 0.0
        %3176 = vmatpush.msra.mxu0 0.0
        %3177 = vmatpush.msra.mxu0 0.0
        %3178 = vmatpush.msra.mxu0 0.0
        %3179 = vmatpush.msra.mxu0 0.0
        %3180 = vmatpush.msra.mxu0 0.0
        %3181 = vmatpush.msra.mxu0 0.0
        %3182 = vmatpush.msra.mxu0 0.0
        %3183 = vmatpush.msra.mxu0 %v3039
        %3184 = vmatpush.msra.mxu0 %v3007
        %3185 = vmatpush.msra.mxu0 %v2975
        %3186 = vmatpush.msra.mxu0 %v2943
        %3187 = vmatmul.f32.gmra.mxu0 %v3073
        %v3188 = vpop.f32.mrf.mxu0
        %v3189 = vadd.f32 %v684, %v3188
        %3190 = vmatmul.f32.gmra.mxu0 %v3076
        %v3191 = vpop.f32.mrf.mxu0
        %v3192 = vadd.f32 %v687, %v3191
        %3193 = vmatmul.f32.gmra.mxu0 %v3079
        %v3194 = vpop.f32.mrf.mxu0
        %v3195 = vadd.f32 %v690, %v3194
        %3196 = vmatmul.f32.gmra.mxu0 %v3082
        %v3197 = vpop.f32.mrf.mxu0
        %v3198 = vadd.f32 %v693, %v3197
        %3199 = vdwg.mxu0
        %3200 = vmatpush.msra.mxu0 0.0
        %3201 = vmatpush.msra.mxu0 0.0
        %3202 = vmatpush.msra.mxu0 0.0
        %3203 = vmatpush.msra.mxu0 0.0
        %3204 = vmatpush.msra.mxu0 0.0
        %3205 = vmatpush.msra.mxu0 0.0
        %3206 = vmatpush.msra.mxu0 0.0
        %3207 = vmatpush.msra.mxu0 0.0
        %3208 = vmatpush.msra.mxu0 0.0
        %3209 = vmatpush.msra.mxu0 0.0
        %3210 = vmatpush.msra.mxu0 0.0
        %3211 = vmatpush.msra.mxu0 0.0
        %3212 = vmatpush.msra.mxu0 %v3040
        %3213 = vmatpush.msra.mxu0 %v3008
        %3214 = vmatpush.msra.mxu0 %v2976
        %3215 = vmatpush.msra.mxu0 %v2944
        %3216 = vmatmul.f32.gmra.mxu0 %v3073
        %v3217 = vpop.f32.mrf.mxu0
        %v3218 = vadd.f32 %v725, %v3217
        %3219 = vmatmul.f32.gmra.mxu0 %v3076
        %v3220 = vpop.f32.mrf.mxu0
        %v3221 = vadd.f32 %v728, %v3220
        %3222 = vmatmul.f32.gmra.mxu0 %v3079
        %v3223 = vpop.f32.mrf.mxu0
        %v3224 = vadd.f32 %v731, %v3223
        %3225 = vmatmul.f32.gmra.mxu0 %v3082
        %v3226 = vpop.f32.mrf.mxu0
        %v3227 = vadd.f32 %v734, %v3226
        %3228 = vdwg.mxu0
        %3229 = vmatpush.msra.mxu0 0.0
        %3230 = vmatpush.msra.mxu0 0.0
        %3231 = vmatpush.msra.mxu0 0.0
        %3232 = vmatpush.msra.mxu0 0.0
        %3233 = vmatpush.msra.mxu0 0.0
        %3234 = vmatpush.msra.mxu0 0.0
        %3235 = vmatpush.msra.mxu0 0.0
        %3236 = vmatpush.msra.mxu0 0.0
        %3237 = vmatpush.msra.mxu0 0.0
        %3238 = vmatpush.msra.mxu0 0.0
        %3239 = vmatpush.msra.mxu0 0.0
        %3240 = vmatpush.msra.mxu0 0.0
        %3241 = vmatpush.msra.mxu0 %v3041
        %3242 = vmatpush.msra.mxu0 %v3009
        %3243 = vmatpush.msra.mxu0 %v2977
        %3244 = vmatpush.msra.mxu0 %v2945
        %3245 = vmatmul.f32.gmra.mxu0 %v3073
        %v3246 = vpop.f32.mrf.mxu0
        %v3247 = vadd.f32 %v766, %v3246
        %3248 = vmatmul.f32.gmra.mxu0 %v3076
        %v3249 = vpop.f32.mrf.mxu0
        %v3250 = vadd.f32 %v769, %v3249
        %3251 = vmatmul.f32.gmra.mxu0 %v3079
        %v3252 = vpop.f32.mrf.mxu0
        %v3253 = vadd.f32 %v772, %v3252
        %3254 = vmatmul.f32.gmra.mxu0 %v3082
        %v3255 = vpop.f32.mrf.mxu0
        %v3256 = vadd.f32 %v775, %v3255
        %3257 = vdwg.mxu0
        %3258 = vmatpush.msra.mxu0 0.0
        %3259 = vmatpush.msra.mxu0 0.0
        %3260 = vmatpush.msra.mxu0 0.0
        %3261 = vmatpush.msra.mxu0 0.0
        %3262 = vmatpush.msra.mxu0 0.0
        %3263 = vmatpush.msra.mxu0 0.0
        %3264 = vmatpush.msra.mxu0 0.0
        %3265 = vmatpush.msra.mxu0 0.0
        %3266 = vmatpush.msra.mxu0 0.0
        %3267 = vmatpush.msra.mxu0 0.0
        %3268 = vmatpush.msra.mxu0 0.0
        %3269 = vmatpush.msra.mxu0 0.0
        %3270 = vmatpush.msra.mxu0 %v3042
        %3271 = vmatpush.msra.mxu0 %v3010
        %3272 = vmatpush.msra.mxu0 %v2978
        %3273 = vmatpush.msra.mxu0 %v2946
        %3274 = vmatmul.f32.gmra.mxu0 %v3073
        %v3275 = vpop.f32.mrf.mxu0
        %v3276 = vadd.f32 %v807, %v3275
        %3277 = vmatmul.f32.gmra.mxu0 %v3076
        %v3278 = vpop.f32.mrf.mxu0
        %v3279 = vadd.f32 %v810, %v3278
        %3280 = vmatmul.f32.gmra.mxu0 %v3079
        %v3281 = vpop.f32.mrf.mxu0
        %v3282 = vadd.f32 %v813, %v3281
        %3283 = vmatmul.f32.gmra.mxu0 %v3082
        %v3284 = vpop.f32.mrf.mxu0
        %v3285 = vadd.f32 %v816, %v3284
        %3286 = vdwg.mxu0
        %3287 = vmatpush.msra.mxu0 0.0
        %3288 = vmatpush.msra.mxu0 0.0
        %3289 = vmatpush.msra.mxu0 0.0
        %3290 = vmatpush.msra.mxu0 0.0
        %3291 = vmatpush.msra.mxu0 0.0
        %3292 = vmatpush.msra.mxu0 0.0
        %3293 = vmatpush.msra.mxu0 0.0
        %3294 = vmatpush.msra.mxu0 0.0
        %3295 = vmatpush.msra.mxu0 0.0
        %3296 = vmatpush.msra.mxu0 0.0
        %3297 = vmatpush.msra.mxu0 0.0
        %3298 = vmatpush.msra.mxu0 0.0
        %3299 = vmatpush.msra.mxu0 %v3043
        %3300 = vmatpush.msra.mxu0 %v3011
        %3301 = vmatpush.msra.mxu0 %v2979
        %3302 = vmatpush.msra.mxu0 %v2947
        %3303 = vmatmul.f32.gmra.mxu0 %v3073
        %v3304 = vpop.f32.mrf.mxu0
        %v3305 = vadd.f32 %v848, %v3304
        %3306 = vmatmul.f32.gmra.mxu0 %v3076
        %v3307 = vpop.f32.mrf.mxu0
        %v3308 = vadd.f32 %v851, %v3307
        %3309 = vmatmul.f32.gmra.mxu0 %v3079
        %v3310 = vpop.f32.mrf.mxu0
        %v3311 = vadd.f32 %v854, %v3310
        %3312 = vmatmul.f32.gmra.mxu0 %v3082
        %v3313 = vpop.f32.mrf.mxu0
        %v3314 = vadd.f32 %v857, %v3313
        %3315 = vdwg.mxu0
        %3316 = vmatpush.msra.mxu0 0.0
        %3317 = vmatpush.msra.mxu0 0.0
        %3318 = vmatpush.msra.mxu0 0.0
        %3319 = vmatpush.msra.mxu0 0.0
        %3320 = vmatpush.msra.mxu0 0.0
        %3321 = vmatpush.msra.mxu0 0.0
        %3322 = vmatpush.msra.mxu0 0.0
        %3323 = vmatpush.msra.mxu0 0.0
        %3324 = vmatpush.msra.mxu0 0.0
        %3325 = vmatpush.msra.mxu0 0.0
        %3326 = vmatpush.msra.mxu0 0.0
        %3327 = vmatpush.msra.mxu0 0.0
        %3328 = vmatpush.msra.mxu0 %v3044
        %3329 = vmatpush.msra.mxu0 %v3012
        %3330 = vmatpush.msra.mxu0 %v2980
        %3331 = vmatpush.msra.mxu0 %v2948
        %3332 = vmatmul.f32.gmra.mxu0 %v3073
        %v3333 = vpop.f32.mrf.mxu0
        %v3334 = vadd.f32 %v889, %v3333
        %3335 = vmatmul.f32.gmra.mxu0 %v3076
        %v3336 = vpop.f32.mrf.mxu0
        %v3337 = vadd.f32 %v892, %v3336
        %3338 = vmatmul.f32.gmra.mxu0 %v3079
        %v3339 = vpop.f32.mrf.mxu0
        %v3340 = vadd.f32 %v895, %v3339
        %3341 = vmatmul.f32.gmra.mxu0 %v3082
        %v3342 = vpop.f32.mrf.mxu0
        %v3343 = vadd.f32 %v898, %v3342
        %3344 = vdwg.mxu0
        %3345 = vmatpush.msra.mxu0 0.0
        %3346 = vmatpush.msra.mxu0 0.0
        %3347 = vmatpush.msra.mxu0 0.0
        %3348 = vmatpush.msra.mxu0 0.0
        %3349 = vmatpush.msra.mxu0 0.0
        %3350 = vmatpush.msra.mxu0 0.0
        %3351 = vmatpush.msra.mxu0 0.0
        %3352 = vmatpush.msra.mxu0 0.0
        %3353 = vmatpush.msra.mxu0 0.0
        %3354 = vmatpush.msra.mxu0 0.0
        %3355 = vmatpush.msra.mxu0 0.0
        %3356 = vmatpush.msra.mxu0 0.0
        %3357 = vmatpush.msra.mxu0 %v3045
        %3358 = vmatpush.msra.mxu0 %v3013
        %3359 = vmatpush.msra.mxu0 %v2981
        %3360 = vmatpush.msra.mxu0 %v2949
        %3361 = vmatmul.f32.gmra.mxu0 %v3073
        %v3362 = vpop.f32.mrf.mxu0
        %v3363 = vadd.f32 %v930, %v3362
        %3364 = vmatmul.f32.gmra.mxu0 %v3076
        %v3365 = vpop.f32.mrf.mxu0
        %v3366 = vadd.f32 %v933, %v3365
        %3367 = vmatmul.f32.gmra.mxu0 %v3079
        %v3368 = vpop.f32.mrf.mxu0
        %v3369 = vadd.f32 %v936, %v3368
        %3370 = vmatmul.f32.gmra.mxu0 %v3082
        %v3371 = vpop.f32.mrf.mxu0
        %v3372 = vadd.f32 %v939, %v3371
        %3373 = vdwg.mxu0
        %3374 = vmatpush.msra.mxu0 0.0
        %3375 = vmatpush.msra.mxu0 0.0
        %3376 = vmatpush.msra.mxu0 0.0
        %3377 = vmatpush.msra.mxu0 0.0
        %3378 = vmatpush.msra.mxu0 0.0
        %3379 = vmatpush.msra.mxu0 0.0
        %3380 = vmatpush.msra.mxu0 0.0
        %3381 = vmatpush.msra.mxu0 0.0
        %3382 = vmatpush.msra.mxu0 0.0
        %3383 = vmatpush.msra.mxu0 0.0
        %3384 = vmatpush.msra.mxu0 0.0
        %3385 = vmatpush.msra.mxu0 0.0
        %3386 = vmatpush.msra.mxu0 %v3046
        %3387 = vmatpush.msra.mxu0 %v3014
        %3388 = vmatpush.msra.mxu0 %v2982
        %3389 = vmatpush.msra.mxu0 %v2950
        %3390 = vmatmul.f32.gmra.mxu0 %v3073
        %v3391 = vpop.f32.mrf.mxu0
        %v3392 = vadd.f32 %v971, %v3391
        %3393 = vmatmul.f32.gmra.mxu0 %v3076
        %v3394 = vpop.f32.mrf.mxu0
        %v3395 = vadd.f32 %v974, %v3394
        %3396 = vmatmul.f32.gmra.mxu0 %v3079
        %v3397 = vpop.f32.mrf.mxu0
        %v3398 = vadd.f32 %v977, %v3397
        %3399 = vmatmul.f32.gmra.mxu0 %v3082
        %v3400 = vpop.f32.mrf.mxu0
        %v3401 = vadd.f32 %v980, %v3400
        %3402 = vdwg.mxu0
        %3403 = vmatpush.msra.mxu0 0.0
        %3404 = vmatpush.msra.mxu0 0.0
        %3405 = vmatpush.msra.mxu0 0.0
        %3406 = vmatpush.msra.mxu0 0.0
        %3407 = vmatpush.msra.mxu0 0.0
        %3408 = vmatpush.msra.mxu0 0.0
        %3409 = vmatpush.msra.mxu0 0.0
        %3410 = vmatpush.msra.mxu0 0.0
        %3411 = vmatpush.msra.mxu0 0.0
        %3412 = vmatpush.msra.mxu0 0.0
        %3413 = vmatpush.msra.mxu0 0.0
        %3414 = vmatpush.msra.mxu0 0.0
        %3415 = vmatpush.msra.mxu0 %v3047
        %3416 = vmatpush.msra.mxu0 %v3015
        %3417 = vmatpush.msra.mxu0 %v2983
        %3418 = vmatpush.msra.mxu0 %v2951
        %3419 = vmatmul.f32.gmra.mxu0 %v3073
        %v3420 = vpop.f32.mrf.mxu0
        %v3421 = vadd.f32 %v1012, %v3420
        %3422 = vmatmul.f32.gmra.mxu0 %v3076
        %v3423 = vpop.f32.mrf.mxu0
        %v3424 = vadd.f32 %v1015, %v3423
        %3425 = vmatmul.f32.gmra.mxu0 %v3079
        %v3426 = vpop.f32.mrf.mxu0
        %v3427 = vadd.f32 %v1018, %v3426
        %3428 = vmatmul.f32.gmra.mxu0 %v3082
        %v3429 = vpop.f32.mrf.mxu0
        %v3430 = vadd.f32 %v1021, %v3429
        %3431 = vdwg.mxu0
        %3432 = vmatpush.msra.mxu0 0.0
        %3433 = vmatpush.msra.mxu0 0.0
        %3434 = vmatpush.msra.mxu0 0.0
        %3435 = vmatpush.msra.mxu0 0.0
        %3436 = vmatpush.msra.mxu0 0.0
        %3437 = vmatpush.msra.mxu0 0.0
        %3438 = vmatpush.msra.mxu0 0.0
        %3439 = vmatpush.msra.mxu0 0.0
        %3440 = vmatpush.msra.mxu0 0.0
        %3441 = vmatpush.msra.mxu0 0.0
        %3442 = vmatpush.msra.mxu0 0.0
        %3443 = vmatpush.msra.mxu0 0.0
        %3444 = vmatpush.msra.mxu0 %v3048
        %3445 = vmatpush.msra.mxu0 %v3016
        %3446 = vmatpush.msra.mxu0 %v2984
        %3447 = vmatpush.msra.mxu0 %v2952
        %3448 = vmatmul.f32.gmra.mxu0 %v3073
        %v3449 = vpop.f32.mrf.mxu0
        %v3450 = vadd.f32 %v1053, %v3449
        %3451 = vmatmul.f32.gmra.mxu0 %v3076
        %v3452 = vpop.f32.mrf.mxu0
        %v3453 = vadd.f32 %v1056, %v3452
        %3454 = vmatmul.f32.gmra.mxu0 %v3079
        %v3455 = vpop.f32.mrf.mxu0
        %v3456 = vadd.f32 %v1059, %v3455
        %3457 = vmatmul.f32.gmra.mxu0 %v3082
        %v3458 = vpop.f32.mrf.mxu0
        %v3459 = vadd.f32 %v1062, %v3458
        %3460 = vdwg.mxu0
        %3461 = vmatpush.msra.mxu0 0.0
        %3462 = vmatpush.msra.mxu0 0.0
        %3463 = vmatpush.msra.mxu0 0.0
        %3464 = vmatpush.msra.mxu0 0.0
        %3465 = vmatpush.msra.mxu0 0.0
        %3466 = vmatpush.msra.mxu0 0.0
        %3467 = vmatpush.msra.mxu0 0.0
        %3468 = vmatpush.msra.mxu0 0.0
        %3469 = vmatpush.msra.mxu0 0.0
        %3470 = vmatpush.msra.mxu0 0.0
        %3471 = vmatpush.msra.mxu0 0.0
        %3472 = vmatpush.msra.mxu0 0.0
        %3473 = vmatpush.msra.mxu0 %v3049
        %3474 = vmatpush.msra.mxu0 %v3017
        %3475 = vmatpush.msra.mxu0 %v2985
        %3476 = vmatpush.msra.mxu0 %v2953
        %3477 = vmatmul.f32.gmra.mxu0 %v3073
        %v3478 = vpop.f32.mrf.mxu0
        %v3479 = vadd.f32 %v1094, %v3478
        %3480 = vmatmul.f32.gmra.mxu0 %v3076
        %v3481 = vpop.f32.mrf.mxu0
        %v3482 = vadd.f32 %v1097, %v3481
        %3483 = vmatmul.f32.gmra.mxu0 %v3079
        %v3484 = vpop.f32.mrf.mxu0
        %v3485 = vadd.f32 %v1100, %v3484
        %3486 = vmatmul.f32.gmra.mxu0 %v3082
        %v3487 = vpop.f32.mrf.mxu0
        %v3488 = vadd.f32 %v1103, %v3487
        %3489 = vdwg.mxu0
        %3490 = vmatpush.msra.mxu0 0.0
        %3491 = vmatpush.msra.mxu0 0.0
        %3492 = vmatpush.msra.mxu0 0.0
        %3493 = vmatpush.msra.mxu0 0.0
        %3494 = vmatpush.msra.mxu0 0.0
        %3495 = vmatpush.msra.mxu0 0.0
        %3496 = vmatpush.msra.mxu0 0.0
        %3497 = vmatpush.msra.mxu0 0.0
        %3498 = vmatpush.msra.mxu0 0.0
        %3499 = vmatpush.msra.mxu0 0.0
        %3500 = vmatpush.msra.mxu0 0.0
        %3501 = vmatpush.msra.mxu0 0.0
        %3502 = vmatpush.msra.mxu0 %v3050
        %3503 = vmatpush.msra.mxu0 %v3018
        %3504 = vmatpush.msra.mxu0 %v2986
        %3505 = vmatpush.msra.mxu0 %v2954
        %3506 = vmatmul.f32.gmra.mxu0 %v3073
        %v3507 = vpop.f32.mrf.mxu0
        %v3508 = vadd.f32 %v1135, %v3507
        %3509 = vmatmul.f32.gmra.mxu0 %v3076
        %v3510 = vpop.f32.mrf.mxu0
        %v3511 = vadd.f32 %v1138, %v3510
        %3512 = vmatmul.f32.gmra.mxu0 %v3079
        %v3513 = vpop.f32.mrf.mxu0
        %v3514 = vadd.f32 %v1141, %v3513
        %3515 = vmatmul.f32.gmra.mxu0 %v3082
        %v3516 = vpop.f32.mrf.mxu0
        %v3517 = vadd.f32 %v1144, %v3516
        %3518 = vdwg.mxu0
        %3519 = vmatpush.msra.mxu0 0.0
        %3520 = vmatpush.msra.mxu0 0.0
        %3521 = vmatpush.msra.mxu0 0.0
        %3522 = vmatpush.msra.mxu0 0.0
        %3523 = vmatpush.msra.mxu0 0.0
        %3524 = vmatpush.msra.mxu0 0.0
        %3525 = vmatpush.msra.mxu0 0.0
        %3526 = vmatpush.msra.mxu0 0.0
        %3527 = vmatpush.msra.mxu0 0.0
        %3528 = vmatpush.msra.mxu0 0.0
        %3529 = vmatpush.msra.mxu0 0.0
        %3530 = vmatpush.msra.mxu0 0.0
        %3531 = vmatpush.msra.mxu0 %v3051
        %3532 = vmatpush.msra.mxu0 %v3019
        %3533 = vmatpush.msra.mxu0 %v2987
        %3534 = vmatpush.msra.mxu0 %v2955
        %3535 = vmatmul.f32.gmra.mxu0 %v3073
        %v3536 = vpop.f32.mrf.mxu0
        %v3537 = vadd.f32 %v1176, %v3536
        %3538 = vmatmul.f32.gmra.mxu0 %v3076
        %v3539 = vpop.f32.mrf.mxu0
        %v3540 = vadd.f32 %v1179, %v3539
        %3541 = vmatmul.f32.gmra.mxu0 %v3079
        %v3542 = vpop.f32.mrf.mxu0
        %v3543 = vadd.f32 %v1182, %v3542
        %3544 = vmatmul.f32.gmra.mxu0 %v3082
        %v3545 = vpop.f32.mrf.mxu0
        %v3546 = vadd.f32 %v1185, %v3545
        %3547 = vdwg.mxu0
        %3548 = vmatpush.msra.mxu0 0.0
        %3549 = vmatpush.msra.mxu0 0.0
        %3550 = vmatpush.msra.mxu0 0.0
        %3551 = vmatpush.msra.mxu0 0.0
        %3552 = vmatpush.msra.mxu0 0.0
        %3553 = vmatpush.msra.mxu0 0.0
        %3554 = vmatpush.msra.mxu0 0.0
        %3555 = vmatpush.msra.mxu0 0.0
        %3556 = vmatpush.msra.mxu0 0.0
        %3557 = vmatpush.msra.mxu0 0.0
        %3558 = vmatpush.msra.mxu0 0.0
        %3559 = vmatpush.msra.mxu0 0.0
        %3560 = vmatpush.msra.mxu0 %v3052
        %3561 = vmatpush.msra.mxu0 %v3020
        %3562 = vmatpush.msra.mxu0 %v2988
        %3563 = vmatpush.msra.mxu0 %v2956
        %3564 = vmatmul.f32.gmra.mxu0 %v3073
        %v3565 = vpop.f32.mrf.mxu0
        %v3566 = vadd.f32 %v1217, %v3565
        %3567 = vmatmul.f32.gmra.mxu0 %v3076
        %v3568 = vpop.f32.mrf.mxu0
        %v3569 = vadd.f32 %v1220, %v3568
        %3570 = vmatmul.f32.gmra.mxu0 %v3079
        %v3571 = vpop.f32.mrf.mxu0
        %v3572 = vadd.f32 %v1223, %v3571
        %3573 = vmatmul.f32.gmra.mxu0 %v3082
        %v3574 = vpop.f32.mrf.mxu0
        %v3575 = vadd.f32 %v1226, %v3574
        %3576 = vdwg.mxu0
        %3577 = vmatpush.msra.mxu0 0.0
        %3578 = vmatpush.msra.mxu0 0.0
        %3579 = vmatpush.msra.mxu0 0.0
        %3580 = vmatpush.msra.mxu0 0.0
        %3581 = vmatpush.msra.mxu0 0.0
        %3582 = vmatpush.msra.mxu0 0.0
        %3583 = vmatpush.msra.mxu0 0.0
        %3584 = vmatpush.msra.mxu0 0.0
        %3585 = vmatpush.msra.mxu0 0.0
        %3586 = vmatpush.msra.mxu0 0.0
        %3587 = vmatpush.msra.mxu0 0.0
        %3588 = vmatpush.msra.mxu0 0.0
        %3589 = vmatpush.msra.mxu0 %v3053
        %3590 = vmatpush.msra.mxu0 %v3021
        %3591 = vmatpush.msra.mxu0 %v2989
        %3592 = vmatpush.msra.mxu0 %v2957
        %3593 = vmatmul.f32.gmra.mxu0 %v3073
        %v3594 = vpop.f32.mrf.mxu0
        %v3595 = vadd.f32 %v1258, %v3594
        %3596 = vmatmul.f32.gmra.mxu0 %v3076
        %v3597 = vpop.f32.mrf.mxu0
        %v3598 = vadd.f32 %v1261, %v3597
        %3599 = vmatmul.f32.gmra.mxu0 %v3079
        %v3600 = vpop.f32.mrf.mxu0
        %v3601 = vadd.f32 %v1264, %v3600
        %3602 = vmatmul.f32.gmra.mxu0 %v3082
        %v3603 = vpop.f32.mrf.mxu0
        %v3604 = vadd.f32 %v1267, %v3603
        %3605 = vdwg.mxu0
        %3606 = vmatpush.msra.mxu0 0.0
        %3607 = vmatpush.msra.mxu0 0.0
        %3608 = vmatpush.msra.mxu0 0.0
        %3609 = vmatpush.msra.mxu0 0.0
        %3610 = vmatpush.msra.mxu0 0.0
        %3611 = vmatpush.msra.mxu0 0.0
        %3612 = vmatpush.msra.mxu0 0.0
        %3613 = vmatpush.msra.mxu0 0.0
        %3614 = vmatpush.msra.mxu0 0.0
        %3615 = vmatpush.msra.mxu0 0.0
        %3616 = vmatpush.msra.mxu0 0.0
        %3617 = vmatpush.msra.mxu0 0.0
        %3618 = vmatpush.msra.mxu0 %v3054
        %3619 = vmatpush.msra.mxu0 %v3022
        %3620 = vmatpush.msra.mxu0 %v2990
        %3621 = vmatpush.msra.mxu0 %v2958
        %3622 = vmatmul.f32.gmra.mxu0 %v3073
        %v3623 = vpop.f32.mrf.mxu0
        %v3624 = vadd.f32 %v1299, %v3623
        %3625 = vmatmul.f32.gmra.mxu0 %v3076
        %v3626 = vpop.f32.mrf.mxu0
        %v3627 = vadd.f32 %v1302, %v3626
        %3628 = vmatmul.f32.gmra.mxu0 %v3079
        %v3629 = vpop.f32.mrf.mxu0
        %v3630 = vadd.f32 %v1305, %v3629
        %3631 = vmatmul.f32.gmra.mxu0 %v3082
        %v3632 = vpop.f32.mrf.mxu0
        %v3633 = vadd.f32 %v1308, %v3632
        %3634 = vdwg.mxu0
        %3635 = vmatpush.msra.mxu0 0.0
        %3636 = vmatpush.msra.mxu0 0.0
        %3637 = vmatpush.msra.mxu0 0.0
        %3638 = vmatpush.msra.mxu0 0.0
        %3639 = vmatpush.msra.mxu0 0.0
        %3640 = vmatpush.msra.mxu0 0.0
        %3641 = vmatpush.msra.mxu0 0.0
        %3642 = vmatpush.msra.mxu0 0.0
        %3643 = vmatpush.msra.mxu0 0.0
        %3644 = vmatpush.msra.mxu0 0.0
        %3645 = vmatpush.msra.mxu0 0.0
        %3646 = vmatpush.msra.mxu0 0.0
        %3647 = vmatpush.msra.mxu0 %v3055
        %3648 = vmatpush.msra.mxu0 %v3023
        %3649 = vmatpush.msra.mxu0 %v2991
        %3650 = vmatpush.msra.mxu0 %v2959
        %3651 = vmatmul.f32.gmra.mxu0 %v3073
        %v3652 = vpop.f32.mrf.mxu0
        %v3653 = vadd.f32 %v1340, %v3652
        %3654 = vmatmul.f32.gmra.mxu0 %v3076
        %v3655 = vpop.f32.mrf.mxu0
        %v3656 = vadd.f32 %v1343, %v3655
        %3657 = vmatmul.f32.gmra.mxu0 %v3079
        %v3658 = vpop.f32.mrf.mxu0
        %v3659 = vadd.f32 %v1346, %v3658
        %3660 = vmatmul.f32.gmra.mxu0 %v3082
        %v3661 = vpop.f32.mrf.mxu0
        %v3662 = vadd.f32 %v1349, %v3661
        %3663 = vdwg.mxu0
        %3664 = vmatpush.msra.mxu0 0.0
        %3665 = vmatpush.msra.mxu0 0.0
        %3666 = vmatpush.msra.mxu0 0.0
        %3667 = vmatpush.msra.mxu0 0.0
        %3668 = vmatpush.msra.mxu0 0.0
        %3669 = vmatpush.msra.mxu0 0.0
        %3670 = vmatpush.msra.mxu0 0.0
        %3671 = vmatpush.msra.mxu0 0.0
        %3672 = vmatpush.msra.mxu0 0.0
        %3673 = vmatpush.msra.mxu0 0.0
        %3674 = vmatpush.msra.mxu0 0.0
        %3675 = vmatpush.msra.mxu0 0.0
        %3676 = vmatpush.msra.mxu0 %v3056
        %3677 = vmatpush.msra.mxu0 %v3024
        %3678 = vmatpush.msra.mxu0 %v2992
        %3679 = vmatpush.msra.mxu0 %v2960
        %3680 = vmatmul.f32.gmra.mxu0 %v3073
        %v3681 = vpop.f32.mrf.mxu0
        %v3682 = vadd.f32 %v1381, %v3681
        %3683 = vmatmul.f32.gmra.mxu0 %v3076
        %v3684 = vpop.f32.mrf.mxu0
        %v3685 = vadd.f32 %v1384, %v3684
        %3686 = vmatmul.f32.gmra.mxu0 %v3079
        %v3687 = vpop.f32.mrf.mxu0
        %v3688 = vadd.f32 %v1387, %v3687
        %3689 = vmatmul.f32.gmra.mxu0 %v3082
        %v3690 = vpop.f32.mrf.mxu0
        %v3691 = vadd.f32 %v1390, %v3690
        %3692 = vdwg.mxu0
        %3693 = vmatpush.msra.mxu0 0.0
        %3694 = vmatpush.msra.mxu0 0.0
        %3695 = vmatpush.msra.mxu0 0.0
        %3696 = vmatpush.msra.mxu0 0.0
        %3697 = vmatpush.msra.mxu0 0.0
        %3698 = vmatpush.msra.mxu0 0.0
        %3699 = vmatpush.msra.mxu0 0.0
        %3700 = vmatpush.msra.mxu0 0.0
        %3701 = vmatpush.msra.mxu0 0.0
        %3702 = vmatpush.msra.mxu0 0.0
        %3703 = vmatpush.msra.mxu0 0.0
        %3704 = vmatpush.msra.mxu0 0.0
        %3705 = vmatpush.msra.mxu0 %v3057
        %3706 = vmatpush.msra.mxu0 %v3025
        %3707 = vmatpush.msra.mxu0 %v2993
        %3708 = vmatpush.msra.mxu0 %v2961
        %3709 = vmatmul.f32.gmra.mxu0 %v3073
        %v3710 = vpop.f32.mrf.mxu0
        %v3711 = vadd.f32 %v1422, %v3710
        %3712 = vmatmul.f32.gmra.mxu0 %v3076
        %v3713 = vpop.f32.mrf.mxu0
        %v3714 = vadd.f32 %v1425, %v3713
        %3715 = vmatmul.f32.gmra.mxu0 %v3079
        %v3716 = vpop.f32.mrf.mxu0
        %v3717 = vadd.f32 %v1428, %v3716
        %3718 = vmatmul.f32.gmra.mxu0 %v3082
        %v3719 = vpop.f32.mrf.mxu0
        %v3720 = vadd.f32 %v1431, %v3719
        %3721 = vdwg.mxu0
        %3722 = vmatpush.msra.mxu0 0.0
        %3723 = vmatpush.msra.mxu0 0.0
        %3724 = vmatpush.msra.mxu0 0.0
        %3725 = vmatpush.msra.mxu0 0.0
        %3726 = vmatpush.msra.mxu0 0.0
        %3727 = vmatpush.msra.mxu0 0.0
        %3728 = vmatpush.msra.mxu0 0.0
        %3729 = vmatpush.msra.mxu0 0.0
        %3730 = vmatpush.msra.mxu0 0.0
        %3731 = vmatpush.msra.mxu0 0.0
        %3732 = vmatpush.msra.mxu0 0.0
        %3733 = vmatpush.msra.mxu0 0.0
        %3734 = vmatpush.msra.mxu0 %v3058
        %3735 = vmatpush.msra.mxu0 %v3026
        %3736 = vmatpush.msra.mxu0 %v2994
        %3737 = vmatpush.msra.mxu0 %v2962
        %3738 = vmatmul.f32.gmra.mxu0 %v3073
        %v3739 = vpop.f32.mrf.mxu0
        %v3740 = vadd.f32 %v1463, %v3739
        %3741 = vmatmul.f32.gmra.mxu0 %v3076
        %v3742 = vpop.f32.mrf.mxu0
        %v3743 = vadd.f32 %v1466, %v3742
        %3744 = vmatmul.f32.gmra.mxu0 %v3079
        %v3745 = vpop.f32.mrf.mxu0
        %v3746 = vadd.f32 %v1469, %v3745
        %3747 = vmatmul.f32.gmra.mxu0 %v3082
        %v3748 = vpop.f32.mrf.mxu0
        %v3749 = vadd.f32 %v1472, %v3748
        %3750 = vdwg.mxu0
        %3751 = vmatpush.msra.mxu0 0.0
        %3752 = vmatpush.msra.mxu0 0.0
        %3753 = vmatpush.msra.mxu0 0.0
        %3754 = vmatpush.msra.mxu0 0.0
        %3755 = vmatpush.msra.mxu0 0.0
        %3756 = vmatpush.msra.mxu0 0.0
        %3757 = vmatpush.msra.mxu0 0.0
        %3758 = vmatpush.msra.mxu0 0.0
        %3759 = vmatpush.msra.mxu0 0.0
        %3760 = vmatpush.msra.mxu0 0.0
        %3761 = vmatpush.msra.mxu0 0.0
        %3762 = vmatpush.msra.mxu0 0.0
        %3763 = vmatpush.msra.mxu0 %v3059
        %3764 = vmatpush.msra.mxu0 %v3027
        %3765 = vmatpush.msra.mxu0 %v2995
        %3766 = vmatpush.msra.mxu0 %v2963
        %3767 = vmatmul.f32.gmra.mxu0 %v3073
        %v3768 = vpop.f32.mrf.mxu0
        %v3769 = vadd.f32 %v1504, %v3768
        %3770 = vmatmul.f32.gmra.mxu0 %v3076
        %v3771 = vpop.f32.mrf.mxu0
        %v3772 = vadd.f32 %v1507, %v3771
        %3773 = vmatmul.f32.gmra.mxu0 %v3079
        %v3774 = vpop.f32.mrf.mxu0
        %v3775 = vadd.f32 %v1510, %v3774
        %3776 = vmatmul.f32.gmra.mxu0 %v3082
        %v3777 = vpop.f32.mrf.mxu0
        %v3778 = vadd.f32 %v1513, %v3777
        %3779 = vdwg.mxu0
        %3780 = vmatpush.msra.mxu0 0.0
        %3781 = vmatpush.msra.mxu0 0.0
        %3782 = vmatpush.msra.mxu0 0.0
        %3783 = vmatpush.msra.mxu0 0.0
        %3784 = vmatpush.msra.mxu0 0.0
        %3785 = vmatpush.msra.mxu0 0.0
        %3786 = vmatpush.msra.mxu0 0.0
        %3787 = vmatpush.msra.mxu0 0.0
        %3788 = vmatpush.msra.mxu0 0.0
        %3789 = vmatpush.msra.mxu0 0.0
        %3790 = vmatpush.msra.mxu0 0.0
        %3791 = vmatpush.msra.mxu0 0.0
        %3792 = vmatpush.msra.mxu0 %v3060
        %3793 = vmatpush.msra.mxu0 %v3028
        %3794 = vmatpush.msra.mxu0 %v2996
        %3795 = vmatpush.msra.mxu0 %v2964
        %3796 = vmatmul.f32.gmra.mxu0 %v3073
        %v3797 = vpop.f32.mrf.mxu0
        %v3798 = vadd.f32 %v1545, %v3797
        %3799 = vmatmul.f32.gmra.mxu0 %v3076
        %v3800 = vpop.f32.mrf.mxu0
        %v3801 = vadd.f32 %v1548, %v3800
        %3802 = vmatmul.f32.gmra.mxu0 %v3079
        %v3803 = vpop.f32.mrf.mxu0
        %v3804 = vadd.f32 %v1551, %v3803
        %3805 = vmatmul.f32.gmra.mxu0 %v3082
        %v3806 = vpop.f32.mrf.mxu0
        %v3807 = vadd.f32 %v1554, %v3806
        %3808 = vdwg.mxu0
        %3809 = vmatpush.msra.mxu0 0.0
        %3810 = vmatpush.msra.mxu0 0.0
        %3811 = vmatpush.msra.mxu0 0.0
        %3812 = vmatpush.msra.mxu0 0.0
        %3813 = vmatpush.msra.mxu0 0.0
        %3814 = vmatpush.msra.mxu0 0.0
        %3815 = vmatpush.msra.mxu0 0.0
        %3816 = vmatpush.msra.mxu0 0.0
        %3817 = vmatpush.msra.mxu0 0.0
        %3818 = vmatpush.msra.mxu0 0.0
        %3819 = vmatpush.msra.mxu0 0.0
        %3820 = vmatpush.msra.mxu0 0.0
        %3821 = vmatpush.msra.mxu0 %v3061
        %3822 = vmatpush.msra.mxu0 %v3029
        %3823 = vmatpush.msra.mxu0 %v2997
        %3824 = vmatpush.msra.mxu0 %v2965
        %3825 = vmatmul.f32.gmra.mxu0 %v3073
        %v3826 = vpop.f32.mrf.mxu0
        %v3827 = vadd.f32 %v1586, %v3826
        %3828 = vmatmul.f32.gmra.mxu0 %v3076
        %v3829 = vpop.f32.mrf.mxu0
        %v3830 = vadd.f32 %v1589, %v3829
        %3831 = vmatmul.f32.gmra.mxu0 %v3079
        %v3832 = vpop.f32.mrf.mxu0
        %v3833 = vadd.f32 %v1592, %v3832
        %3834 = vmatmul.f32.gmra.mxu0 %v3082
        %v3835 = vpop.f32.mrf.mxu0
        %v3836 = vadd.f32 %v1595, %v3835
        %3837 = vdwg.mxu0
        %3838 = vmatpush.msra.mxu0 0.0
        %3839 = vmatpush.msra.mxu0 0.0
        %3840 = vmatpush.msra.mxu0 0.0
        %3841 = vmatpush.msra.mxu0 0.0
        %3842 = vmatpush.msra.mxu0 0.0
        %3843 = vmatpush.msra.mxu0 0.0
        %3844 = vmatpush.msra.mxu0 0.0
        %3845 = vmatpush.msra.mxu0 0.0
        %3846 = vmatpush.msra.mxu0 0.0
        %3847 = vmatpush.msra.mxu0 0.0
        %3848 = vmatpush.msra.mxu0 0.0
        %3849 = vmatpush.msra.mxu0 0.0
        %3850 = vmatpush.msra.mxu0 %v3062
        %3851 = vmatpush.msra.mxu0 %v3030
        %3852 = vmatpush.msra.mxu0 %v2998
        %3853 = vmatpush.msra.mxu0 %v2966
        %3854 = vmatmul.f32.gmra.mxu0 %v3073
        %v3855 = vpop.f32.mrf.mxu0
        %v3856 = vadd.f32 %v1627, %v3855
        %3857 = vmatmul.f32.gmra.mxu0 %v3076
        %v3858 = vpop.f32.mrf.mxu0
        %v3859 = vadd.f32 %v1630, %v3858
        %3860 = vmatmul.f32.gmra.mxu0 %v3079
        %v3861 = vpop.f32.mrf.mxu0
        %v3862 = vadd.f32 %v1633, %v3861
        %3863 = vmatmul.f32.gmra.mxu0 %v3082
        %v3864 = vpop.f32.mrf.mxu0
        %v3865 = vadd.f32 %v1636, %v3864
        %3866 = vdwg.mxu0
        %3867 = vmatpush.msra.mxu0 0.0
        %3868 = vmatpush.msra.mxu0 0.0
        %3869 = vmatpush.msra.mxu0 0.0
        %3870 = vmatpush.msra.mxu0 0.0
        %3871 = vmatpush.msra.mxu0 0.0
        %3872 = vmatpush.msra.mxu0 0.0
        %3873 = vmatpush.msra.mxu0 0.0
        %3874 = vmatpush.msra.mxu0 0.0
        %3875 = vmatpush.msra.mxu0 0.0
        %3876 = vmatpush.msra.mxu0 0.0
        %3877 = vmatpush.msra.mxu0 0.0
        %3878 = vmatpush.msra.mxu0 0.0
        %3879 = vmatpush.msra.mxu0 %v3063
        %3880 = vmatpush.msra.mxu0 %v3031
        %3881 = vmatpush.msra.mxu0 %v2999
        %3882 = vmatpush.msra.mxu0 %v2967
        %3883 = vmatmul.f32.gmra.mxu0 %v3073
        %v3884 = vpop.f32.mrf.mxu0
        %v3885 = vadd.f32 %v1668, %v3884
        %3886 = vmatmul.f32.gmra.mxu0 %v3076
        %v3887 = vpop.f32.mrf.mxu0
        %v3888 = vadd.f32 %v1671, %v3887
        %3889 = vmatmul.f32.gmra.mxu0 %v3079
        %v3890 = vpop.f32.mrf.mxu0
        %v3891 = vadd.f32 %v1674, %v3890
        %3892 = vmatmul.f32.gmra.mxu0 %v3082
        %v3893 = vpop.f32.mrf.mxu0
        %v3894 = vadd.f32 %v1677, %v3893
        %3895 = vdwg.mxu0
        %3896 = vmatpush.msra.mxu0 0.0
        %3897 = vmatpush.msra.mxu0 0.0
        %3898 = vmatpush.msra.mxu0 0.0
        %3899 = vmatpush.msra.mxu0 0.0
        %3900 = vmatpush.msra.mxu0 0.0
        %3901 = vmatpush.msra.mxu0 0.0
        %3902 = vmatpush.msra.mxu0 0.0
        %3903 = vmatpush.msra.mxu0 0.0
        %3904 = vmatpush.msra.mxu0 0.0
        %3905 = vmatpush.msra.mxu0 0.0
        %3906 = vmatpush.msra.mxu0 0.0
        %3907 = vmatpush.msra.mxu0 0.0
        %3908 = vmatpush.msra.mxu0 %v3064
        %3909 = vmatpush.msra.mxu0 %v3032
        %3910 = vmatpush.msra.mxu0 %v3000
        %3911 = vmatpush.msra.mxu0 %v2968
        %3912 = vmatmul.f32.gmra.mxu0 %v3073
        %v3913 = vpop.f32.mrf.mxu0
        %v3914 = vadd.f32 %v1709, %v3913
        %3915 = vmatmul.f32.gmra.mxu0 %v3076
        %v3916 = vpop.f32.mrf.mxu0
        %v3917 = vadd.f32 %v1712, %v3916
        %3918 = vmatmul.f32.gmra.mxu0 %v3079
        %v3919 = vpop.f32.mrf.mxu0
        %v3920 = vadd.f32 %v1715, %v3919
        %3921 = vmatmul.f32.gmra.mxu0 %v3082
        %v3922 = vpop.f32.mrf.mxu0
        %v3923 = vadd.f32 %v1718, %v3922
        %3924 = vdwg.mxu0
        %3925 = vmatpush.msra.mxu0 0.0
        %3926 = vmatpush.msra.mxu0 0.0
        %3927 = vmatpush.msra.mxu0 0.0
        %3928 = vmatpush.msra.mxu0 0.0
        %3929 = vmatpush.msra.mxu0 0.0
        %3930 = vmatpush.msra.mxu0 0.0
        %3931 = vmatpush.msra.mxu0 0.0
        %3932 = vmatpush.msra.mxu0 0.0
        %3933 = vmatpush.msra.mxu0 0.0
        %3934 = vmatpush.msra.mxu0 0.0
        %3935 = vmatpush.msra.mxu0 0.0
        %3936 = vmatpush.msra.mxu0 0.0
        %3937 = vmatpush.msra.mxu0 %v3065
        %3938 = vmatpush.msra.mxu0 %v3033
        %3939 = vmatpush.msra.mxu0 %v3001
        %3940 = vmatpush.msra.mxu0 %v2969
        %3941 = vmatmul.f32.gmra.mxu0 %v3073
        %v3942 = vpop.f32.mrf.mxu0
        %v3943 = vadd.f32 %v1750, %v3942
        %3944 = vmatmul.f32.gmra.mxu0 %v3076
        %v3945 = vpop.f32.mrf.mxu0
        %v3946 = vadd.f32 %v1753, %v3945
        %3947 = vmatmul.f32.gmra.mxu0 %v3079
        %v3948 = vpop.f32.mrf.mxu0
        %v3949 = vadd.f32 %v1756, %v3948
        %3950 = vmatmul.f32.gmra.mxu0 %v3082
        %v3951 = vpop.f32.mrf.mxu0
        %v3952 = vadd.f32 %v1759, %v3951
        %3953 = vdwg.mxu0
        %3954 = vmatpush.msra.mxu0 0.0
        %3955 = vmatpush.msra.mxu0 0.0
        %3956 = vmatpush.msra.mxu0 0.0
        %3957 = vmatpush.msra.mxu0 0.0
        %3958 = vmatpush.msra.mxu0 0.0
        %3959 = vmatpush.msra.mxu0 0.0
        %3960 = vmatpush.msra.mxu0 0.0
        %3961 = vmatpush.msra.mxu0 0.0
        %3962 = vmatpush.msra.mxu0 0.0
        %3963 = vmatpush.msra.mxu0 0.0
        %3964 = vmatpush.msra.mxu0 0.0
        %3965 = vmatpush.msra.mxu0 0.0
        %3966 = vmatpush.msra.mxu0 %v3066
        %3967 = vmatpush.msra.mxu0 %v3034
        %3968 = vmatpush.msra.mxu0 %v3002
        %3969 = vmatpush.msra.mxu0 %v2970
        %3970 = vmatmul.f32.gmra.mxu0 %v3073
        %v3971 = vpop.f32.mrf.mxu0
        %v3972 = vadd.f32 %v1791, %v3971
        %3973 = vmatmul.f32.gmra.mxu0 %v3076
        %v3974 = vpop.f32.mrf.mxu0
        %v3975 = vadd.f32 %v1794, %v3974
        %3976 = vmatmul.f32.gmra.mxu0 %v3079
        %v3977 = vpop.f32.mrf.mxu0
        %v3978 = vadd.f32 %v1797, %v3977
        %3979 = vmatmul.f32.gmra.mxu0 %v3082
        %v3980 = vpop.f32.mrf.mxu0
        %v3981 = vadd.f32 %v1800, %v3980
        %3982 = vdwg.mxu0
        %3983 = vmatpush.msra.mxu0 0.0
        %3984 = vmatpush.msra.mxu0 0.0
        %3985 = vmatpush.msra.mxu0 0.0
        %3986 = vmatpush.msra.mxu0 0.0
        %3987 = vmatpush.msra.mxu0 0.0
        %3988 = vmatpush.msra.mxu0 0.0
        %3989 = vmatpush.msra.mxu0 0.0
        %3990 = vmatpush.msra.mxu0 0.0
        %3991 = vmatpush.msra.mxu0 0.0
        %3992 = vmatpush.msra.mxu0 0.0
        %3993 = vmatpush.msra.mxu0 0.0
        %3994 = vmatpush.msra.mxu0 0.0
        %3995 = vmatpush.msra.mxu0 %v3067
        %3996 = vmatpush.msra.mxu0 %v3035
        %3997 = vmatpush.msra.mxu0 %v3003
        %3998 = vmatpush.msra.mxu0 %v2971
        %3999 = vmatmul.f32.gmra.mxu0 %v3073
        %v4000 = vpop.f32.mrf.mxu0
        %v4001 = vadd.f32 %v1832, %v4000
        %4002 = vmatmul.f32.gmra.mxu0 %v3076
        %v4003 = vpop.f32.mrf.mxu0
        %v4004 = vadd.f32 %v1835, %v4003
        %4005 = vmatmul.f32.gmra.mxu0 %v3079
        %v4006 = vpop.f32.mrf.mxu0
        %v4007 = vadd.f32 %v1838, %v4006
        %4008 = vmatmul.f32.gmra.mxu0 %v3082
        %v4009 = vpop.f32.mrf.mxu0
        %v4010 = vadd.f32 %v1841, %v4009
        %4011 = vdwg.mxu0
        %v4012 = vmax.f32 %v3102, 0.0
        %v4013 = vmax.f32 %v3131, 0.0
        %v4014 = vmax.f32 %v3160, 0.0
        %v4015 = vmax.f32 %v3189, 0.0
        %v4016 = vmax.f32 %v3218, 0.0
        %v4017 = vmax.f32 %v3247, 0.0
        %v4018 = vmax.f32 %v3276, 0.0
        %v4019 = vmax.f32 %v3305, 0.0
        %v4020 = vmax.f32 %v3334, 0.0
        %v4021 = vmax.f32 %v3363, 0.0
        %v4022 = vmax.f32 %v3392, 0.0
        %v4023 = vmax.f32 %v3421, 0.0
        %v4024 = vmax.f32 %v3450, 0.0
        %v4025 = vmax.f32 %v3479, 0.0
        %v4026 = vmax.f32 %v3508, 0.0
        %v4027 = vmax.f32 %v3537, 0.0
        %v4028 = vmax.f32 %v3566, 0.0
        %v4029 = vmax.f32 %v3595, 0.0
        %v4030 = vmax.f32 %v3624, 0.0
        %v4031 = vmax.f32 %v3653, 0.0
        %v4032 = vmax.f32 %v3682, 0.0
        %v4033 = vmax.f32 %v3711, 0.0
        %v4034 = vmax.f32 %v3740, 0.0
        %v4035 = vmax.f32 %v3769, 0.0
        %v4036 = vmax.f32 %v3798, 0.0
        %v4037 = vmax.f32 %v3827, 0.0
        %v4038 = vmax.f32 %v3856, 0.0
        %v4039 = vmax.f32 %v3885, 0.0
        %v4040 = vmax.f32 %v3914, 0.0
        %v4041 = vmax.f32 %v3943, 0.0
        %v4042 = vmax.f32 %v3972, 0.0
        %v4043 = vmax.f32 %v4001, 0.0
        %v4044 = vmax.f32 %v3105, 0.0
        %v4045 = vmax.f32 %v3134, 0.0
        %v4046 = vmax.f32 %v3163, 0.0
        %v4047 = vmax.f32 %v3192, 0.0
        %v4048 = vmax.f32 %v3221, 0.0
        %v4049 = vmax.f32 %v3250, 0.0
        %v4050 = vmax.f32 %v3279, 0.0
        %v4051 = vmax.f32 %v3308, 0.0
        %v4052 = vmax.f32 %v3337, 0.0
        %v4053 = vmax.f32 %v3366, 0.0
        %v4054 = vmax.f32 %v3395, 0.0
        %v4055 = vmax.f32 %v3424, 0.0
        %v4056 = vmax.f32 %v3453, 0.0
        %v4057 = vmax.f32 %v3482, 0.0
        %v4058 = vmax.f32 %v3511, 0.0
        %v4059 = vmax.f32 %v3540, 0.0
        %v4060 = vmax.f32 %v3569, 0.0
        %v4061 = vmax.f32 %v3598, 0.0
        %v4062 = vmax.f32 %v3627, 0.0
        %v4063 = vmax.f32 %v3656, 0.0
        %v4064 = vmax.f32 %v3685, 0.0
        %v4065 = vmax.f32 %v3714, 0.0
        %v4066 = vmax.f32 %v3743, 0.0
        %v4067 = vmax.f32 %v3772, 0.0
        %v4068 = vmax.f32 %v3801, 0.0
        %v4069 = vmax.f32 %v3830, 0.0
        %v4070 = vmax.f32 %v3859, 0.0
        %v4071 = vmax.f32 %v3888, 0.0
        %v4072 = vmax.f32 %v3917, 0.0
        %v4073 = vmax.f32 %v3946, 0.0
        %v4074 = vmax.f32 %v3975, 0.0
        %v4075 = vmax.f32 %v4004, 0.0
        %v4076 = vmax.f32 %v3108, 0.0
        %v4077 = vmax.f32 %v3137, 0.0
        %v4078 = vmax.f32 %v3166, 0.0
        %v4079 = vmax.f32 %v3195, 0.0
        %v4080 = vmax.f32 %v3224, 0.0
        %v4081 = vmax.f32 %v3253, 0.0
        %v4082 = vmax.f32 %v3282, 0.0
        %v4083 = vmax.f32 %v3311, 0.0
        %v4084 = vmax.f32 %v3340, 0.0
        %v4085 = vmax.f32 %v3369, 0.0
        %v4086 = vmax.f32 %v3398, 0.0
        %v4087 = vmax.f32 %v3427, 0.0
        %v4088 = vmax.f32 %v3456, 0.0
        %v4089 = vmax.f32 %v3485, 0.0
        %v4090 = vmax.f32 %v3514, 0.0
        %v4091 = vmax.f32 %v3543, 0.0
        %v4092 = vmax.f32 %v3572, 0.0
        %v4093 = vmax.f32 %v3601, 0.0
        %v4094 = vmax.f32 %v3630, 0.0
        %v4095 = vmax.f32 %v3659, 0.0
        %v4096 = vmax.f32 %v3688, 0.0
        %v4097 = vmax.f32 %v3717, 0.0
        %v4098 = vmax.f32 %v3746, 0.0
        %v4099 = vmax.f32 %v3775, 0.0
        %v4100 = vmax.f32 %v3804, 0.0
        %v4101 = vmax.f32 %v3833, 0.0
        %v4102 = vmax.f32 %v3862, 0.0
        %v4103 = vmax.f32 %v3891, 0.0
        %v4104 = vmax.f32 %v3920, 0.0
        %v4105 = vmax.f32 %v3949, 0.0
        %v4106 = vmax.f32 %v3978, 0.0
        %v4107 = vmax.f32 %v4007, 0.0
        %v4108 = vmax.f32 %v3111, 0.0
        %v4109 = vmax.f32 %v3140, 0.0
        %v4110 = vmax.f32 %v3169, 0.0
        %v4111 = vmax.f32 %v3198, 0.0
        %v4112 = vmax.f32 %v3227, 0.0
        %v4113 = vmax.f32 %v3256, 0.0
        %v4114 = vmax.f32 %v3285, 0.0
        %v4115 = vmax.f32 %v3314, 0.0
        %v4116 = vmax.f32 %v3343, 0.0
        %v4117 = vmax.f32 %v3372, 0.0
        %v4118 = vmax.f32 %v3401, 0.0
        %v4119 = vmax.f32 %v3430, 0.0
        %v4120 = vmax.f32 %v3459, 0.0
        %v4121 = vmax.f32 %v3488, 0.0
        %v4122 = vmax.f32 %v3517, 0.0
        %v4123 = vmax.f32 %v3546, 0.0
        %v4124 = vmax.f32 %v3575, 0.0
        %v4125 = vmax.f32 %v3604, 0.0
        %v4126 = vmax.f32 %v3633, 0.0
        %v4127 = vmax.f32 %v3662, 0.0
        %v4128 = vmax.f32 %v3691, 0.0
        %v4129 = vmax.f32 %v3720, 0.0
        %v4130 = vmax.f32 %v3749, 0.0
        %v4131 = vmax.f32 %v3778, 0.0
        %v4132 = vmax.f32 %v3807, 0.0
        %v4133 = vmax.f32 %v3836, 0.0
        %v4134 = vmax.f32 %v3865, 0.0
        %v4135 = vmax.f32 %v3894, 0.0
        %v4136 = vmax.f32 %v3923, 0.0
        %v4137 = vmax.f32 %v3952, 0.0
        %v4138 = vmax.f32 %v3981, 0.0
        %v4139 = vmax.f32 %v4010, 0.0
        %v4140 = vld [vmem:[%s7] sm:$0xff]
        %v4141 = vld [vmem:[%s8] sm:$0xff]
        %4143 = vset.pattern.permute.xlu0 0
        %4144 = vperm.xlu0 %4143, %v4141
        %v4145 = vpop.permute.xlu0 %4144
        %v4148 = vsel %vm1999, %v4140, 0
        %4150 = vmatpush.msra.mxu0 0.0
        %4151 = vmatpush.msra.mxu0 0.0
        %4152 = vmatpush.msra.mxu0 0.0
        %4153 = vmatpush.msra.mxu0 0.0
        %4154 = vmatpush.msra.mxu0 0.0
        %4155 = vmatpush.msra.mxu0 0.0
        %4156 = vmatpush.msra.mxu0 0.0
        %4157 = vmatpush.msra.mxu0 0.0
        %4158 = vmatpush.msra.mxu0 0.0
        %4159 = vmatpush.msra.mxu0 0.0
        %4160 = vmatpush.msra.mxu0 0.0
        %4161 = vmatpush.msra.mxu0 0.0
        %4162 = vmatpush.msra.mxu0 %v4108
        %4163 = vmatpush.msra.mxu0 %v4076
        %4164 = vmatpush.msra.mxu0 %v4044
        %4165 = vmatpush.msra.mxu0 %v4012
        %4166 = vmatmul.f32.gmra.mxu0 %v4148
        %v4167 = vpop.f32.mrf.mxu0
        %v4168 = vadd.f32 %v4145, %v4167
        %4169 = vdwg.mxu0
        %4170 = vmatpush.msra.mxu0 0.0
        %4171 = vmatpush.msra.mxu0 0.0
        %4172 = vmatpush.msra.mxu0 0.0
        %4173 = vmatpush.msra.mxu0 0.0
        %4174 = vmatpush.msra.mxu0 0.0
        %4175 = vmatpush.msra.mxu0 0.0
        %4176 = vmatpush.msra.mxu0 0.0
        %4177 = vmatpush.msra.mxu0 0.0
        %4178 = vmatpush.msra.mxu0 0.0
        %4179 = vmatpush.msra.mxu0 0.0
        %4180 = vmatpush.msra.mxu0 0.0
        %4181 = vmatpush.msra.mxu0 0.0
        %4182 = vmatpush.msra.mxu0 %v4109
        %4183 = vmatpush.msra.mxu0 %v4077
        %4184 = vmatpush.msra.mxu0 %v4045
        %4185 = vmatpush.msra.mxu0 %v4013
        %4186 = vmatmul.f32.gmra.mxu0 %v4148
        %v4187 = vpop.f32.mrf.mxu0
        %v4188 = vadd.f32 %v4145, %v4187
        %4189 = vdwg.mxu0
        %4190 = vmatpush.msra.mxu0 0.0
        %4191 = vmatpush.msra.mxu0 0.0
        %4192 = vmatpush.msra.mxu0 0.0
        %4193 = vmatpush.msra.mxu0 0.0
        %4194 = vmatpush.msra.mxu0 0.0
        %4195 = vmatpush.msra.mxu0 0.0
        %4196 = vmatpush.msra.mxu0 0.0
        %4197 = vmatpush.msra.mxu0 0.0
        %4198 = vmatpush.msra.mxu0 0.0
        %4199 = vmatpush.msra.mxu0 0.0
        %4200 = vmatpush.msra.mxu0 0.0
        %4201 = vmatpush.msra.mxu0 0.0
        %4202 = vmatpush.msra.mxu0 %v4110
        %4203 = vmatpush.msra.mxu0 %v4078
        %4204 = vmatpush.msra.mxu0 %v4046
        %4205 = vmatpush.msra.mxu0 %v4014
        %4206 = vmatmul.f32.gmra.mxu0 %v4148
        %v4207 = vpop.f32.mrf.mxu0
        %v4208 = vadd.f32 %v4145, %v4207
        %4209 = vdwg.mxu0
        %4210 = vmatpush.msra.mxu0 0.0
        %4211 = vmatpush.msra.mxu0 0.0
        %4212 = vmatpush.msra.mxu0 0.0
        %4213 = vmatpush.msra.mxu0 0.0
        %4214 = vmatpush.msra.mxu0 0.0
        %4215 = vmatpush.msra.mxu0 0.0
        %4216 = vmatpush.msra.mxu0 0.0
        %4217 = vmatpush.msra.mxu0 0.0
        %4218 = vmatpush.msra.mxu0 0.0
        %4219 = vmatpush.msra.mxu0 0.0
        %4220 = vmatpush.msra.mxu0 0.0
        %4221 = vmatpush.msra.mxu0 0.0
        %4222 = vmatpush.msra.mxu0 %v4111
        %4223 = vmatpush.msra.mxu0 %v4079
        %4224 = vmatpush.msra.mxu0 %v4047
        %4225 = vmatpush.msra.mxu0 %v4015
        %4226 = vmatmul.f32.gmra.mxu0 %v4148
        %v4227 = vpop.f32.mrf.mxu0
        %v4228 = vadd.f32 %v4145, %v4227
        %4229 = vdwg.mxu0
        %4230 = vmatpush.msra.mxu0 0.0
        %4231 = vmatpush.msra.mxu0 0.0
        %4232 = vmatpush.msra.mxu0 0.0
        %4233 = vmatpush.msra.mxu0 0.0
        %4234 = vmatpush.msra.mxu0 0.0
        %4235 = vmatpush.msra.mxu0 0.0
        %4236 = vmatpush.msra.mxu0 0.0
        %4237 = vmatpush.msra.mxu0 0.0
        %4238 = vmatpush.msra.mxu0 0.0
        %4239 = vmatpush.msra.mxu0 0.0
        %4240 = vmatpush.msra.mxu0 0.0
        %4241 = vmatpush.msra.mxu0 0.0
        %4242 = vmatpush.msra.mxu0 %v4112
        %4243 = vmatpush.msra.mxu0 %v4080
        %4244 = vmatpush.msra.mxu0 %v4048
        %4245 = vmatpush.msra.mxu0 %v4016
        %4246 = vmatmul.f32.gmra.mxu0 %v4148
        %v4247 = vpop.f32.mrf.mxu0
        %v4248 = vadd.f32 %v4145, %v4247
        %4249 = vdwg.mxu0
        %4250 = vmatpush.msra.mxu0 0.0
        %4251 = vmatpush.msra.mxu0 0.0
        %4252 = vmatpush.msra.mxu0 0.0
        %4253 = vmatpush.msra.mxu0 0.0
        %4254 = vmatpush.msra.mxu0 0.0
        %4255 = vmatpush.msra.mxu0 0.0
        %4256 = vmatpush.msra.mxu0 0.0
        %4257 = vmatpush.msra.mxu0 0.0
        %4258 = vmatpush.msra.mxu0 0.0
        %4259 = vmatpush.msra.mxu0 0.0
        %4260 = vmatpush.msra.mxu0 0.0
        %4261 = vmatpush.msra.mxu0 0.0
        %4262 = vmatpush.msra.mxu0 %v4113
        %4263 = vmatpush.msra.mxu0 %v4081
        %4264 = vmatpush.msra.mxu0 %v4049
        %4265 = vmatpush.msra.mxu0 %v4017
        %4266 = vmatmul.f32.gmra.mxu0 %v4148
        %v4267 = vpop.f32.mrf.mxu0
        %v4268 = vadd.f32 %v4145, %v4267
        %4269 = vdwg.mxu0
        %4270 = vmatpush.msra.mxu0 0.0
        %4271 = vmatpush.msra.mxu0 0.0
        %4272 = vmatpush.msra.mxu0 0.0
        %4273 = vmatpush.msra.mxu0 0.0
        %4274 = vmatpush.msra.mxu0 0.0
        %4275 = vmatpush.msra.mxu0 0.0
        %4276 = vmatpush.msra.mxu0 0.0
        %4277 = vmatpush.msra.mxu0 0.0
        %4278 = vmatpush.msra.mxu0 0.0
        %4279 = vmatpush.msra.mxu0 0.0
        %4280 = vmatpush.msra.mxu0 0.0
        %4281 = vmatpush.msra.mxu0 0.0
        %4282 = vmatpush.msra.mxu0 %v4114
        %4283 = vmatpush.msra.mxu0 %v4082
        %4284 = vmatpush.msra.mxu0 %v4050
        %4285 = vmatpush.msra.mxu0 %v4018
        %4286 = vmatmul.f32.gmra.mxu0 %v4148
        %v4287 = vpop.f32.mrf.mxu0
        %v4288 = vadd.f32 %v4145, %v4287
        %4289 = vdwg.mxu0
        %4290 = vmatpush.msra.mxu0 0.0
        %4291 = vmatpush.msra.mxu0 0.0
        %4292 = vmatpush.msra.mxu0 0.0
        %4293 = vmatpush.msra.mxu0 0.0
        %4294 = vmatpush.msra.mxu0 0.0
        %4295 = vmatpush.msra.mxu0 0.0
        %4296 = vmatpush.msra.mxu0 0.0
        %4297 = vmatpush.msra.mxu0 0.0
        %4298 = vmatpush.msra.mxu0 0.0
        %4299 = vmatpush.msra.mxu0 0.0
        %4300 = vmatpush.msra.mxu0 0.0
        %4301 = vmatpush.msra.mxu0 0.0
        %4302 = vmatpush.msra.mxu0 %v4115
        %4303 = vmatpush.msra.mxu0 %v4083
        %4304 = vmatpush.msra.mxu0 %v4051
        %4305 = vmatpush.msra.mxu0 %v4019
        %4306 = vmatmul.f32.gmra.mxu0 %v4148
        %v4307 = vpop.f32.mrf.mxu0
        %v4308 = vadd.f32 %v4145, %v4307
        %4309 = vdwg.mxu0
        %4310 = vmatpush.msra.mxu0 0.0
        %4311 = vmatpush.msra.mxu0 0.0
        %4312 = vmatpush.msra.mxu0 0.0
        %4313 = vmatpush.msra.mxu0 0.0
        %4314 = vmatpush.msra.mxu0 0.0
        %4315 = vmatpush.msra.mxu0 0.0
        %4316 = vmatpush.msra.mxu0 0.0
        %4317 = vmatpush.msra.mxu0 0.0
        %4318 = vmatpush.msra.mxu0 0.0
        %4319 = vmatpush.msra.mxu0 0.0
        %4320 = vmatpush.msra.mxu0 0.0
        %4321 = vmatpush.msra.mxu0 0.0
        %4322 = vmatpush.msra.mxu0 %v4116
        %4323 = vmatpush.msra.mxu0 %v4084
        %4324 = vmatpush.msra.mxu0 %v4052
        %4325 = vmatpush.msra.mxu0 %v4020
        %4326 = vmatmul.f32.gmra.mxu0 %v4148
        %v4327 = vpop.f32.mrf.mxu0
        %v4328 = vadd.f32 %v4145, %v4327
        %4329 = vdwg.mxu0
        %4330 = vmatpush.msra.mxu0 0.0
        %4331 = vmatpush.msra.mxu0 0.0
        %4332 = vmatpush.msra.mxu0 0.0
        %4333 = vmatpush.msra.mxu0 0.0
        %4334 = vmatpush.msra.mxu0 0.0
        %4335 = vmatpush.msra.mxu0 0.0
        %4336 = vmatpush.msra.mxu0 0.0
        %4337 = vmatpush.msra.mxu0 0.0
        %4338 = vmatpush.msra.mxu0 0.0
        %4339 = vmatpush.msra.mxu0 0.0
        %4340 = vmatpush.msra.mxu0 0.0
        %4341 = vmatpush.msra.mxu0 0.0
        %4342 = vmatpush.msra.mxu0 %v4117
        %4343 = vmatpush.msra.mxu0 %v4085
        %4344 = vmatpush.msra.mxu0 %v4053
        %4345 = vmatpush.msra.mxu0 %v4021
        %4346 = vmatmul.f32.gmra.mxu0 %v4148
        %v4347 = vpop.f32.mrf.mxu0
        %v4348 = vadd.f32 %v4145, %v4347
        %4349 = vdwg.mxu0
        %4350 = vmatpush.msra.mxu0 0.0
        %4351 = vmatpush.msra.mxu0 0.0
        %4352 = vmatpush.msra.mxu0 0.0
        %4353 = vmatpush.msra.mxu0 0.0
        %4354 = vmatpush.msra.mxu0 0.0
        %4355 = vmatpush.msra.mxu0 0.0
        %4356 = vmatpush.msra.mxu0 0.0
        %4357 = vmatpush.msra.mxu0 0.0
        %4358 = vmatpush.msra.mxu0 0.0
        %4359 = vmatpush.msra.mxu0 0.0
        %4360 = vmatpush.msra.mxu0 0.0
        %4361 = vmatpush.msra.mxu0 0.0
        %4362 = vmatpush.msra.mxu0 %v4118
        %4363 = vmatpush.msra.mxu0 %v4086
        %4364 = vmatpush.msra.mxu0 %v4054
        %4365 = vmatpush.msra.mxu0 %v4022
        %4366 = vmatmul.f32.gmra.mxu0 %v4148
        %v4367 = vpop.f32.mrf.mxu0
        %v4368 = vadd.f32 %v4145, %v4367
        %4369 = vdwg.mxu0
        %4370 = vmatpush.msra.mxu0 0.0
        %4371 = vmatpush.msra.mxu0 0.0
        %4372 = vmatpush.msra.mxu0 0.0
        %4373 = vmatpush.msra.mxu0 0.0
        %4374 = vmatpush.msra.mxu0 0.0
        %4375 = vmatpush.msra.mxu0 0.0
        %4376 = vmatpush.msra.mxu0 0.0
        %4377 = vmatpush.msra.mxu0 0.0
        %4378 = vmatpush.msra.mxu0 0.0
        %4379 = vmatpush.msra.mxu0 0.0
        %4380 = vmatpush.msra.mxu0 0.0
        %4381 = vmatpush.msra.mxu0 0.0
        %4382 = vmatpush.msra.mxu0 %v4119
        %4383 = vmatpush.msra.mxu0 %v4087
        %4384 = vmatpush.msra.mxu0 %v4055
        %4385 = vmatpush.msra.mxu0 %v4023
        %4386 = vmatmul.f32.gmra.mxu0 %v4148
        %v4387 = vpop.f32.mrf.mxu0
        %v4388 = vadd.f32 %v4145, %v4387
        %4389 = vdwg.mxu0
        %4390 = vmatpush.msra.mxu0 0.0
        %4391 = vmatpush.msra.mxu0 0.0
        %4392 = vmatpush.msra.mxu0 0.0
        %4393 = vmatpush.msra.mxu0 0.0
        %4394 = vmatpush.msra.mxu0 0.0
        %4395 = vmatpush.msra.mxu0 0.0
        %4396 = vmatpush.msra.mxu0 0.0
        %4397 = vmatpush.msra.mxu0 0.0
        %4398 = vmatpush.msra.mxu0 0.0
        %4399 = vmatpush.msra.mxu0 0.0
        %4400 = vmatpush.msra.mxu0 0.0
        %4401 = vmatpush.msra.mxu0 0.0
        %4402 = vmatpush.msra.mxu0 %v4120
        %4403 = vmatpush.msra.mxu0 %v4088
        %4404 = vmatpush.msra.mxu0 %v4056
        %4405 = vmatpush.msra.mxu0 %v4024
        %4406 = vmatmul.f32.gmra.mxu0 %v4148
        %v4407 = vpop.f32.mrf.mxu0
        %v4408 = vadd.f32 %v4145, %v4407
        %4409 = vdwg.mxu0
        %4410 = vmatpush.msra.mxu0 0.0
        %4411 = vmatpush.msra.mxu0 0.0
        %4412 = vmatpush.msra.mxu0 0.0
        %4413 = vmatpush.msra.mxu0 0.0
        %4414 = vmatpush.msra.mxu0 0.0
        %4415 = vmatpush.msra.mxu0 0.0
        %4416 = vmatpush.msra.mxu0 0.0
        %4417 = vmatpush.msra.mxu0 0.0
        %4418 = vmatpush.msra.mxu0 0.0
        %4419 = vmatpush.msra.mxu0 0.0
        %4420 = vmatpush.msra.mxu0 0.0
        %4421 = vmatpush.msra.mxu0 0.0
        %4422 = vmatpush.msra.mxu0 %v4121
        %4423 = vmatpush.msra.mxu0 %v4089
        %4424 = vmatpush.msra.mxu0 %v4057
        %4425 = vmatpush.msra.mxu0 %v4025
        %4426 = vmatmul.f32.gmra.mxu0 %v4148
        %v4427 = vpop.f32.mrf.mxu0
        %v4428 = vadd.f32 %v4145, %v4427
        %4429 = vdwg.mxu0
        %4430 = vmatpush.msra.mxu0 0.0
        %4431 = vmatpush.msra.mxu0 0.0
        %4432 = vmatpush.msra.mxu0 0.0
        %4433 = vmatpush.msra.mxu0 0.0
        %4434 = vmatpush.msra.mxu0 0.0
        %4435 = vmatpush.msra.mxu0 0.0
        %4436 = vmatpush.msra.mxu0 0.0
        %4437 = vmatpush.msra.mxu0 0.0
        %4438 = vmatpush.msra.mxu0 0.0
        %4439 = vmatpush.msra.mxu0 0.0
        %4440 = vmatpush.msra.mxu0 0.0
        %4441 = vmatpush.msra.mxu0 0.0
        %4442 = vmatpush.msra.mxu0 %v4122
        %4443 = vmatpush.msra.mxu0 %v4090
        %4444 = vmatpush.msra.mxu0 %v4058
        %4445 = vmatpush.msra.mxu0 %v4026
        %4446 = vmatmul.f32.gmra.mxu0 %v4148
        %v4447 = vpop.f32.mrf.mxu0
        %v4448 = vadd.f32 %v4145, %v4447
        %4449 = vdwg.mxu0
        %4450 = vmatpush.msra.mxu0 0.0
        %4451 = vmatpush.msra.mxu0 0.0
        %4452 = vmatpush.msra.mxu0 0.0
        %4453 = vmatpush.msra.mxu0 0.0
        %4454 = vmatpush.msra.mxu0 0.0
        %4455 = vmatpush.msra.mxu0 0.0
        %4456 = vmatpush.msra.mxu0 0.0
        %4457 = vmatpush.msra.mxu0 0.0
        %4458 = vmatpush.msra.mxu0 0.0
        %4459 = vmatpush.msra.mxu0 0.0
        %4460 = vmatpush.msra.mxu0 0.0
        %4461 = vmatpush.msra.mxu0 0.0
        %4462 = vmatpush.msra.mxu0 %v4123
        %4463 = vmatpush.msra.mxu0 %v4091
        %4464 = vmatpush.msra.mxu0 %v4059
        %4465 = vmatpush.msra.mxu0 %v4027
        %4466 = vmatmul.f32.gmra.mxu0 %v4148
        %v4467 = vpop.f32.mrf.mxu0
        %v4468 = vadd.f32 %v4145, %v4467
        %4469 = vdwg.mxu0
        %4470 = vmatpush.msra.mxu0 0.0
        %4471 = vmatpush.msra.mxu0 0.0
        %4472 = vmatpush.msra.mxu0 0.0
        %4473 = vmatpush.msra.mxu0 0.0
        %4474 = vmatpush.msra.mxu0 0.0
        %4475 = vmatpush.msra.mxu0 0.0
        %4476 = vmatpush.msra.mxu0 0.0
        %4477 = vmatpush.msra.mxu0 0.0
        %4478 = vmatpush.msra.mxu0 0.0
        %4479 = vmatpush.msra.mxu0 0.0
        %4480 = vmatpush.msra.mxu0 0.0
        %4481 = vmatpush.msra.mxu0 0.0
        %4482 = vmatpush.msra.mxu0 %v4124
        %4483 = vmatpush.msra.mxu0 %v4092
        %4484 = vmatpush.msra.mxu0 %v4060
        %4485 = vmatpush.msra.mxu0 %v4028
        %4486 = vmatmul.f32.gmra.mxu0 %v4148
        %v4487 = vpop.f32.mrf.mxu0
        %v4488 = vadd.f32 %v4145, %v4487
        %4489 = vdwg.mxu0
        %4490 = vmatpush.msra.mxu0 0.0
        %4491 = vmatpush.msra.mxu0 0.0
        %4492 = vmatpush.msra.mxu0 0.0
        %4493 = vmatpush.msra.mxu0 0.0
        %4494 = vmatpush.msra.mxu0 0.0
        %4495 = vmatpush.msra.mxu0 0.0
        %4496 = vmatpush.msra.mxu0 0.0
        %4497 = vmatpush.msra.mxu0 0.0
        %4498 = vmatpush.msra.mxu0 0.0
        %4499 = vmatpush.msra.mxu0 0.0
        %4500 = vmatpush.msra.mxu0 0.0
        %4501 = vmatpush.msra.mxu0 0.0
        %4502 = vmatpush.msra.mxu0 %v4125
        %4503 = vmatpush.msra.mxu0 %v4093
        %4504 = vmatpush.msra.mxu0 %v4061
        %4505 = vmatpush.msra.mxu0 %v4029
        %4506 = vmatmul.f32.gmra.mxu0 %v4148
        %v4507 = vpop.f32.mrf.mxu0
        %v4508 = vadd.f32 %v4145, %v4507
        %4509 = vdwg.mxu0
        %4510 = vmatpush.msra.mxu0 0.0
        %4511 = vmatpush.msra.mxu0 0.0
        %4512 = vmatpush.msra.mxu0 0.0
        %4513 = vmatpush.msra.mxu0 0.0
        %4514 = vmatpush.msra.mxu0 0.0
        %4515 = vmatpush.msra.mxu0 0.0
        %4516 = vmatpush.msra.mxu0 0.0
        %4517 = vmatpush.msra.mxu0 0.0
        %4518 = vmatpush.msra.mxu0 0.0
        %4519 = vmatpush.msra.mxu0 0.0
        %4520 = vmatpush.msra.mxu0 0.0
        %4521 = vmatpush.msra.mxu0 0.0
        %4522 = vmatpush.msra.mxu0 %v4126
        %4523 = vmatpush.msra.mxu0 %v4094
        %4524 = vmatpush.msra.mxu0 %v4062
        %4525 = vmatpush.msra.mxu0 %v4030
        %4526 = vmatmul.f32.gmra.mxu0 %v4148
        %v4527 = vpop.f32.mrf.mxu0
        %v4528 = vadd.f32 %v4145, %v4527
        %4529 = vdwg.mxu0
        %4530 = vmatpush.msra.mxu0 0.0
        %4531 = vmatpush.msra.mxu0 0.0
        %4532 = vmatpush.msra.mxu0 0.0
        %4533 = vmatpush.msra.mxu0 0.0
        %4534 = vmatpush.msra.mxu0 0.0
        %4535 = vmatpush.msra.mxu0 0.0
        %4536 = vmatpush.msra.mxu0 0.0
        %4537 = vmatpush.msra.mxu0 0.0
        %4538 = vmatpush.msra.mxu0 0.0
        %4539 = vmatpush.msra.mxu0 0.0
        %4540 = vmatpush.msra.mxu0 0.0
        %4541 = vmatpush.msra.mxu0 0.0
        %4542 = vmatpush.msra.mxu0 %v4127
        %4543 = vmatpush.msra.mxu0 %v4095
        %4544 = vmatpush.msra.mxu0 %v4063
        %4545 = vmatpush.msra.mxu0 %v4031
        %4546 = vmatmul.f32.gmra.mxu0 %v4148
        %v4547 = vpop.f32.mrf.mxu0
        %v4548 = vadd.f32 %v4145, %v4547
        %4549 = vdwg.mxu0
        %4550 = vmatpush.msra.mxu0 0.0
        %4551 = vmatpush.msra.mxu0 0.0
        %4552 = vmatpush.msra.mxu0 0.0
        %4553 = vmatpush.msra.mxu0 0.0
        %4554 = vmatpush.msra.mxu0 0.0
        %4555 = vmatpush.msra.mxu0 0.0
        %4556 = vmatpush.msra.mxu0 0.0
        %4557 = vmatpush.msra.mxu0 0.0
        %4558 = vmatpush.msra.mxu0 0.0
        %4559 = vmatpush.msra.mxu0 0.0
        %4560 = vmatpush.msra.mxu0 0.0
        %4561 = vmatpush.msra.mxu0 0.0
        %4562 = vmatpush.msra.mxu0 %v4128
        %4563 = vmatpush.msra.mxu0 %v4096
        %4564 = vmatpush.msra.mxu0 %v4064
        %4565 = vmatpush.msra.mxu0 %v4032
        %4566 = vmatmul.f32.gmra.mxu0 %v4148
        %v4567 = vpop.f32.mrf.mxu0
        %v4568 = vadd.f32 %v4145, %v4567
        %4569 = vdwg.mxu0
        %4570 = vmatpush.msra.mxu0 0.0
        %4571 = vmatpush.msra.mxu0 0.0
        %4572 = vmatpush.msra.mxu0 0.0
        %4573 = vmatpush.msra.mxu0 0.0
        %4574 = vmatpush.msra.mxu0 0.0
        %4575 = vmatpush.msra.mxu0 0.0
        %4576 = vmatpush.msra.mxu0 0.0
        %4577 = vmatpush.msra.mxu0 0.0
        %4578 = vmatpush.msra.mxu0 0.0
        %4579 = vmatpush.msra.mxu0 0.0
        %4580 = vmatpush.msra.mxu0 0.0
        %4581 = vmatpush.msra.mxu0 0.0
        %4582 = vmatpush.msra.mxu0 %v4129
        %4583 = vmatpush.msra.mxu0 %v4097
        %4584 = vmatpush.msra.mxu0 %v4065
        %4585 = vmatpush.msra.mxu0 %v4033
        %4586 = vmatmul.f32.gmra.mxu0 %v4148
        %v4587 = vpop.f32.mrf.mxu0
        %v4588 = vadd.f32 %v4145, %v4587
        %4589 = vdwg.mxu0
        %4590 = vmatpush.msra.mxu0 0.0
        %4591 = vmatpush.msra.mxu0 0.0
        %4592 = vmatpush.msra.mxu0 0.0
        %4593 = vmatpush.msra.mxu0 0.0
        %4594 = vmatpush.msra.mxu0 0.0
        %4595 = vmatpush.msra.mxu0 0.0
        %4596 = vmatpush.msra.mxu0 0.0
        %4597 = vmatpush.msra.mxu0 0.0
        %4598 = vmatpush.msra.mxu0 0.0
        %4599 = vmatpush.msra.mxu0 0.0
        %4600 = vmatpush.msra.mxu0 0.0
        %4601 = vmatpush.msra.mxu0 0.0
        %4602 = vmatpush.msra.mxu0 %v4130
        %4603 = vmatpush.msra.mxu0 %v4098
        %4604 = vmatpush.msra.mxu0 %v4066
        %4605 = vmatpush.msra.mxu0 %v4034
        %4606 = vmatmul.f32.gmra.mxu0 %v4148
        %v4607 = vpop.f32.mrf.mxu0
        %v4608 = vadd.f32 %v4145, %v4607
        %4609 = vdwg.mxu0
        %4610 = vmatpush.msra.mxu0 0.0
        %4611 = vmatpush.msra.mxu0 0.0
        %4612 = vmatpush.msra.mxu0 0.0
        %4613 = vmatpush.msra.mxu0 0.0
        %4614 = vmatpush.msra.mxu0 0.0
        %4615 = vmatpush.msra.mxu0 0.0
        %4616 = vmatpush.msra.mxu0 0.0
        %4617 = vmatpush.msra.mxu0 0.0
        %4618 = vmatpush.msra.mxu0 0.0
        %4619 = vmatpush.msra.mxu0 0.0
        %4620 = vmatpush.msra.mxu0 0.0
        %4621 = vmatpush.msra.mxu0 0.0
        %4622 = vmatpush.msra.mxu0 %v4131
        %4623 = vmatpush.msra.mxu0 %v4099
        %4624 = vmatpush.msra.mxu0 %v4067
        %4625 = vmatpush.msra.mxu0 %v4035
        %4626 = vmatmul.f32.gmra.mxu0 %v4148
        %v4627 = vpop.f32.mrf.mxu0
        %v4628 = vadd.f32 %v4145, %v4627
        %4629 = vdwg.mxu0
        %4630 = vmatpush.msra.mxu0 0.0
        %4631 = vmatpush.msra.mxu0 0.0
        %4632 = vmatpush.msra.mxu0 0.0
        %4633 = vmatpush.msra.mxu0 0.0
        %4634 = vmatpush.msra.mxu0 0.0
        %4635 = vmatpush.msra.mxu0 0.0
        %4636 = vmatpush.msra.mxu0 0.0
        %4637 = vmatpush.msra.mxu0 0.0
        %4638 = vmatpush.msra.mxu0 0.0
        %4639 = vmatpush.msra.mxu0 0.0
        %4640 = vmatpush.msra.mxu0 0.0
        %4641 = vmatpush.msra.mxu0 0.0
        %4642 = vmatpush.msra.mxu0 %v4132
        %4643 = vmatpush.msra.mxu0 %v4100
        %4644 = vmatpush.msra.mxu0 %v4068
        %4645 = vmatpush.msra.mxu0 %v4036
        %4646 = vmatmul.f32.gmra.mxu0 %v4148
        %v4647 = vpop.f32.mrf.mxu0
        %v4648 = vadd.f32 %v4145, %v4647
        %4649 = vdwg.mxu0
        %4650 = vmatpush.msra.mxu0 0.0
        %4651 = vmatpush.msra.mxu0 0.0
        %4652 = vmatpush.msra.mxu0 0.0
        %4653 = vmatpush.msra.mxu0 0.0
        %4654 = vmatpush.msra.mxu0 0.0
        %4655 = vmatpush.msra.mxu0 0.0
        %4656 = vmatpush.msra.mxu0 0.0
        %4657 = vmatpush.msra.mxu0 0.0
        %4658 = vmatpush.msra.mxu0 0.0
        %4659 = vmatpush.msra.mxu0 0.0
        %4660 = vmatpush.msra.mxu0 0.0
        %4661 = vmatpush.msra.mxu0 0.0
        %4662 = vmatpush.msra.mxu0 %v4133
        %4663 = vmatpush.msra.mxu0 %v4101
        %4664 = vmatpush.msra.mxu0 %v4069
        %4665 = vmatpush.msra.mxu0 %v4037
        %4666 = vmatmul.f32.gmra.mxu0 %v4148
        %v4667 = vpop.f32.mrf.mxu0
        %v4668 = vadd.f32 %v4145, %v4667
        %4669 = vdwg.mxu0
        %4670 = vmatpush.msra.mxu0 0.0
        %4671 = vmatpush.msra.mxu0 0.0
        %4672 = vmatpush.msra.mxu0 0.0
        %4673 = vmatpush.msra.mxu0 0.0
        %4674 = vmatpush.msra.mxu0 0.0
        %4675 = vmatpush.msra.mxu0 0.0
        %4676 = vmatpush.msra.mxu0 0.0
        %4677 = vmatpush.msra.mxu0 0.0
        %4678 = vmatpush.msra.mxu0 0.0
        %4679 = vmatpush.msra.mxu0 0.0
        %4680 = vmatpush.msra.mxu0 0.0
        %4681 = vmatpush.msra.mxu0 0.0
        %4682 = vmatpush.msra.mxu0 %v4134
        %4683 = vmatpush.msra.mxu0 %v4102
        %4684 = vmatpush.msra.mxu0 %v4070
        %4685 = vmatpush.msra.mxu0 %v4038
        %4686 = vmatmul.f32.gmra.mxu0 %v4148
        %v4687 = vpop.f32.mrf.mxu0
        %v4688 = vadd.f32 %v4145, %v4687
        %4689 = vdwg.mxu0
        %4690 = vmatpush.msra.mxu0 0.0
        %4691 = vmatpush.msra.mxu0 0.0
        %4692 = vmatpush.msra.mxu0 0.0
        %4693 = vmatpush.msra.mxu0 0.0
        %4694 = vmatpush.msra.mxu0 0.0
        %4695 = vmatpush.msra.mxu0 0.0
        %4696 = vmatpush.msra.mxu0 0.0
        %4697 = vmatpush.msra.mxu0 0.0
        %4698 = vmatpush.msra.mxu0 0.0
        %4699 = vmatpush.msra.mxu0 0.0
        %4700 = vmatpush.msra.mxu0 0.0
        %4701 = vmatpush.msra.mxu0 0.0
        %4702 = vmatpush.msra.mxu0 %v4135
        %4703 = vmatpush.msra.mxu0 %v4103
        %4704 = vmatpush.msra.mxu0 %v4071
        %4705 = vmatpush.msra.mxu0 %v4039
        %4706 = vmatmul.f32.gmra.mxu0 %v4148
        %v4707 = vpop.f32.mrf.mxu0
        %v4708 = vadd.f32 %v4145, %v4707
        %4709 = vdwg.mxu0
        %4710 = vmatpush.msra.mxu0 0.0
        %4711 = vmatpush.msra.mxu0 0.0
        %4712 = vmatpush.msra.mxu0 0.0
        %4713 = vmatpush.msra.mxu0 0.0
        %4714 = vmatpush.msra.mxu0 0.0
        %4715 = vmatpush.msra.mxu0 0.0
        %4716 = vmatpush.msra.mxu0 0.0
        %4717 = vmatpush.msra.mxu0 0.0
        %4718 = vmatpush.msra.mxu0 0.0
        %4719 = vmatpush.msra.mxu0 0.0
        %4720 = vmatpush.msra.mxu0 0.0
        %4721 = vmatpush.msra.mxu0 0.0
        %4722 = vmatpush.msra.mxu0 %v4136
        %4723 = vmatpush.msra.mxu0 %v4104
        %4724 = vmatpush.msra.mxu0 %v4072
        %4725 = vmatpush.msra.mxu0 %v4040
        %4726 = vmatmul.f32.gmra.mxu0 %v4148
        %v4727 = vpop.f32.mrf.mxu0
        %v4728 = vadd.f32 %v4145, %v4727
        %4729 = vdwg.mxu0
        %4730 = vmatpush.msra.mxu0 0.0
        %4731 = vmatpush.msra.mxu0 0.0
        %4732 = vmatpush.msra.mxu0 0.0
        %4733 = vmatpush.msra.mxu0 0.0
        %4734 = vmatpush.msra.mxu0 0.0
        %4735 = vmatpush.msra.mxu0 0.0
        %4736 = vmatpush.msra.mxu0 0.0
        %4737 = vmatpush.msra.mxu0 0.0
        %4738 = vmatpush.msra.mxu0 0.0
        %4739 = vmatpush.msra.mxu0 0.0
        %4740 = vmatpush.msra.mxu0 0.0
        %4741 = vmatpush.msra.mxu0 0.0
        %4742 = vmatpush.msra.mxu0 %v4137
        %4743 = vmatpush.msra.mxu0 %v4105
        %4744 = vmatpush.msra.mxu0 %v4073
        %4745 = vmatpush.msra.mxu0 %v4041
        %4746 = vmatmul.f32.gmra.mxu0 %v4148
        %v4747 = vpop.f32.mrf.mxu0
        %v4748 = vadd.f32 %v4145, %v4747
        %4749 = vdwg.mxu0
        %4750 = vmatpush.msra.mxu0 0.0
        %4751 = vmatpush.msra.mxu0 0.0
        %4752 = vmatpush.msra.mxu0 0.0
        %4753 = vmatpush.msra.mxu0 0.0
        %4754 = vmatpush.msra.mxu0 0.0
        %4755 = vmatpush.msra.mxu0 0.0
        %4756 = vmatpush.msra.mxu0 0.0
        %4757 = vmatpush.msra.mxu0 0.0
        %4758 = vmatpush.msra.mxu0 0.0
        %4759 = vmatpush.msra.mxu0 0.0
        %4760 = vmatpush.msra.mxu0 0.0
        %4761 = vmatpush.msra.mxu0 0.0
        %4762 = vmatpush.msra.mxu0 %v4138
        %4763 = vmatpush.msra.mxu0 %v4106
        %4764 = vmatpush.msra.mxu0 %v4074
        %4765 = vmatpush.msra.mxu0 %v4042
        %4766 = vmatmul.f32.gmra.mxu0 %v4148
        %v4767 = vpop.f32.mrf.mxu0
        %v4768 = vadd.f32 %v4145, %v4767
        %4769 = vdwg.mxu0
        %4770 = vmatpush.msra.mxu0 0.0
        %4771 = vmatpush.msra.mxu0 0.0
        %4772 = vmatpush.msra.mxu0 0.0
        %4773 = vmatpush.msra.mxu0 0.0
        %4774 = vmatpush.msra.mxu0 0.0
        %4775 = vmatpush.msra.mxu0 0.0
        %4776 = vmatpush.msra.mxu0 0.0
        %4777 = vmatpush.msra.mxu0 0.0
        %4778 = vmatpush.msra.mxu0 0.0
        %4779 = vmatpush.msra.mxu0 0.0
        %4780 = vmatpush.msra.mxu0 0.0
        %4781 = vmatpush.msra.mxu0 0.0
        %4782 = vmatpush.msra.mxu0 %v4139
        %4783 = vmatpush.msra.mxu0 %v4107
        %4784 = vmatpush.msra.mxu0 %v4075
        %4785 = vmatpush.msra.mxu0 %v4043
        %4786 = vmatmul.f32.gmra.mxu0 %v4148
        %v4787 = vpop.f32.mrf.mxu0
        %v4788 = vadd.f32 %v4145, %v4787
        %4789 = vdwg.mxu0
        %v4790 = vxor.u32 %v4168, 2147483648
        %v4791 = vxor.u32 %v4188, 2147483648
        %v4792 = vxor.u32 %v4208, 2147483648
        %v4793 = vxor.u32 %v4228, 2147483648
        %v4794 = vxor.u32 %v4248, 2147483648
        %v4795 = vxor.u32 %v4268, 2147483648
        %v4796 = vxor.u32 %v4288, 2147483648
        %v4797 = vxor.u32 %v4308, 2147483648
        %v4798 = vxor.u32 %v4328, 2147483648
        %v4799 = vxor.u32 %v4348, 2147483648
        %v4800 = vxor.u32 %v4368, 2147483648
        %v4801 = vxor.u32 %v4388, 2147483648
        %v4802 = vxor.u32 %v4408, 2147483648
        %v4803 = vxor.u32 %v4428, 2147483648
        %v4804 = vxor.u32 %v4448, 2147483648
        %v4805 = vxor.u32 %v4468, 2147483648
        %v4806 = vxor.u32 %v4488, 2147483648
        %v4807 = vxor.u32 %v4508, 2147483648
        %v4808 = vxor.u32 %v4528, 2147483648
        %v4809 = vxor.u32 %v4548, 2147483648
        %v4810 = vxor.u32 %v4568, 2147483648
        %v4811 = vxor.u32 %v4588, 2147483648
        %v4812 = vxor.u32 %v4608, 2147483648
        %v4813 = vxor.u32 %v4628, 2147483648
        %v4814 = vxor.u32 %v4648, 2147483648
        %v4815 = vxor.u32 %v4668, 2147483648
        %v4816 = vxor.u32 %v4688, 2147483648
        %v4817 = vxor.u32 %v4708, 2147483648
        %v4818 = vxor.u32 %v4728, 2147483648
        %v4819 = vxor.u32 %v4748, 2147483648
        %v4820 = vxor.u32 %v4768, 2147483648
        %v4821 = vxor.u32 %v4788, 2147483648
        %v4822 = vmul.f32 %v4790, 1.442695
        %v4823 = vpow.pop %v4822
        %v4824 = vmul.f32 %v4791, 1.442695
        %v4825 = vpow.pop %v4824
        %v4826 = vmul.f32 %v4792, 1.442695
        %v4827 = vpow.pop %v4826
        %v4828 = vmul.f32 %v4793, 1.442695
        %v4829 = vpow.pop %v4828
        %v4830 = vmul.f32 %v4794, 1.442695
        %v4831 = vpow.pop %v4830
        %v4832 = vmul.f32 %v4795, 1.442695
        %v4833 = vpow.pop %v4832
        %v4834 = vmul.f32 %v4796, 1.442695
        %v4835 = vpow.pop %v4834
        %v4836 = vmul.f32 %v4797, 1.442695
        %v4837 = vpow.pop %v4836
        %v4838 = vmul.f32 %v4798, 1.442695
        %v4839 = vpow.pop %v4838
        %v4840 = vmul.f32 %v4799, 1.442695
        %v4841 = vpow.pop %v4840
        %v4842 = vmul.f32 %v4800, 1.442695
        %v4843 = vpow.pop %v4842
        %v4844 = vmul.f32 %v4801, 1.442695
        %v4845 = vpow.pop %v4844
        %v4846 = vmul.f32 %v4802, 1.442695
        %v4847 = vpow.pop %v4846
        %v4848 = vmul.f32 %v4803, 1.442695
        %v4849 = vpow.pop %v4848
        %v4850 = vmul.f32 %v4804, 1.442695
        %v4851 = vpow.pop %v4850
        %v4852 = vmul.f32 %v4805, 1.442695
        %v4853 = vpow.pop %v4852
        %v4854 = vmul.f32 %v4806, 1.442695
        %v4855 = vpow.pop %v4854
        %v4856 = vmul.f32 %v4807, 1.442695
        %v4857 = vpow.pop %v4856
        %v4858 = vmul.f32 %v4808, 1.442695
        %v4859 = vpow.pop %v4858
        %v4860 = vmul.f32 %v4809, 1.442695
        %v4861 = vpow.pop %v4860
        %v4862 = vmul.f32 %v4810, 1.442695
        %v4863 = vpow.pop %v4862
        %v4864 = vmul.f32 %v4811, 1.442695
        %v4865 = vpow.pop %v4864
        %v4866 = vmul.f32 %v4812, 1.442695
        %v4867 = vpow.pop %v4866
        %v4868 = vmul.f32 %v4813, 1.442695
        %v4869 = vpow.pop %v4868
        %v4870 = vmul.f32 %v4814, 1.442695
        %v4871 = vpow.pop %v4870
        %v4872 = vmul.f32 %v4815, 1.442695
        %v4873 = vpow.pop %v4872
        %v4874 = vmul.f32 %v4816, 1.442695
        %v4875 = vpow.pop %v4874
        %v4876 = vmul.f32 %v4817, 1.442695
        %v4877 = vpow.pop %v4876
        %v4878 = vmul.f32 %v4818, 1.442695
        %v4879 = vpow.pop %v4878
        %v4880 = vmul.f32 %v4819, 1.442695
        %v4881 = vpow.pop %v4880
        %v4882 = vmul.f32 %v4820, 1.442695
        %v4883 = vpow.pop %v4882
        %v4884 = vmul.f32 %v4821, 1.442695
        %v4885 = vpow.pop %v4884
        %v4886 = vadd.f32 %v4823, 1.0
        %v4887 = vadd.f32 %v4825, 1.0
        %v4888 = vadd.f32 %v4827, 1.0
        %v4889 = vadd.f32 %v4829, 1.0
        %v4890 = vadd.f32 %v4831, 1.0
        %v4891 = vadd.f32 %v4833, 1.0
        %v4892 = vadd.f32 %v4835, 1.0
        %v4893 = vadd.f32 %v4837, 1.0
        %v4894 = vadd.f32 %v4839, 1.0
        %v4895 = vadd.f32 %v4841, 1.0
        %v4896 = vadd.f32 %v4843, 1.0
        %v4897 = vadd.f32 %v4845, 1.0
        %v4898 = vadd.f32 %v4847, 1.0
        %v4899 = vadd.f32 %v4849, 1.0
        %v4900 = vadd.f32 %v4851, 1.0
        %v4901 = vadd.f32 %v4853, 1.0
        %v4902 = vadd.f32 %v4855, 1.0
        %v4903 = vadd.f32 %v4857, 1.0
        %v4904 = vadd.f32 %v4859, 1.0
        %v4905 = vadd.f32 %v4861, 1.0
        %v4906 = vadd.f32 %v4863, 1.0
        %v4907 = vadd.f32 %v4865, 1.0
        %v4908 = vadd.f32 %v4867, 1.0
        %v4909 = vadd.f32 %v4869, 1.0
        %v4910 = vadd.f32 %v4871, 1.0
        %v4911 = vadd.f32 %v4873, 1.0
        %v4912 = vadd.f32 %v4875, 1.0
        %v4913 = vadd.f32 %v4877, 1.0
        %v4914 = vadd.f32 %v4879, 1.0
        %v4915 = vadd.f32 %v4881, 1.0
        %v4916 = vadd.f32 %v4883, 1.0
        %v4917 = vadd.f32 %v4885, 1.0
        %v4918 = vrcp.pop %v4886
        %v4919 = vmul.f32 %v4886, %v4918
        %v4920 = vsub.f32 1.0, %v4919
        %v4921 = vmul.f32 %v4918, %v4920
        %v4922 = vadd.f32 %v4918, %v4921
        %vm4923 = vweird.f32 %v4886
        %vm4924 = vweird.f32 %v4918
        %vm4925 = vmor %vm4923, %vm4924
        %v4926 = vsel %vm4925, %v4918, %v4922
        %v4927 = vand.u32 2147483647, %v4886
        %vm4928 = vcmp.eq.f32.partialorder %v4927, 8.507059e+37
        %v4929 = vand.u32 %v4886, 2147483648
        %v4930 = vor.u32 1.1754944e-38, %v4929
        %v4931 = vsel %vm4928, %v4930, %v4926
        %v4932 = vmul.f32 1.0, %v4931
        %v4933 = vrcp.pop %v4887
        %v4934 = vmul.f32 %v4887, %v4933
        %v4935 = vsub.f32 1.0, %v4934
        %v4936 = vmul.f32 %v4933, %v4935
        %v4937 = vadd.f32 %v4933, %v4936
        %vm4938 = vweird.f32 %v4887
        %vm4939 = vweird.f32 %v4933
        %vm4940 = vmor %vm4938, %vm4939
        %v4941 = vsel %vm4940, %v4933, %v4937
        %v4942 = vand.u32 2147483647, %v4887
        %vm4943 = vcmp.eq.f32.partialorder %v4942, 8.507059e+37
        %v4944 = vand.u32 %v4887, 2147483648
        %v4945 = vor.u32 1.1754944e-38, %v4944
        %v4946 = vsel %vm4943, %v4945, %v4941
        %v4947 = vmul.f32 1.0, %v4946
        %v4948 = vrcp.pop %v4888
        %v4949 = vmul.f32 %v4888, %v4948
        %v4950 = vsub.f32 1.0, %v4949
        %v4951 = vmul.f32 %v4948, %v4950
        %v4952 = vadd.f32 %v4948, %v4951
        %vm4953 = vweird.f32 %v4888
        %vm4954 = vweird.f32 %v4948
        %vm4955 = vmor %vm4953, %vm4954
        %v4956 = vsel %vm4955, %v4948, %v4952
        %v4957 = vand.u32 2147483647, %v4888
        %vm4958 = vcmp.eq.f32.partialorder %v4957, 8.507059e+37
        %v4959 = vand.u32 %v4888, 2147483648
        %v4960 = vor.u32 1.1754944e-38, %v4959
        %v4961 = vsel %vm4958, %v4960, %v4956
        %v4962 = vmul.f32 1.0, %v4961
        %v4963 = vrcp.pop %v4889
        %v4964 = vmul.f32 %v4889, %v4963
        %v4965 = vsub.f32 1.0, %v4964
        %v4966 = vmul.f32 %v4963, %v4965
        %v4967 = vadd.f32 %v4963, %v4966
        %vm4968 = vweird.f32 %v4889
        %vm4969 = vweird.f32 %v4963
        %vm4970 = vmor %vm4968, %vm4969
        %v4971 = vsel %vm4970, %v4963, %v4967
        %v4972 = vand.u32 2147483647, %v4889
        %vm4973 = vcmp.eq.f32.partialorder %v4972, 8.507059e+37
        %v4974 = vand.u32 %v4889, 2147483648
        %v4975 = vor.u32 1.1754944e-38, %v4974
        %v4976 = vsel %vm4973, %v4975, %v4971
        %v4977 = vmul.f32 1.0, %v4976
        %v4978 = vrcp.pop %v4890
        %v4979 = vmul.f32 %v4890, %v4978
        %v4980 = vsub.f32 1.0, %v4979
        %v4981 = vmul.f32 %v4978, %v4980
        %v4982 = vadd.f32 %v4978, %v4981
        %vm4983 = vweird.f32 %v4890
        %vm4984 = vweird.f32 %v4978
        %vm4985 = vmor %vm4983, %vm4984
        %v4986 = vsel %vm4985, %v4978, %v4982
        %v4987 = vand.u32 2147483647, %v4890
        %vm4988 = vcmp.eq.f32.partialorder %v4987, 8.507059e+37
        %v4989 = vand.u32 %v4890, 2147483648
        %v4990 = vor.u32 1.1754944e-38, %v4989
        %v4991 = vsel %vm4988, %v4990, %v4986
        %v4992 = vmul.f32 1.0, %v4991
        %v4993 = vrcp.pop %v4891
        %v4994 = vmul.f32 %v4891, %v4993
        %v4995 = vsub.f32 1.0, %v4994
        %v4996 = vmul.f32 %v4993, %v4995
        %v4997 = vadd.f32 %v4993, %v4996
        %vm4998 = vweird.f32 %v4891
        %vm4999 = vweird.f32 %v4993
        %vm5000 = vmor %vm4998, %vm4999
        %v5001 = vsel %vm5000, %v4993, %v4997
        %v5002 = vand.u32 2147483647, %v4891
        %vm5003 = vcmp.eq.f32.partialorder %v5002, 8.507059e+37
        %v5004 = vand.u32 %v4891, 2147483648
        %v5005 = vor.u32 1.1754944e-38, %v5004
        %v5006 = vsel %vm5003, %v5005, %v5001
        %v5007 = vmul.f32 1.0, %v5006
        %v5008 = vrcp.pop %v4892
        %v5009 = vmul.f32 %v4892, %v5008
        %v5010 = vsub.f32 1.0, %v5009
        %v5011 = vmul.f32 %v5008, %v5010
        %v5012 = vadd.f32 %v5008, %v5011
        %vm5013 = vweird.f32 %v4892
        %vm5014 = vweird.f32 %v5008
        %vm5015 = vmor %vm5013, %vm5014
        %v5016 = vsel %vm5015, %v5008, %v5012
        %v5017 = vand.u32 2147483647, %v4892
        %vm5018 = vcmp.eq.f32.partialorder %v5017, 8.507059e+37
        %v5019 = vand.u32 %v4892, 2147483648
        %v5020 = vor.u32 1.1754944e-38, %v5019
        %v5021 = vsel %vm5018, %v5020, %v5016
        %v5022 = vmul.f32 1.0, %v5021
        %v5023 = vrcp.pop %v4893
        %v5024 = vmul.f32 %v4893, %v5023
        %v5025 = vsub.f32 1.0, %v5024
        %v5026 = vmul.f32 %v5023, %v5025
        %v5027 = vadd.f32 %v5023, %v5026
        %vm5028 = vweird.f32 %v4893
        %vm5029 = vweird.f32 %v5023
        %vm5030 = vmor %vm5028, %vm5029
        %v5031 = vsel %vm5030, %v5023, %v5027
        %v5032 = vand.u32 2147483647, %v4893
        %vm5033 = vcmp.eq.f32.partialorder %v5032, 8.507059e+37
        %v5034 = vand.u32 %v4893, 2147483648
        %v5035 = vor.u32 1.1754944e-38, %v5034
        %v5036 = vsel %vm5033, %v5035, %v5031
        %v5037 = vmul.f32 1.0, %v5036
        %v5038 = vrcp.pop %v4894
        %v5039 = vmul.f32 %v4894, %v5038
        %v5040 = vsub.f32 1.0, %v5039
        %v5041 = vmul.f32 %v5038, %v5040
        %v5042 = vadd.f32 %v5038, %v5041
        %vm5043 = vweird.f32 %v4894
        %vm5044 = vweird.f32 %v5038
        %vm5045 = vmor %vm5043, %vm5044
        %v5046 = vsel %vm5045, %v5038, %v5042
        %v5047 = vand.u32 2147483647, %v4894
        %vm5048 = vcmp.eq.f32.partialorder %v5047, 8.507059e+37
        %v5049 = vand.u32 %v4894, 2147483648
        %v5050 = vor.u32 1.1754944e-38, %v5049
        %v5051 = vsel %vm5048, %v5050, %v5046
        %v5052 = vmul.f32 1.0, %v5051
        %v5053 = vrcp.pop %v4895
        %v5054 = vmul.f32 %v4895, %v5053
        %v5055 = vsub.f32 1.0, %v5054
        %v5056 = vmul.f32 %v5053, %v5055
        %v5057 = vadd.f32 %v5053, %v5056
        %vm5058 = vweird.f32 %v4895
        %vm5059 = vweird.f32 %v5053
        %vm5060 = vmor %vm5058, %vm5059
        %v5061 = vsel %vm5060, %v5053, %v5057
        %v5062 = vand.u32 2147483647, %v4895
        %vm5063 = vcmp.eq.f32.partialorder %v5062, 8.507059e+37
        %v5064 = vand.u32 %v4895, 2147483648
        %v5065 = vor.u32 1.1754944e-38, %v5064
        %v5066 = vsel %vm5063, %v5065, %v5061
        %v5067 = vmul.f32 1.0, %v5066
        %v5068 = vrcp.pop %v4896
        %v5069 = vmul.f32 %v4896, %v5068
        %v5070 = vsub.f32 1.0, %v5069
        %v5071 = vmul.f32 %v5068, %v5070
        %v5072 = vadd.f32 %v5068, %v5071
        %vm5073 = vweird.f32 %v4896
        %vm5074 = vweird.f32 %v5068
        %vm5075 = vmor %vm5073, %vm5074
        %v5076 = vsel %vm5075, %v5068, %v5072
        %v5077 = vand.u32 2147483647, %v4896
        %vm5078 = vcmp.eq.f32.partialorder %v5077, 8.507059e+37
        %v5079 = vand.u32 %v4896, 2147483648
        %v5080 = vor.u32 1.1754944e-38, %v5079
        %v5081 = vsel %vm5078, %v5080, %v5076
        %v5082 = vmul.f32 1.0, %v5081
        %v5083 = vrcp.pop %v4897
        %v5084 = vmul.f32 %v4897, %v5083
        %v5085 = vsub.f32 1.0, %v5084
        %v5086 = vmul.f32 %v5083, %v5085
        %v5087 = vadd.f32 %v5083, %v5086
        %vm5088 = vweird.f32 %v4897
        %vm5089 = vweird.f32 %v5083
        %vm5090 = vmor %vm5088, %vm5089
        %v5091 = vsel %vm5090, %v5083, %v5087
        %v5092 = vand.u32 2147483647, %v4897
        %vm5093 = vcmp.eq.f32.partialorder %v5092, 8.507059e+37
        %v5094 = vand.u32 %v4897, 2147483648
        %v5095 = vor.u32 1.1754944e-38, %v5094
        %v5096 = vsel %vm5093, %v5095, %v5091
        %v5097 = vmul.f32 1.0, %v5096
        %v5098 = vrcp.pop %v4898
        %v5099 = vmul.f32 %v4898, %v5098
        %v5100 = vsub.f32 1.0, %v5099
        %v5101 = vmul.f32 %v5098, %v5100
        %v5102 = vadd.f32 %v5098, %v5101
        %vm5103 = vweird.f32 %v4898
        %vm5104 = vweird.f32 %v5098
        %vm5105 = vmor %vm5103, %vm5104
        %v5106 = vsel %vm5105, %v5098, %v5102
        %v5107 = vand.u32 2147483647, %v4898
        %vm5108 = vcmp.eq.f32.partialorder %v5107, 8.507059e+37
        %v5109 = vand.u32 %v4898, 2147483648
        %v5110 = vor.u32 1.1754944e-38, %v5109
        %v5111 = vsel %vm5108, %v5110, %v5106
        %v5112 = vmul.f32 1.0, %v5111
        %v5113 = vrcp.pop %v4899
        %v5114 = vmul.f32 %v4899, %v5113
        %v5115 = vsub.f32 1.0, %v5114
        %v5116 = vmul.f32 %v5113, %v5115
        %v5117 = vadd.f32 %v5113, %v5116
        %vm5118 = vweird.f32 %v4899
        %vm5119 = vweird.f32 %v5113
        %vm5120 = vmor %vm5118, %vm5119
        %v5121 = vsel %vm5120, %v5113, %v5117
        %v5122 = vand.u32 2147483647, %v4899
        %vm5123 = vcmp.eq.f32.partialorder %v5122, 8.507059e+37
        %v5124 = vand.u32 %v4899, 2147483648
        %v5125 = vor.u32 1.1754944e-38, %v5124
        %v5126 = vsel %vm5123, %v5125, %v5121
        %v5127 = vmul.f32 1.0, %v5126
        %v5128 = vrcp.pop %v4900
        %v5129 = vmul.f32 %v4900, %v5128
        %v5130 = vsub.f32 1.0, %v5129
        %v5131 = vmul.f32 %v5128, %v5130
        %v5132 = vadd.f32 %v5128, %v5131
        %vm5133 = vweird.f32 %v4900
        %vm5134 = vweird.f32 %v5128
        %vm5135 = vmor %vm5133, %vm5134
        %v5136 = vsel %vm5135, %v5128, %v5132
        %v5137 = vand.u32 2147483647, %v4900
        %vm5138 = vcmp.eq.f32.partialorder %v5137, 8.507059e+37
        %v5139 = vand.u32 %v4900, 2147483648
        %v5140 = vor.u32 1.1754944e-38, %v5139
        %v5141 = vsel %vm5138, %v5140, %v5136
        %v5142 = vmul.f32 1.0, %v5141
        %v5143 = vrcp.pop %v4901
        %v5144 = vmul.f32 %v4901, %v5143
        %v5145 = vsub.f32 1.0, %v5144
        %v5146 = vmul.f32 %v5143, %v5145
        %v5147 = vadd.f32 %v5143, %v5146
        %vm5148 = vweird.f32 %v4901
        %vm5149 = vweird.f32 %v5143
        %vm5150 = vmor %vm5148, %vm5149
        %v5151 = vsel %vm5150, %v5143, %v5147
        %v5152 = vand.u32 2147483647, %v4901
        %vm5153 = vcmp.eq.f32.partialorder %v5152, 8.507059e+37
        %v5154 = vand.u32 %v4901, 2147483648
        %v5155 = vor.u32 1.1754944e-38, %v5154
        %v5156 = vsel %vm5153, %v5155, %v5151
        %v5157 = vmul.f32 1.0, %v5156
        %v5158 = vrcp.pop %v4902
        %v5159 = vmul.f32 %v4902, %v5158
        %v5160 = vsub.f32 1.0, %v5159
        %v5161 = vmul.f32 %v5158, %v5160
        %v5162 = vadd.f32 %v5158, %v5161
        %vm5163 = vweird.f32 %v4902
        %vm5164 = vweird.f32 %v5158
        %vm5165 = vmor %vm5163, %vm5164
        %v5166 = vsel %vm5165, %v5158, %v5162
        %v5167 = vand.u32 2147483647, %v4902
        %vm5168 = vcmp.eq.f32.partialorder %v5167, 8.507059e+37
        %v5169 = vand.u32 %v4902, 2147483648
        %v5170 = vor.u32 1.1754944e-38, %v5169
        %v5171 = vsel %vm5168, %v5170, %v5166
        %v5172 = vmul.f32 1.0, %v5171
        %v5173 = vrcp.pop %v4903
        %v5174 = vmul.f32 %v4903, %v5173
        %v5175 = vsub.f32 1.0, %v5174
        %v5176 = vmul.f32 %v5173, %v5175
        %v5177 = vadd.f32 %v5173, %v5176
        %vm5178 = vweird.f32 %v4903
        %vm5179 = vweird.f32 %v5173
        %vm5180 = vmor %vm5178, %vm5179
        %v5181 = vsel %vm5180, %v5173, %v5177
        %v5182 = vand.u32 2147483647, %v4903
        %vm5183 = vcmp.eq.f32.partialorder %v5182, 8.507059e+37
        %v5184 = vand.u32 %v4903, 2147483648
        %v5185 = vor.u32 1.1754944e-38, %v5184
        %v5186 = vsel %vm5183, %v5185, %v5181
        %v5187 = vmul.f32 1.0, %v5186
        %v5188 = vrcp.pop %v4904
        %v5189 = vmul.f32 %v4904, %v5188
        %v5190 = vsub.f32 1.0, %v5189
        %v5191 = vmul.f32 %v5188, %v5190
        %v5192 = vadd.f32 %v5188, %v5191
        %vm5193 = vweird.f32 %v4904
        %vm5194 = vweird.f32 %v5188
        %vm5195 = vmor %vm5193, %vm5194
        %v5196 = vsel %vm5195, %v5188, %v5192
        %v5197 = vand.u32 2147483647, %v4904
        %vm5198 = vcmp.eq.f32.partialorder %v5197, 8.507059e+37
        %v5199 = vand.u32 %v4904, 2147483648
        %v5200 = vor.u32 1.1754944e-38, %v5199
        %v5201 = vsel %vm5198, %v5200, %v5196
        %v5202 = vmul.f32 1.0, %v5201
        %v5203 = vrcp.pop %v4905
        %v5204 = vmul.f32 %v4905, %v5203
        %v5205 = vsub.f32 1.0, %v5204
        %v5206 = vmul.f32 %v5203, %v5205
        %v5207 = vadd.f32 %v5203, %v5206
        %vm5208 = vweird.f32 %v4905
        %vm5209 = vweird.f32 %v5203
        %vm5210 = vmor %vm5208, %vm5209
        %v5211 = vsel %vm5210, %v5203, %v5207
        %v5212 = vand.u32 2147483647, %v4905
        %vm5213 = vcmp.eq.f32.partialorder %v5212, 8.507059e+37
        %v5214 = vand.u32 %v4905, 2147483648
        %v5215 = vor.u32 1.1754944e-38, %v5214
        %v5216 = vsel %vm5213, %v5215, %v5211
        %v5217 = vmul.f32 1.0, %v5216
        %v5218 = vrcp.pop %v4906
        %v5219 = vmul.f32 %v4906, %v5218
        %v5220 = vsub.f32 1.0, %v5219
        %v5221 = vmul.f32 %v5218, %v5220
        %v5222 = vadd.f32 %v5218, %v5221
        %vm5223 = vweird.f32 %v4906
        %vm5224 = vweird.f32 %v5218
        %vm5225 = vmor %vm5223, %vm5224
        %v5226 = vsel %vm5225, %v5218, %v5222
        %v5227 = vand.u32 2147483647, %v4906
        %vm5228 = vcmp.eq.f32.partialorder %v5227, 8.507059e+37
        %v5229 = vand.u32 %v4906, 2147483648
        %v5230 = vor.u32 1.1754944e-38, %v5229
        %v5231 = vsel %vm5228, %v5230, %v5226
        %v5232 = vmul.f32 1.0, %v5231
        %v5233 = vrcp.pop %v4907
        %v5234 = vmul.f32 %v4907, %v5233
        %v5235 = vsub.f32 1.0, %v5234
        %v5236 = vmul.f32 %v5233, %v5235
        %v5237 = vadd.f32 %v5233, %v5236
        %vm5238 = vweird.f32 %v4907
        %vm5239 = vweird.f32 %v5233
        %vm5240 = vmor %vm5238, %vm5239
        %v5241 = vsel %vm5240, %v5233, %v5237
        %v5242 = vand.u32 2147483647, %v4907
        %vm5243 = vcmp.eq.f32.partialorder %v5242, 8.507059e+37
        %v5244 = vand.u32 %v4907, 2147483648
        %v5245 = vor.u32 1.1754944e-38, %v5244
        %v5246 = vsel %vm5243, %v5245, %v5241
        %v5247 = vmul.f32 1.0, %v5246
        %v5248 = vrcp.pop %v4908
        %v5249 = vmul.f32 %v4908, %v5248
        %v5250 = vsub.f32 1.0, %v5249
        %v5251 = vmul.f32 %v5248, %v5250
        %v5252 = vadd.f32 %v5248, %v5251
        %vm5253 = vweird.f32 %v4908
        %vm5254 = vweird.f32 %v5248
        %vm5255 = vmor %vm5253, %vm5254
        %v5256 = vsel %vm5255, %v5248, %v5252
        %v5257 = vand.u32 2147483647, %v4908
        %vm5258 = vcmp.eq.f32.partialorder %v5257, 8.507059e+37
        %v5259 = vand.u32 %v4908, 2147483648
        %v5260 = vor.u32 1.1754944e-38, %v5259
        %v5261 = vsel %vm5258, %v5260, %v5256
        %v5262 = vmul.f32 1.0, %v5261
        %v5263 = vrcp.pop %v4909
        %v5264 = vmul.f32 %v4909, %v5263
        %v5265 = vsub.f32 1.0, %v5264
        %v5266 = vmul.f32 %v5263, %v5265
        %v5267 = vadd.f32 %v5263, %v5266
        %vm5268 = vweird.f32 %v4909
        %vm5269 = vweird.f32 %v5263
        %vm5270 = vmor %vm5268, %vm5269
        %v5271 = vsel %vm5270, %v5263, %v5267
        %v5272 = vand.u32 2147483647, %v4909
        %vm5273 = vcmp.eq.f32.partialorder %v5272, 8.507059e+37
        %v5274 = vand.u32 %v4909, 2147483648
        %v5275 = vor.u32 1.1754944e-38, %v5274
        %v5276 = vsel %vm5273, %v5275, %v5271
        %v5277 = vmul.f32 1.0, %v5276
        %v5278 = vrcp.pop %v4910
        %v5279 = vmul.f32 %v4910, %v5278
        %v5280 = vsub.f32 1.0, %v5279
        %v5281 = vmul.f32 %v5278, %v5280
        %v5282 = vadd.f32 %v5278, %v5281
        %vm5283 = vweird.f32 %v4910
        %vm5284 = vweird.f32 %v5278
        %vm5285 = vmor %vm5283, %vm5284
        %v5286 = vsel %vm5285, %v5278, %v5282
        %v5287 = vand.u32 2147483647, %v4910
        %vm5288 = vcmp.eq.f32.partialorder %v5287, 8.507059e+37
        %v5289 = vand.u32 %v4910, 2147483648
        %v5290 = vor.u32 1.1754944e-38, %v5289
        %v5291 = vsel %vm5288, %v5290, %v5286
        %v5292 = vmul.f32 1.0, %v5291
        %v5293 = vrcp.pop %v4911
        %v5294 = vmul.f32 %v4911, %v5293
        %v5295 = vsub.f32 1.0, %v5294
        %v5296 = vmul.f32 %v5293, %v5295
        %v5297 = vadd.f32 %v5293, %v5296
        %vm5298 = vweird.f32 %v4911
        %vm5299 = vweird.f32 %v5293
        %vm5300 = vmor %vm5298, %vm5299
        %v5301 = vsel %vm5300, %v5293, %v5297
        %v5302 = vand.u32 2147483647, %v4911
        %vm5303 = vcmp.eq.f32.partialorder %v5302, 8.507059e+37
        %v5304 = vand.u32 %v4911, 2147483648
        %v5305 = vor.u32 1.1754944e-38, %v5304
        %v5306 = vsel %vm5303, %v5305, %v5301
        %v5307 = vmul.f32 1.0, %v5306
        %v5308 = vrcp.pop %v4912
        %v5309 = vmul.f32 %v4912, %v5308
        %v5310 = vsub.f32 1.0, %v5309
        %v5311 = vmul.f32 %v5308, %v5310
        %v5312 = vadd.f32 %v5308, %v5311
        %vm5313 = vweird.f32 %v4912
        %vm5314 = vweird.f32 %v5308
        %vm5315 = vmor %vm5313, %vm5314
        %v5316 = vsel %vm5315, %v5308, %v5312
        %v5317 = vand.u32 2147483647, %v4912
        %vm5318 = vcmp.eq.f32.partialorder %v5317, 8.507059e+37
        %v5319 = vand.u32 %v4912, 2147483648
        %v5320 = vor.u32 1.1754944e-38, %v5319
        %v5321 = vsel %vm5318, %v5320, %v5316
        %v5322 = vmul.f32 1.0, %v5321
        %v5323 = vrcp.pop %v4913
        %v5324 = vmul.f32 %v4913, %v5323
        %v5325 = vsub.f32 1.0, %v5324
        %v5326 = vmul.f32 %v5323, %v5325
        %v5327 = vadd.f32 %v5323, %v5326
        %vm5328 = vweird.f32 %v4913
        %vm5329 = vweird.f32 %v5323
        %vm5330 = vmor %vm5328, %vm5329
        %v5331 = vsel %vm5330, %v5323, %v5327
        %v5332 = vand.u32 2147483647, %v4913
        %vm5333 = vcmp.eq.f32.partialorder %v5332, 8.507059e+37
        %v5334 = vand.u32 %v4913, 2147483648
        %v5335 = vor.u32 1.1754944e-38, %v5334
        %v5336 = vsel %vm5333, %v5335, %v5331
        %v5337 = vmul.f32 1.0, %v5336
        %v5338 = vrcp.pop %v4914
        %v5339 = vmul.f32 %v4914, %v5338
        %v5340 = vsub.f32 1.0, %v5339
        %v5341 = vmul.f32 %v5338, %v5340
        %v5342 = vadd.f32 %v5338, %v5341
        %vm5343 = vweird.f32 %v4914
        %vm5344 = vweird.f32 %v5338
        %vm5345 = vmor %vm5343, %vm5344
        %v5346 = vsel %vm5345, %v5338, %v5342
        %v5347 = vand.u32 2147483647, %v4914
        %vm5348 = vcmp.eq.f32.partialorder %v5347, 8.507059e+37
        %v5349 = vand.u32 %v4914, 2147483648
        %v5350 = vor.u32 1.1754944e-38, %v5349
        %v5351 = vsel %vm5348, %v5350, %v5346
        %v5352 = vmul.f32 1.0, %v5351
        %v5353 = vrcp.pop %v4915
        %v5354 = vmul.f32 %v4915, %v5353
        %v5355 = vsub.f32 1.0, %v5354
        %v5356 = vmul.f32 %v5353, %v5355
        %v5357 = vadd.f32 %v5353, %v5356
        %vm5358 = vweird.f32 %v4915
        %vm5359 = vweird.f32 %v5353
        %vm5360 = vmor %vm5358, %vm5359
        %v5361 = vsel %vm5360, %v5353, %v5357
        %v5362 = vand.u32 2147483647, %v4915
        %vm5363 = vcmp.eq.f32.partialorder %v5362, 8.507059e+37
        %v5364 = vand.u32 %v4915, 2147483648
        %v5365 = vor.u32 1.1754944e-38, %v5364
        %v5366 = vsel %vm5363, %v5365, %v5361
        %v5367 = vmul.f32 1.0, %v5366
        %v5368 = vrcp.pop %v4916
        %v5369 = vmul.f32 %v4916, %v5368
        %v5370 = vsub.f32 1.0, %v5369
        %v5371 = vmul.f32 %v5368, %v5370
        %v5372 = vadd.f32 %v5368, %v5371
        %vm5373 = vweird.f32 %v4916
        %vm5374 = vweird.f32 %v5368
        %vm5375 = vmor %vm5373, %vm5374
        %v5376 = vsel %vm5375, %v5368, %v5372
        %v5377 = vand.u32 2147483647, %v4916
        %vm5378 = vcmp.eq.f32.partialorder %v5377, 8.507059e+37
        %v5379 = vand.u32 %v4916, 2147483648
        %v5380 = vor.u32 1.1754944e-38, %v5379
        %v5381 = vsel %vm5378, %v5380, %v5376
        %v5382 = vmul.f32 1.0, %v5381
        %v5383 = vrcp.pop %v4917
        %v5384 = vmul.f32 %v4917, %v5383
        %v5385 = vsub.f32 1.0, %v5384
        %v5386 = vmul.f32 %v5383, %v5385
        %v5387 = vadd.f32 %v5383, %v5386
        %vm5388 = vweird.f32 %v4917
        %vm5389 = vweird.f32 %v5383
        %vm5390 = vmor %vm5388, %vm5389
        %v5391 = vsel %vm5390, %v5383, %v5387
        %v5392 = vand.u32 2147483647, %v4917
        %vm5393 = vcmp.eq.f32.partialorder %v5392, 8.507059e+37
        %v5394 = vand.u32 %v4917, 2147483648
        %v5395 = vor.u32 1.1754944e-38, %v5394
        %v5396 = vsel %vm5393, %v5395, %v5391
        %v5397 = vmul.f32 1.0, %v5396
        %v5398 = vld [vmem:[%s374] sm:$0xff]
        %v5399 = vld [vmem:[%s374 + $0x8] sm:$0xff]
        %v5400 = vld [vmem:[%s374 + $0x10] sm:$0xff]
        %v5401 = vld [vmem:[%s374 + $0x18] sm:$0xff]
        %v5402 = vld [vmem:[%s384] sm:$0xff]
        %v5403 = vld [vmem:[%s384 + $0x8] sm:$0xff]
        %v5404 = vld [vmem:[%s384 + $0x10] sm:$0xff]
        %v5405 = vld [vmem:[%s384 + $0x18] sm:$0xff]
        %v5410 = vrot.slane %v5398, 7
        %v5411 = vrot.slane %v5399, 7
        %v5412 = vrot.slane %v5400, 7
        %v5413 = vrot.slane %v5401, 7
        %v5418 = vsub.f32 %v5398, %v5410
        %v5419 = vsub.f32 %v5399, %v5411
        %v5420 = vsub.f32 %v5400, %v5412
        %v5421 = vsub.f32 %v5401, %v5413
        %v5422 = vmax.f32 %v5418, 1e-08
        %v5423 = vmax.f32 %v5419, 1e-08
        %v5424 = vmax.f32 %v5420, 1e-08
        %v5425 = vmax.f32 %v5421, 1e-08
        %v5430 = vrot.slane %v5402, 7
        %v5431 = vrot.slane %v5403, 7
        %v5432 = vrot.slane %v5404, 7
        %v5433 = vrot.slane %v5405, 7
        %v5438 = vmul.f32 %v5422, %v5430
        %v5439 = vmul.f32 %v5423, %v5431
        %v5440 = vmul.f32 %v5424, %v5432
        %v5441 = vmul.f32 %v5425, %v5433
        %v5442 = vmul.f32 %v5402, 1e+10
        %v5443 = vmul.f32 %v5403, 1e+10
        %v5444 = vmul.f32 %v5404, 1e+10
        %v5445 = vmul.f32 %v5405, 1e+10
        %v5450 = vrot.slane %v5438, 1
        %v5451 = vrot.slane %v5439, 1
        %v5452 = vrot.slane %v5440, 1
        %v5453 = vrot.slane %v5441, 1
        %vm5458 = vcmask 1046528
        %v5459 = vsel %vm5458, %v5450, %v5442
        %v5460 = vsel %vm5458, %v5451, %v5443
        %v5461 = vsel %vm5458, %v5452, %v5444
        %v5462 = vsel %vm5458, %v5453, %v5445
        %v5463 = vsub.f32 0.0, %v5459
        %v5464 = vsub.f32 0.0, %v5460
        %v5465 = vsub.f32 0.0, %v5461
        %v5466 = vsub.f32 0.0, %v5462
        %v5467 = vmul.f32 %v5463, 1.442695
        %v5468 = vpow.pop %v5467
        %v5469 = vmul.f32 %v5464, 1.442695
        %v5470 = vpow.pop %v5469
        %v5471 = vmul.f32 %v5465, 1.442695
        %v5472 = vpow.pop %v5471
        %v5473 = vmul.f32 %v5466, 1.442695
        %v5474 = vpow.pop %v5473
        %v5475 = vsub.f32 1.0, %v5468
        %v5476 = vsub.f32 1.0, %v5470
        %v5477 = vsub.f32 1.0, %v5472
        %v5478 = vsub.f32 1.0, %v5474
        %vm5479 = vcmask 1040384
        %v5480 = vsel %vm5479, 0.0, %v5438
        %v5481 = vsel %vm5479, 0.0, %v5439
        %v5482 = vsel %vm5479, 0.0, %v5440
        %v5483 = vsel %vm5479, 0.0, %v5441
        %v5488 = vrot.slane %v5480, 7
        %v5489 = vrot.slane %v5481, 7
        %v5490 = vrot.slane %v5482, 7
        %v5491 = vrot.slane %v5483, 7
        %v5496 = vsel %vm5479, 0.0, %v5488
        %v5497 = vsel %vm5479, 0.0, %v5489
        %v5498 = vsel %vm5479, 0.0, %v5490
        %v5499 = vsel %vm5479, 0.0, %v5491
        %v5500 = vadd.f32 %v5480, %v5496
        %v5501 = vadd.f32 %v5481, %v5497
        %v5502 = vadd.f32 %v5482, %v5498
        %v5503 = vadd.f32 %v5483, %v5499
        %v5508 = vrot.slane %v5500, 6
        %v5509 = vrot.slane %v5501, 6
        %v5510 = vrot.slane %v5502, 6
        %v5511 = vrot.slane %v5503, 6
        %vm5516 = vcmask 1041408
        %v5517 = vsel %vm5516, 0.0, %v5508
        %v5518 = vsel %vm5516, 0.0, %v5509
        %v5519 = vsel %vm5516, 0.0, %v5510
        %v5520 = vsel %vm5516, 0.0, %v5511
        %v5521 = vadd.f32 %v5500, %v5517
        %v5522 = vadd.f32 %v5501, %v5518
        %v5523 = vadd.f32 %v5502, %v5519
        %v5524 = vadd.f32 %v5503, %v5520
        %v5529 = vrot.slane %v5521, 4
        %v5530 = vrot.slane %v5522, 4
        %v5531 = vrot.slane %v5523, 4
        %v5532 = vrot.slane %v5524, 4
        %vm5537 = vcmask 1043456
        %v5538 = vsel %vm5537, 0.0, %v5529
        %v5539 = vsel %vm5537, 0.0, %v5530
        %v5540 = vsel %vm5537, 0.0, %v5531
        %v5541 = vsel %vm5537, 0.0, %v5532
        %v5542 = vadd.f32 %v5521, %v5538
        %v5543 = vadd.f32 %v5522, %v5539
        %v5544 = vadd.f32 %v5523, %v5540
        %v5545 = vadd.f32 %v5524, %v5541
        %v5546 = vsub.f32 0.0, %v5542
        %v5547 = vsub.f32 0.0, %v5543
        %v5548 = vsub.f32 0.0, %v5544
        %v5549 = vsub.f32 0.0, %v5545
        %v5550 = vmul.f32 %v5546, 1.442695
        %v5551 = vpow.pop %v5550
        %v5552 = vmul.f32 %v5547, 1.442695
        %v5553 = vpow.pop %v5552
        %v5554 = vmul.f32 %v5548, 1.442695
        %v5555 = vpow.pop %v5554
        %v5556 = vmul.f32 %v5549, 1.442695
        %v5557 = vpow.pop %v5556
        %v5558 = vmul.f32 %v5475, %v5551
        %v5559 = vmul.f32 %v5476, %v5553
        %v5560 = vmul.f32 %v5477, %v5555
        %v5561 = vmul.f32 %v5478, %v5557
        %v5562 = vmul.f32 %v5558, %v5398
        %v5563 = vmul.f32 %v5559, %v5399
        %v5564 = vmul.f32 %v5560, %v5400
        %v5565 = vmul.f32 %v5561, %v5401
        %v5566 = vrot.slane %v5562, 4
        %v5567 = vadd.f32 %v5562, %v5566
        %v5568 = vrot.slane %v5567, 2
        %v5569 = vadd.f32 %v5567, %v5568
        %v5570 = vrot.slane %v5569, 1
        %v5571 = vadd.f32 %v5569, %v5570
        %v5572 = vrot.slane %v5563, 4
        %v5573 = vadd.f32 %v5563, %v5572
        %v5574 = vrot.slane %v5573, 2
        %v5575 = vadd.f32 %v5573, %v5574
        %v5576 = vrot.slane %v5575, 1
        %v5577 = vadd.f32 %v5575, %v5576
        %v5578 = vrot.slane %v5564, 4
        %v5579 = vadd.f32 %v5564, %v5578
        %v5580 = vrot.slane %v5579, 2
        %v5581 = vadd.f32 %v5579, %v5580
        %v5582 = vrot.slane %v5581, 1
        %v5583 = vadd.f32 %v5581, %v5582
        %v5584 = vrot.slane %v5565, 4
        %v5585 = vadd.f32 %v5565, %v5584
        %v5586 = vrot.slane %v5585, 2
        %v5587 = vadd.f32 %v5585, %v5586
        %v5588 = vrot.slane %v5587, 1
        %v5589 = vadd.f32 %v5587, %v5588
        %v5590 = vrot.slane %v5558, 4
        %v5591 = vadd.f32 %v5558, %v5590
        %v5592 = vrot.slane %v5591, 2
        %v5593 = vadd.f32 %v5591, %v5592
        %v5594 = vrot.slane %v5593, 1
        %v5595 = vadd.f32 %v5593, %v5594
        %v5596 = vrot.slane %v5559, 4
        %v5597 = vadd.f32 %v5559, %v5596
        %v5598 = vrot.slane %v5597, 2
        %v5599 = vadd.f32 %v5597, %v5598
        %v5600 = vrot.slane %v5599, 1
        %v5601 = vadd.f32 %v5599, %v5600
        %v5602 = vrot.slane %v5560, 4
        %v5603 = vadd.f32 %v5560, %v5602
        %v5604 = vrot.slane %v5603, 2
        %v5605 = vadd.f32 %v5603, %v5604
        %v5606 = vrot.slane %v5605, 1
        %v5607 = vadd.f32 %v5605, %v5606
        %v5608 = vrot.slane %v5561, 4
        %v5609 = vadd.f32 %v5561, %v5608
        %v5610 = vrot.slane %v5609, 2
        %v5611 = vadd.f32 %v5609, %v5610
        %v5612 = vrot.slane %v5611, 1
        %v5613 = vadd.f32 %v5611, %v5612
        %v5614 = vperm.slane %v5558, 0
        %v5615 = vperm.slane %v5559, 0
        %v5616 = vperm.slane %v5560, 0
        %v5617 = vperm.slane %v5561, 0
        %v5618 = vmul.f32 %v5614, %v4932
        %v5619 = vmul.f32 %v5615, %v4947
        %v5620 = vmul.f32 %v5616, %v4962
        %v5621 = vmul.f32 %v5617, %v4977
        %v5622 = vadd.f32 %v5618, 0.0
        %v5623 = vadd.f32 %v5619, 0.0
        %v5624 = vadd.f32 %v5620, 0.0
        %v5625 = vadd.f32 %v5621, 0.0
        %v5626 = vperm.slane %v5558, 1
        %v5627 = vperm.slane %v5559, 1
        %v5628 = vperm.slane %v5560, 1
        %v5629 = vperm.slane %v5561, 1
        %v5630 = vmul.f32 %v5626, %v4992
        %v5631 = vmul.f32 %v5627, %v5007
        %v5632 = vmul.f32 %v5628, %v5022
        %v5633 = vmul.f32 %v5629, %v5037
        %v5634 = vadd.f32 %v5622, %v5630
        %v5635 = vadd.f32 %v5623, %v5631
        %v5636 = vadd.f32 %v5624, %v5632
        %v5637 = vadd.f32 %v5625, %v5633
        %v5638 = vperm.slane %v5558, 2
        %v5639 = vperm.slane %v5559, 2
        %v5640 = vperm.slane %v5560, 2
        %v5641 = vperm.slane %v5561, 2
        %v5642 = vmul.f32 %v5638, %v5052
        %v5643 = vmul.f32 %v5639, %v5067
        %v5644 = vmul.f32 %v5640, %v5082
        %v5645 = vmul.f32 %v5641, %v5097
        %v5646 = vadd.f32 %v5634, %v5642
        %v5647 = vadd.f32 %v5635, %v5643
        %v5648 = vadd.f32 %v5636, %v5644
        %v5649 = vadd.f32 %v5637, %v5645
        %v5650 = vperm.slane %v5558, 3
        %v5651 = vperm.slane %v5559, 3
        %v5652 = vperm.slane %v5560, 3
        %v5653 = vperm.slane %v5561, 3
        %v5654 = vmul.f32 %v5650, %v5112
        %v5655 = vmul.f32 %v5651, %v5127
        %v5656 = vmul.f32 %v5652, %v5142
        %v5657 = vmul.f32 %v5653, %v5157
        %v5658 = vadd.f32 %v5646, %v5654
        %v5659 = vadd.f32 %v5647, %v5655
        %v5660 = vadd.f32 %v5648, %v5656
        %v5661 = vadd.f32 %v5649, %v5657
        %v5662 = vperm.slane %v5558, 4
        %v5663 = vperm.slane %v5559, 4
        %v5664 = vperm.slane %v5560, 4
        %v5665 = vperm.slane %v5561, 4
        %v5666 = vmul.f32 %v5662, %v5172
        %v5667 = vmul.f32 %v5663, %v5187
        %v5668 = vmul.f32 %v5664, %v5202
        %v5669 = vmul.f32 %v5665, %v5217
        %v5670 = vadd.f32 %v5658, %v5666
        %v5671 = vadd.f32 %v5659, %v5667
        %v5672 = vadd.f32 %v5660, %v5668
        %v5673 = vadd.f32 %v5661, %v5669
        %v5674 = vperm.slane %v5558, 5
        %v5675 = vperm.slane %v5559, 5
        %v5676 = vperm.slane %v5560, 5
        %v5677 = vperm.slane %v5561, 5
        %v5678 = vmul.f32 %v5674, %v5232
        %v5679 = vmul.f32 %v5675, %v5247
        %v5680 = vmul.f32 %v5676, %v5262
        %v5681 = vmul.f32 %v5677, %v5277
        %v5682 = vadd.f32 %v5670, %v5678
        %v5683 = vadd.f32 %v5671, %v5679
        %v5684 = vadd.f32 %v5672, %v5680
        %v5685 = vadd.f32 %v5673, %v5681
        %v5686 = vperm.slane %v5558, 6
        %v5687 = vperm.slane %v5559, 6
        %v5688 = vperm.slane %v5560, 6
        %v5689 = vperm.slane %v5561, 6
        %v5690 = vmul.f32 %v5686, %v5292
        %v5691 = vmul.f32 %v5687, %v5307
        %v5692 = vmul.f32 %v5688, %v5322
        %v5693 = vmul.f32 %v5689, %v5337
        %v5694 = vadd.f32 %v5682, %v5690
        %v5695 = vadd.f32 %v5683, %v5691
        %v5696 = vadd.f32 %v5684, %v5692
        %v5697 = vadd.f32 %v5685, %v5693
        %v5698 = vperm.slane %v5558, 7
        %v5699 = vperm.slane %v5559, 7
        %v5700 = vperm.slane %v5560, 7
        %v5701 = vperm.slane %v5561, 7
        %v5702 = vmul.f32 %v5698, %v5352
        %v5703 = vmul.f32 %v5699, %v5367
        %v5704 = vmul.f32 %v5700, %v5382
        %v5705 = vmul.f32 %v5701, %v5397
        %v5706 = vadd.f32 %v5694, %v5702
        %v5707 = vadd.f32 %v5695, %v5703
        %v5708 = vadd.f32 %v5696, %v5704
        %v5709 = vadd.f32 %v5697, %v5705
        %vm5710 = vcmask 1042432
        %v5711 = vsel %vm5710, %v5706, %v5571
        %v5712 = vsel %vm5710, %v5707, %v5577
        %v5713 = vsel %vm5710, %v5708, %v5583
        %v5714 = vsel %vm5710, %v5709, %v5589
        %v5715 = vsel %vm5537, %v5711, %v5595
        %v5716 = vsel %vm5537, %v5712, %v5601
        %v5717 = vsel %vm5537, %v5713, %v5607
        %v5718 = vsel %vm5537, %v5714, %v5613
        %vm5719 = vcmask 1044480
        %v5720 = vsel %vm5719, %v5715, 0.0
        %v5721 = vsel %vm5719, %v5716, 0.0
        %v5722 = vsel %vm5719, %v5717, 0.0
        %v5723 = vsel %vm5719, %v5718, 0.0
        %5724 = vst [vmem:[%s429] sm:$0xff] %v5720
        %5725 = vst [vmem:[%s429 + $0x8] sm:$0xff] %v5721
        %5726 = vst [vmem:[%s429 + $0x10] sm:$0xff] %v5722
        %5727 = vst [vmem:[%s429 + $0x18] sm:$0xff] %v5723
        %s5728 = sand.u32 %s241, 1
        %s5729 = scalar_lea.sflag [#allocation4], %s5728
        %s5730 = sand.u32 %s241, 1
        %s5731 = smul.addr %s5730, 32
        %s5732 = scalar_lea.vmem [#allocation8], %s5731
        // Predicated region
        $region69: #{tpu_custom_call.1} parent=55 // pred_check
          %p5733 = pneg %p251
        $region70: #{tpu_custom_call.1} parent=55 // pred_check_branch
          %5735 = sbr.rel (%p5733) target = $region72
        $region71: #{tpu_custom_call.1} parent=55 // pred_region
          %s5736 = smul.u32 4, %s29
          %5738 = vsyncadd %s5729, 0
          %s5739 = smul.addr %s5736, 8
          %s5740 = scalar_lea.hbm %s9, %s5739
          %s5742 = sshll.u32 %s5732, 4
          %s5743 = int_to_ptr.vmem [resolvable:$true] %s5742
          %s5744 = sshll.u32 %s5740, 4
          %s5745 = int_to_ptr.hbm [resolvable:$true] %s5744
          %5747 = dma.vmem_to_hbm [thread:$0]  %s5743, 512, %s5745, %s5729
        $region72: #{tpu_custom_call.1} parent=55 // pred_fallthru
          _
      $region56: #{tpu_custom_call.1} parent=5 // pred_fallthru
        _
      %p5748 = scmp.le.s32.totalorder 2, %s24
      // Predicated region
      $region73: #{tpu_custom_call.1} parent=5 // pred_check
        %p5749 = pneg %p5748
      $region74: #{tpu_custom_call.1} parent=5 // pred_check_branch
        %5751 = sbr.rel (%p5749) target = $region76
      $region75: #{tpu_custom_call.1} parent=5 // pred_region
        %s5752 = ssub.s32 %s24, 2
        // Predicated region
        $region77: #{tpu_custom_call.1} parent=75 // pred_check
          %p5753 = pneg %p257
        $region78: #{tpu_custom_call.1} parent=75 // pred_check_branch
          %5755 = sbr.rel (%p5753) target = $region80
        $region79: #{tpu_custom_call.1} parent=75 // pred_region
          %s5756 = sand.u32 %s242, 1
          %s5757 = scalar_lea.sflag [#allocation4], %s5756
          %s5758 = sand.u32 %s242, 1
          %s5759 = smul.addr %s5758, 32
          %s5760 = scalar_lea.vmem [#allocation8], %s5759
          %5762 = dma.done %s5757, 512
        $region80: #{tpu_custom_call.1} parent=75 // pred_fallthru
          _
      $region76: #{tpu_custom_call.1} parent=5 // pred_fallthru
        _
    $region6: #{tpu_custom_call.1} parent=1 // loop_footer
      %s28 = sadd.s32 1, %s24
    $region7: #{tpu_custom_call.1} parent=1 // loop_footer_branch
      %23 = sbr.rel target = $region3
    $region8: #{tpu_custom_call.1} parent=1 // loop_exit
      _
    %5763 = vsyncpa [#allocation3], 1
    %s5764 = scalar_lea.sflag [#allocation3], 1
    %5765 = vsyncpa %s5764, 1
    %5766 = vsyncpa [#allocation6], 1
    %s5767 = scalar_lea.sflag [#allocation6], 1
    %5768 = vsyncpa %s5767, 1
    %5769 = vsyncpa [#allocation4], 1
    %s5770 = scalar_lea.sflag [#allocation4], 1
    %5771 = vsyncpa %s5770, 1

</llo_original>
